<compile_context>
chip_gen: v5e
topology: v5e:2x2
jax: 0.10.0
libtpu: 0.0.40
codegen_flags: <defaults>
</compile_context>

<pallas_src>
import functools

import jax
import jax.numpy as jnp
import numpy as np
from jax.experimental import pallas as pl
from jax.experimental.pallas import tpu as pltpu


# ------------------------------ fused kernel --------------------------------


def _bottleneck_kernel(*refs, stride, th, has_proj):
    """Fused Bottleneck forward for one (batch, row-tile) grid step.

    refs (in order):
      x_ref  : (1, H, W, Cin)          input image (resident per batch elem)
      w1_ref : (Cin, P)     b1_ref: (1, P)     conv1 weight (BN folded) / bias
      w2_ref : (9P, P)      b2_ref: (1, P)     conv2 im2col-packed weight
      w3_ref : (P, C4)      b3_ref: (1, C4)    conv3
      [ws_ref: (Cin, C4)    bs_ref: (1, C4)]   projection shortcut (optional)
      o_ref  : (1, th, Wo, C4)         output row tile
      pbuf   : VMEM ((th-1)*s+3, W+2, P)  per-tile padded conv1 output
    """
    if has_proj:
        (x_ref, w1_ref, b1_ref, w2_ref, b2_ref, w3_ref, b3_ref,
         ws_ref, bs_ref, o_ref, pbuf) = refs
    else:
        (x_ref, w1_ref, b1_ref, w2_ref, b2_ref, w3_ref, b3_ref,
         o_ref, pbuf) = refs
        ws_ref = bs_ref = None

    s = stride
    H, W, Cin = x_ref.shape[1], x_ref.shape[2], x_ref.shape[3]
    P = w1_ref.shape[1]
    Wo, C4 = o_ref.shape[2], o_ref.shape[3]
    R, Wp = pbuf.shape[0], pbuf.shape[1]          # (th-1)*s + 3, W + 2
    cdt = pbuf.dtype                              # internal compute dtype
    r = pl.program_id(1)
    nr = pl.num_programs(1)

    row0 = pl.multiple_of(r * (th * s), th * s)   # first "main" input row

    def conv1(x2d):                               # (M, Cin) -> (M, P)
        y = jnp.dot(x2d.astype(cdt), w1_ref[...],
                    preferred_element_type=jnp.float32)
        return jnp.maximum(y + b1_ref[...], 0.0).astype(cdt)

    # ---- conv1 (1x1) + bn1 + relu for this tile's row window ---------------
    # Zero only the halo: left/right pad columns, top/bottom pad rows.
    zcol = jnp.zeros((R, 1, P), cdt)
    pbuf[:, 0:1, :] = zcol
    pbuf[:, Wp - 1:Wp, :] = zcol

    # Main chunk: th*s rows, always fully in bounds and tile-aligned.
    xm = x_ref[0, pl.ds(row0, th * s), :, :]                     # (th*s, W, Cin)
    pbuf[1:th * s + 1, 1:W + 1, :] = conv1(
        xm.reshape(th * s * W, Cin)).reshape(th * s, W, P)

    # Top halo row (global row row0-1): zero pad on first tile, else recompute.
    @pl.when(r == 0)
    def _():
        pbuf[0:1, 1:W + 1, :] = jnp.zeros((1, W, P), cdt)

    @pl.when(r > 0)
    def _():
        xt = x_ref[0, pl.ds(row0 - 1, 1), :, :]                  # (1, W, Cin)
        pbuf[0:1, 1:W + 1, :] = conv1(xt.reshape(W, Cin)).reshape(1, W, P)

    if s == 1:
        # Bottom halo row (global row row0+th): zero pad on last tile.
        @pl.when(r == nr - 1)
        def _():
            pbuf[th + 1:th + 2, 1:W + 1, :] = jnp.zeros((1, W, P), cdt)

        @pl.when(r < nr - 1)
        def _():
            xb = x_ref[0, pl.ds(row0 + th, 1), :, :]
            pbuf[th + 1:th + 2, 1:W + 1, :] = conv1(
                xb.reshape(W, Cin)).reshape(1, W, P)
    # (s == 2 with even H needs no bottom padding: last output row uses H-1.)

    # ---- conv2 (3x3, stride s) + bn2 + relu: single K = 9*P matmul ---------
    slabs = []
    for dh in range(3):
        if s == 1:
            rows = pbuf[dh:dh + th, :, :]                        # (th, Wp, P)
        else:
            lo = min(dh, 1)
            par = dh - lo                                        # lo+par == dh
            rows = pbuf[lo:lo + 2 * th, :, :]                    # (2*th, Wp, P)
            rows = rows.reshape(th, 2, Wp, P)[:, par]            # rows dh + 2i
        for dw in range(3):
            if s == 1:
                slabs.append(rows[:, dw:dw + Wo, :])
            else:
                cols = rows[:, dw:dw + 2 * Wo, :].reshape(th, Wo, 2, P)
                slabs.append(cols[:, :, 0, :])                   # cols dw + 2j
    tap = jnp.concatenate(slabs, axis=-1).reshape(th * Wo, 9 * P)
    y2 = jnp.dot(tap, w2_ref[...], preferred_element_type=jnp.float32)
    y2 = jnp.maximum(y2 + b2_ref[...], 0.0)                      # (th*Wo, P) f32

    # ---- conv3 (1x1) + bn3 --------------------------------------------------
    y3 = jnp.dot(y2.astype(cdt), w3_ref[...],
                 preferred_element_type=jnp.float32) + b3_ref[...]

    # ---- shortcut (projection or identity; spatial subsample in-kernel) ----
    if s == 1:
        xs = x_ref[0, pl.ds(row0, th), :, :]                     # (th, W, Cin)
    else:
        xw = x_ref[0, pl.ds(row0, 2 * th), :, :]                 # (2*th, W, Cin)
        xs = xw.reshape(th, 2, W, Cin)[:, 0]                     # rows row0+2i
        xs = xs.reshape(th, Wo, 2, Cin)[:, :, 0, :]              # cols 2j
    xs2d = xs.reshape(th * Wo, Cin)
    if has_proj:
        res = jnp.dot(xs2d.astype(cdt), ws_ref[...],
                      preferred_element_type=jnp.float32) + bs_ref[...]
    else:
        res = xs2d.astype(jnp.float32)                           # Cin == C4

    out = jnp.maximum(y3 + res, 0.0)
    o_ref[...] = out.reshape(1, th, Wo, C4).astype(o_ref.dtype)


# ------------------------------- wrappers ------------------------------------


def _pick_row_tile(ho, wo):
    """Largest divisor of Ho such that the matmul M dim th*Wo stays <= ~512."""
    target = max(1, 512 // max(wo, 1))
    best = 1
    for cand in range(1, ho + 1):
        if ho % cand == 0 and cand <= target:
            best = cand
    return best


def bottleneck_forward_nhwc(x, p, stride, compute_dtype=jnp.bfloat16):
    """Fused Bottleneck forward; x is NHWC, returns NHWC (x.dtype)."""
    n, h, w, cin = x.shape
    planes = p["w1f"].shape[1]
    c4 = 4 * planes
    s = stride
    if s not in (1, 2):
        raise NotImplementedError("only stride 1 and 2 are supported")
    if s == 2 and (h % 2 or w % 2):
        raise NotImplementedError("stride 2 requires even H, W")

    ho = (h - 1) // s + 1
    wo = (w - 1) // s + 1
    th = _pick_row_tile(ho, wo)
    nr = ho // th
    rrows = (th - 1) * s + 3
    wp = w + 2
    has_proj = (s != 1) or (cin != c4)
    out_dtype = x.dtype
    cdt = jnp.dtype(compute_dtype)
    xk = x.astype(cdt)

    kernel = functools.partial(_bottleneck_kernel, stride=s, th=th,
                               has_proj=has_proj)

    in_specs = [
        # Full image per batch element (resident across row tiles; the 3x3 row
        # halo cannot be expressed as a non-overlapping Blocked row window).
        pl.BlockSpec((1, h, w, cin), lambda b, r: (b, 0, 0, 0)),
        pl.BlockSpec((cin, planes), lambda b, r: (0, 0)),
        pl.BlockSpec((1, planes), lambda b, r: (0, 0)),
        pl.BlockSpec((9 * planes, planes), lambda b, r: (0, 0)),
        pl.BlockSpec((1, planes), lambda b, r: (0, 0)),
        pl.BlockSpec((planes, c4), lambda b, r: (0, 0)),
        pl.BlockSpec((1, c4), lambda b, r: (0, 0)),
    ]
    args = [xk,
            p["w1f"].astype(cdt), p["b1f"].reshape(1, planes),
            p["w2f"].astype(cdt), p["b2f"].reshape(1, planes),
            p["w3f"].astype(cdt), p["b3f"].reshape(1, c4)]
    if has_proj:
        in_specs += [pl.BlockSpec((cin, c4), lambda b, r: (0, 0)),
                     pl.BlockSpec((1, c4), lambda b, r: (0, 0))]
        args += [p["wsf"].astype(cdt), p["bsf"].reshape(1, c4)]

    # Explicit VMEM budget: double-buffered blocks + scratch + f32 temporaries.
    itm = cdt.itemsize
    est = (2 * h * w * cin * itm
           + 2 * th * wo * c4 * jnp.dtype(out_dtype).itemsize
           + rrows * wp * planes * itm
           + (cin * planes + 9 * planes * planes + planes * c4
              + cin * c4 + 2 * planes + 2 * c4) * 4
           + 6 * th * wo * max(9 * planes, c4) * 4)
    vmem_limit = int(min(max(2 * est, 32 << 20), 64 << 20))  # <= v7x physical

    return pl.pallas_call(
        kernel,
        out_shape=jax.ShapeDtypeStruct((n, ho, wo, c4), out_dtype),
        grid=(n, nr),
        in_specs=in_specs,
        out_specs=pl.BlockSpec((1, th, wo, c4), lambda b, r: (b, r, 0, 0)),
        scratch_shapes=[pltpu.VMEM((rrows, wp, planes), cdt)],
        compiler_params=pltpu.CompilerParams(
            dimension_semantics=("parallel", "parallel"),
            vmem_limit_bytes=vmem_limit),
    )(*args)


def bottleneck_forward(x_nchw, p, stride, compute_dtype=jnp.bfloat16):
    """NCHW wrapper matching the PyTorch module API.

    NOTE: for a stack of Bottleneck blocks keep NHWC end-to-end and only
    transpose at the network boundary.
    """
    x = jnp.transpose(x_nchw, (0, 2, 3, 1))
    out = bottleneck_forward_nhwc(x, p, stride, compute_dtype=compute_dtype)
    return jnp.transpose(out, (0, 3, 1, 2))


# -------------------------- params & pure-JAX ref ----------------------------


def _fold_bn(key, c):
    k1, k2, k3, k4 = jax.random.split(key, 4)
    gamma = 1.0 + 0.1 * jax.random.normal(k1, (c,), jnp.float32)
    beta = 0.1 * jax.random.normal(k2, (c,), jnp.float32)
    mean = 0.1 * jax.random.normal(k3, (c,), jnp.float32)
    var = 0.5 + jax.random.uniform(k4, (c,), jnp.float32)
    scale = gamma / jnp.sqrt(var + 1e-5)
    bias = beta - mean * scale
    return scale, bias


def init_params(key, inplanes, planes):
    c4 = 4 * planes
    ks = jax.random.split(key, 8)
    # PyTorch Conv2d weight layout: (Cout, Cin, kh, kw)
    w1_t = 0.3 * jax.random.normal(ks[0], (planes, inplanes, 1, 1), jnp.float32)
    w2_t = 0.3 * jax.random.normal(ks[1], (planes, planes, 3, 3), jnp.float32)
    w3_t = 0.3 * jax.random.normal(ks[2], (c4, planes, 1, 1), jnp.float32)
    ws_t = 0.3 * jax.random.normal(ks[3], (c4, inplanes, 1, 1), jnp.float32)
    s1, b1 = _fold_bn(ks[4], planes)
    s2, b2 = _fold_bn(ks[5], planes)
    s3, b3 = _fold_bn(ks[6], c4)
    ss, bs = _fold_bn(ks[7], c4)
    # conv2 packed for a single K=9P matmul:
    #   w2f[(kh*3 + kw)*Cin + ci, co] = w2_t[co, ci, kh, kw] * s2[co]
    w2k = jnp.transpose(w2_t, (2, 3, 1, 0)).reshape(9 * planes, planes)
    return dict(
        # Kernel-layout weights with the (inference-mode) BN scale folded in.
        w1f=jnp.transpose(w1_t[:, :, 0, 0]) * s1[None, :],
        w2f=w2k * s2[None, :],
        w3f=jnp.transpose(w3_t[:, :, 0, 0]) * s3[None, :],
        wsf=jnp.transpose(ws_t[:, :, 0, 0]) * ss[None, :],
        b1f=b1, b2f=b2, b3f=b3, bsf=bs,
        # PyTorch-layout weights + unfolded BN (for the pure-JAX reference).
        w1_t=w1_t, w2_t=w2_t, w3_t=w3_t, ws_t=ws_t,
        s1=s1, b1=b1, s2=s2, b2=b2, s3=s3, b3=b3, ss=ss, bs=bs,
    )


def _conv_nhwc(x, w_oihw, stride, padding):
    w = jnp.transpose(w_oihw, (2, 3, 1, 0))            # OIHW -> HWIO
    return jax.lax.conv_general_dilated(
        x, w, (stride, stride), padding,
        dimension_numbers=("NHWC", "HWIO", "NHWC"),
        precision=jax.lax.Precision.HIGHEST)


def bottleneck_ref(x_nchw, p, stride):
    x = jnp.transpose(x_nchw, (0, 2, 3, 1)).astype(jnp.float32)
    cin = x.shape[-1]
    cexp = p["w3_t"].shape[0]
    y = _conv_nhwc(x, p["w1_t"], 1, "VALID") * p["s1"] + p["b1"]
    y = jnp.maximum(y, 0.0)
    y = _conv_nhwc(y, p["w2_t"], stride, [(1, 1), (1, 1)]) * p["s2"] + p["b2"]
    y = jnp.maximum(y, 0.0)
    y = _conv_nhwc(y, p["w3_t"], 1, "VALID") * p["s3"] + p["b3"]
    if stride != 1 or cin != cexp:
        res = _conv_nhwc(x, p["ws_t"], stride, "VALID") * p["ss"] + p["bs"]
    else:
        res = x
    out = jnp.maximum(y + res, 0.0)
    return jnp.transpose(out, (0, 3, 1, 2))


# ----------------------------------- main ------------------------------------


if __name__ == "__main__":
    key = jax.random.PRNGKey(0)
    N, H, W = 2, 16, 16

    # (inplanes, planes, stride): projection shortcut at stride 1 and 2,
    # plus the identity-shortcut case (inplanes == 4*planes, stride 1).
    cases = [(4, 4, 1), (4, 4, 2), (16, 4, 1)]
    for i, (inplanes, planes, stride) in enumerate(cases):
        params = init_params(jax.random.fold_in(key, i), inplanes, planes)
        x = jax.random.normal(jax.random.fold_in(key, 100 + i),
                              (N, inplanes, H, W), jnp.float32)   # NCHW
        out = jax.block_until_ready(
            bottleneck_forward(x, params, stride, compute_dtype=jnp.float32))
        ref = bottleneck_ref(x, params, stride)
        assert out.shape == ref.shape, (out.shape, ref.shape)
        np.testing.assert_allclose(np.asarray(out), np.asarray(ref),
                                   rtol=1e-3, atol=1e-3)

    # Default internal bf16 path (halved HBM/VMEM bytes, f32 MXU accumulation).
    inplanes, planes, stride = 4, 4, 2
    params = init_params(jax.random.fold_in(key, 7), inplanes, planes)
    x = jax.random.normal(jax.random.fold_in(key, 200),
                          (N, inplanes, H, W), jnp.float32)
    out_bf16 = jax.block_until_ready(bottleneck_forward(x, params, stride))
    ref = bottleneck_ref(x, params, stride)
    np.testing.assert_allclose(np.asarray(out_bf16.astype(jnp.float32)),
                               np.asarray(ref), rtol=1e-1, atol=1e-1)

    print("KERNEL_OK")
</pallas_src>

<mosaic_0001>
module attributes {stable_mosaic.version = 11 : i64} {
  func.func @_bottleneck_kernel(%arg0: i32, %arg1: i32, %arg2: memref<1x16x16x4xf32, #tpu.memory_space<vmem>>, %arg3: memref<4x4xf32, #tpu.memory_space<vmem>>, %arg4: memref<1x4xf32, #tpu.memory_space<vmem>>, %arg5: memref<36x4xf32, #tpu.memory_space<vmem>>, %arg6: memref<1x4xf32, #tpu.memory_space<vmem>>, %arg7: memref<4x16xf32, #tpu.memory_space<vmem>>, %arg8: memref<1x16xf32, #tpu.memory_space<vmem>>, %arg9: memref<4x16xf32, #tpu.memory_space<vmem>>, %arg10: memref<1x16xf32, #tpu.memory_space<vmem>>, %arg11: memref<1x16x16x16xf32, #tpu.memory_space<vmem>>, %arg12: memref<18x18x4xf32, #tpu.memory_space<vmem>>) attributes {dimension_semantics = [#tpu.dimension_semantics<parallel>, #tpu.dimension_semantics<parallel>], iteration_bounds = array<i64: 2, 1>, scalar_prefetch = 0 : i64, scratch_operands = 1 : i64, tpu.core_type = #tpu.core_type<tc>, window_params = [{transform_indices = @transform_0, window_bounds = array<i64: 1, 16, 16, 4>}, {pipeline_mode = #tpu.pipeline_mode<synchronous>, transform_indices = @transform_1, window_bounds = array<i64: 4, 4>}, {pipeline_mode = #tpu.pipeline_mode<synchronous>, transform_indices = @transform_2, window_bounds = array<i64: 1, 4>}, {pipeline_mode = #tpu.pipeline_mode<synchronous>, transform_indices = @transform_3, window_bounds = array<i64: 36, 4>}, {pipeline_mode = #tpu.pipeline_mode<synchronous>, transform_indices = @transform_4, window_bounds = array<i64: 1, 4>}, {pipeline_mode = #tpu.pipeline_mode<synchronous>, transform_indices = @transform_5, window_bounds = array<i64: 4, 16>}, {pipeline_mode = #tpu.pipeline_mode<synchronous>, transform_indices = @transform_6, window_bounds = array<i64: 1, 16>}, {pipeline_mode = #tpu.pipeline_mode<synchronous>, transform_indices = @transform_7, window_bounds = array<i64: 4, 16>}, {pipeline_mode = #tpu.pipeline_mode<synchronous>, transform_indices = @transform_8, window_bounds = array<i64: 1, 16>}, {transform_indices = @transform_9, window_bounds = array<i64: 1, 16, 16, 16>}]} {
    %c16_i32 = arith.constant 16 : i32
    %0 = arith.muli %arg1, %c16_i32 : i32
    %1 = tpu.assume_multiple %0, 16 : i32
    %cst = arith.constant 0.000000e+00 : f32
    %2 = vector.broadcast %cst : f32 to vector<18x1x4xf32>
    %c0 = arith.constant 0 : index
    %c0_0 = arith.constant 0 : index
    %c0_1 = arith.constant 0 : index
    %3 = vector.load %arg12[%c0, %c0_0, %c0_1] : memref<18x18x4xf32, #tpu.memory_space<vmem>>, vector<18x1x4xf32>
    tpu.vector_store %arg12[%c0, %c0_0, %c0_1], %2 {strides = array<i32>} : memref<18x18x4xf32, #tpu.memory_space<vmem>>, vector<18x1x4xf32>,
    %c0_2 = arith.constant 0 : index
    %c17 = arith.constant 17 : index
    %c0_3 = arith.constant 0 : index
    %4 = vector.load %arg12[%c0_2, %c17, %c0_3] : memref<18x18x4xf32, #tpu.memory_space<vmem>>, vector<18x1x4xf32>
    tpu.vector_store %arg12[%c0_2, %c17, %c0_3], %2 {strides = array<i32>} : memref<18x18x4xf32, #tpu.memory_space<vmem>>, vector<18x1x4xf32>,
    %c0_4 = arith.constant 0 : index
    %5 = arith.index_cast %1 : i32 to index
    %c0_5 = arith.constant 0 : index
    %c0_6 = arith.constant 0 : index
    %6 = vector.load %arg2[%c0_4, %5, %c0_5, %c0_6] : memref<1x16x16x4xf32, #tpu.memory_space<vmem>>, vector<1x16x16x4xf32>
    %7 = vector.shape_cast %6 : vector<1x16x16x4xf32> to vector<16x16x4xf32>
    %8 = vector.shape_cast %7 : vector<16x16x4xf32> to vector<256x4xf32>
    %c0_7 = arith.constant 0 : index
    %c0_8 = arith.constant 0 : index
    %9 = vector.load %arg3[%c0_7, %c0_8] : memref<4x4xf32, #tpu.memory_space<vmem>>, vector<4x4xf32>
    %cst_9 = arith.constant dense<0.000000e+00> : vector<256x4xf32>
    %10 = tpu.matmul %8, %9, %cst_9 {dimension_numbers = #tpu.dot_dimension_numbers<[1], [0], [0], [1], [0, 0, 1, 1], [], []>} : vector<256x4xf32>, vector<4x4xf32>, vector<256x4xf32> -> vector<256x4xf32>
    %c0_10 = arith.constant 0 : index
    %c0_11 = arith.constant 0 : index
    %11 = vector.load %arg4[%c0_10, %c0_11] : memref<1x4xf32, #tpu.memory_space<vmem>>, vector<1x4xf32>
    %12 = vector.broadcast %11 : vector<1x4xf32> to vector<256x4xf32>
    %13 = arith.addf %10, %12 : vector<256x4xf32>
    %cst_12 = arith.constant 0.000000e+00 : f32
    %14 = vector.broadcast %cst_12 : f32 to vector<256x4xf32>
    %15 = arith.maximumf %13, %14 : vector<256x4xf32>
    %16 = vector.shape_cast %15 : vector<256x4xf32> to vector<16x16x4xf32>
    %c1 = arith.constant 1 : index
    %c1_13 = arith.constant 1 : index
    %c0_14 = arith.constant 0 : index
    %17 = vector.load %arg12[%c1, %c1_13, %c0_14] : memref<18x18x4xf32, #tpu.memory_space<vmem>>, vector<16x16x4xf32>
    tpu.vector_store %arg12[%c1, %c1_13, %c0_14], %16 {strides = array<i32>} : memref<18x18x4xf32, #tpu.memory_space<vmem>>, vector<16x16x4xf32>,
    %c0_i32 = arith.constant 0 : i32
    %18 = arith.cmpi eq, %arg1, %c0_i32 : i32
    %19 = arith.extui %18 : i1 to i32
    %c0_i32_15 = arith.constant 0 : i32
    %20 = arith.cmpi ne, %19, %c0_i32_15 : i32
    scf.if %20 {
      %cst_54 = arith.constant 0.000000e+00 : f32
      %70 = vector.broadcast %cst_54 : f32 to vector<1x16x4xf32>
      %c0_55 = arith.constant 0 : index
      %c1_56 = arith.constant 1 : index
      %c0_57 = arith.constant 0 : index
      %71 = vector.load %arg12[%c0_55, %c1_56, %c0_57] : memref<18x18x4xf32, #tpu.memory_space<vmem>>, vector<1x16x4xf32>
      tpu.vector_store %arg12[%c0_55, %c1_56, %c0_57], %70 {strides = array<i32>} : memref<18x18x4xf32, #tpu.memory_space<vmem>>, vector<1x16x4xf32>,
    } else {
    }
    %c0_i32_16 = arith.constant 0 : i32
    %21 = arith.cmpi sgt, %arg1, %c0_i32_16 : i32
    %22 = arith.extui %21 : i1 to i32
    %c0_i32_17 = arith.constant 0 : i32
    %23 = arith.cmpi ne, %22, %c0_i32_17 : i32
    scf.if %23 {
      %c1_i32 = arith.constant 1 : i32
      %70 = arith.subi %1, %c1_i32 : i32
      %c0_54 = arith.constant 0 : index
      %71 = arith.index_cast %70 : i32 to index
      %c0_55 = arith.constant 0 : index
      %c0_56 = arith.constant 0 : index
      %72 = vector.load %arg2[%c0_54, %71, %c0_55, %c0_56] : memref<1x16x16x4xf32, #tpu.memory_space<vmem>>, vector<1x1x16x4xf32>
      %73 = vector.shape_cast %72 : vector<1x1x16x4xf32> to vector<1x16x4xf32>
      %74 = vector.shape_cast %73 : vector<1x16x4xf32> to vector<16x4xf32>
      %c0_57 = arith.constant 0 : index
      %c0_58 = arith.constant 0 : index
      %75 = vector.load %arg3[%c0_57, %c0_58] : memref<4x4xf32, #tpu.memory_space<vmem>>, vector<4x4xf32>
      %cst_59 = arith.constant dense<0.000000e+00> : vector<16x4xf32>
      %76 = tpu.matmul %74, %75, %cst_59 {dimension_numbers = #tpu.dot_dimension_numbers<[1], [0], [0], [1], [0, 0, 1, 1], [], []>} : vector<16x4xf32>, vector<4x4xf32>, vector<16x4xf32> -> vector<16x4xf32>
      %c0_60 = arith.constant 0 : index
      %c0_61 = arith.constant 0 : index
      %77 = vector.load %arg4[%c0_60, %c0_61] : memref<1x4xf32, #tpu.memory_space<vmem>>, vector<1x4xf32>
      %78 = vector.broadcast %77 : vector<1x4xf32> to vector<16x4xf32>
      %79 = arith.addf %76, %78 : vector<16x4xf32>
      %cst_62 = arith.constant 0.000000e+00 : f32
      %80 = vector.broadcast %cst_62 : f32 to vector<16x4xf32>
      %81 = arith.maximumf %79, %80 : vector<16x4xf32>
      %82 = vector.shape_cast %81 : vector<16x4xf32> to vector<1x16x4xf32>
      %c0_63 = arith.constant 0 : index
      %c1_64 = arith.constant 1 : index
      %c0_65 = arith.constant 0 : index
      %83 = vector.load %arg12[%c0_63, %c1_64, %c0_65] : memref<18x18x4xf32, #tpu.memory_space<vmem>>, vector<1x16x4xf32>
      tpu.vector_store %arg12[%c0_63, %c1_64, %c0_65], %82 {strides = array<i32>} : memref<18x18x4xf32, #tpu.memory_space<vmem>>, vector<1x16x4xf32>,
    } else {
    }
    %c0_i32_18 = arith.constant 0 : i32
    %24 = arith.cmpi eq, %arg1, %c0_i32_18 : i32
    %25 = arith.extui %24 : i1 to i32
    %c0_i32_19 = arith.constant 0 : i32
    %26 = arith.cmpi ne, %25, %c0_i32_19 : i32
    scf.if %26 {
      %cst_54 = arith.constant 0.000000e+00 : f32
      %70 = vector.broadcast %cst_54 : f32 to vector<1x16x4xf32>
      %c17_55 = arith.constant 17 : index
      %c1_56 = arith.constant 1 : index
      %c0_57 = arith.constant 0 : index
      %71 = vector.load %arg12[%c17_55, %c1_56, %c0_57] : memref<18x18x4xf32, #tpu.memory_space<vmem>>, vector<1x16x4xf32>
      tpu.vector_store %arg12[%c17_55, %c1_56, %c0_57], %70 {strides = array<i32>} : memref<18x18x4xf32, #tpu.memory_space<vmem>>, vector<1x16x4xf32>,
    } else {
    }
    %c0_i32_20 = arith.constant 0 : i32
    %27 = arith.cmpi slt, %arg1, %c0_i32_20 : i32
    %28 = arith.extui %27 : i1 to i32
    %c0_i32_21 = arith.constant 0 : i32
    %29 = arith.cmpi ne, %28, %c0_i32_21 : i32
    scf.if %29 {
      %c16_i32_54 = arith.constant 16 : i32
      %70 = arith.addi %1, %c16_i32_54 : i32
      %c0_55 = arith.constant 0 : index
      %71 = arith.index_cast %70 : i32 to index
      %c0_56 = arith.constant 0 : index
      %c0_57 = arith.constant 0 : index
      %72 = vector.load %arg2[%c0_55, %71, %c0_56, %c0_57] : memref<1x16x16x4xf32, #tpu.memory_space<vmem>>, vector<1x1x16x4xf32>
      %73 = vector.shape_cast %72 : vector<1x1x16x4xf32> to vector<1x16x4xf32>
      %74 = vector.shape_cast %73 : vector<1x16x4xf32> to vector<16x4xf32>
      %c0_58 = arith.constant 0 : index
      %c0_59 = arith.constant 0 : index
      %75 = vector.load %arg3[%c0_58, %c0_59] : memref<4x4xf32, #tpu.memory_space<vmem>>, vector<4x4xf32>
      %cst_60 = arith.constant dense<0.000000e+00> : vector<16x4xf32>
      %76 = tpu.matmul %74, %75, %cst_60 {dimension_numbers = #tpu.dot_dimension_numbers<[1], [0], [0], [1], [0, 0, 1, 1], [], []>} : vector<16x4xf32>, vector<4x4xf32>, vector<16x4xf32> -> vector<16x4xf32>
      %c0_61 = arith.constant 0 : index
      %c0_62 = arith.constant 0 : index
      %77 = vector.load %arg4[%c0_61, %c0_62] : memref<1x4xf32, #tpu.memory_space<vmem>>, vector<1x4xf32>
      %78 = vector.broadcast %77 : vector<1x4xf32> to vector<16x4xf32>
      %79 = arith.addf %76, %78 : vector<16x4xf32>
      %cst_63 = arith.constant 0.000000e+00 : f32
      %80 = vector.broadcast %cst_63 : f32 to vector<16x4xf32>
      %81 = arith.maximumf %79, %80 : vector<16x4xf32>
      %82 = vector.shape_cast %81 : vector<16x4xf32> to vector<1x16x4xf32>
      %c17_64 = arith.constant 17 : index
      %c1_65 = arith.constant 1 : index
      %c0_66 = arith.constant 0 : index
      %83 = vector.load %arg12[%c17_64, %c1_65, %c0_66] : memref<18x18x4xf32, #tpu.memory_space<vmem>>, vector<1x16x4xf32>
      tpu.vector_store %arg12[%c17_64, %c1_65, %c0_66], %82 {strides = array<i32>} : memref<18x18x4xf32, #tpu.memory_space<vmem>>, vector<1x16x4xf32>,
    } else {
    }
    %c0_22 = arith.constant 0 : index
    %c0_23 = arith.constant 0 : index
    %c0_24 = arith.constant 0 : index
    %30 = vector.load %arg12[%c0_22, %c0_23, %c0_24] : memref<18x18x4xf32, #tpu.memory_space<vmem>>, vector<16x18x4xf32>
    %31 = vector.extract_strided_slice %30 {offsets = [0, 0, 0], sizes = [16, 16, 4], strides = [1, 1, 1]} : vector<16x18x4xf32> to vector<16x16x4xf32>
    %32 = vector.extract_strided_slice %30 {offsets = [0, 1, 0], sizes = [16, 16, 4], strides = [1, 1, 1]} : vector<16x18x4xf32> to vector<16x16x4xf32>
    %33 = vector.extract_strided_slice %30 {offsets = [0, 2, 0], sizes = [16, 16, 4], strides = [1, 1, 1]} : vector<16x18x4xf32> to vector<16x16x4xf32>
    %c1_25 = arith.constant 1 : index
    %c0_26 = arith.constant 0 : index
    %c0_27 = arith.constant 0 : index
    %34 = vector.load %arg12[%c1_25, %c0_26, %c0_27] : memref<18x18x4xf32, #tpu.memory_space<vmem>>, vector<16x18x4xf32>
    %35 = vector.extract_strided_slice %34 {offsets = [0, 0, 0], sizes = [16, 16, 4], strides = [1, 1, 1]} : vector<16x18x4xf32> to vector<16x16x4xf32>
    %36 = vector.extract_strided_slice %34 {offsets = [0, 1, 0], sizes = [16, 16, 4], strides = [1, 1, 1]} : vector<16x18x4xf32> to vector<16x16x4xf32>
    %37 = vector.extract_strided_slice %34 {offsets = [0, 2, 0], sizes = [16, 16, 4], strides = [1, 1, 1]} : vector<16x18x4xf32> to vector<16x16x4xf32>
    %c2 = arith.constant 2 : index
    %c0_28 = arith.constant 0 : index
    %c0_29 = arith.constant 0 : index
    %38 = vector.load %arg12[%c2, %c0_28, %c0_29] : memref<18x18x4xf32, #tpu.memory_space<vmem>>, vector<16x18x4xf32>
    %39 = vector.extract_strided_slice %38 {offsets = [0, 0, 0], sizes = [16, 16, 4], strides = [1, 1, 1]} : vector<16x18x4xf32> to vector<16x16x4xf32>
    %40 = vector.extract_strided_slice %38 {offsets = [0, 1, 0], sizes = [16, 16, 4], strides = [1, 1, 1]} : vector<16x18x4xf32> to vector<16x16x4xf32>
    %41 = vector.extract_strided_slice %38 {offsets = [0, 2, 0], sizes = [16, 16, 4], strides = [1, 1, 1]} : vector<16x18x4xf32> to vector<16x16x4xf32>
    %42 = tpu.concatenate %31, %32, %33, %35, %36, %37, %39, %40, %41 in 2 : vector<16x16x4xf32>, vector<16x16x4xf32>, vector<16x16x4xf32>, vector<16x16x4xf32>, vector<16x16x4xf32>, vector<16x16x4xf32>, vector<16x16x4xf32>, vector<16x16x4xf32>, vector<16x16x4xf32> -> vector<16x16x36xf32>
    %43 = vector.shape_cast %42 : vector<16x16x36xf32> to vector<256x36xf32>
    %c0_30 = arith.constant 0 : index
    %c0_31 = arith.constant 0 : index
    %44 = vector.load %arg5[%c0_30, %c0_31] : memref<36x4xf32, #tpu.memory_space<vmem>>, vector<36x4xf32>
    %cst_32 = arith.constant dense<0.000000e+00> : vector<256x4xf32>
    %45 = tpu.matmul %43, %44, %cst_32 {dimension_numbers = #tpu.dot_dimension_numbers<[1], [0], [0], [1], [0, 0, 1, 1], [], []>} : vector<256x36xf32>, vector<36x4xf32>, vector<256x4xf32> -> vector<256x4xf32>
    %c0_33 = arith.constant 0 : index
    %c0_34 = arith.constant 0 : index
    %46 = vector.load %arg6[%c0_33, %c0_34] : memref<1x4xf32, #tpu.memory_space<vmem>>, vector<1x4xf32>
    %47 = vector.broadcast %46 : vector<1x4xf32> to vector<256x4xf32>
    %48 = arith.addf %45, %47 : vector<256x4xf32>
    %cst_35 = arith.constant 0.000000e+00 : f32
    %49 = vector.broadcast %cst_35 : f32 to vector<256x4xf32>
    %50 = arith.maximumf %48, %49 : vector<256x4xf32>
    %c0_36 = arith.constant 0 : index
    %c0_37 = arith.constant 0 : index
    %51 = vector.load %arg7[%c0_36, %c0_37] : memref<4x16xf32, #tpu.memory_space<vmem>>, vector<4x16xf32>
    %cst_38 = arith.constant dense<0.000000e+00> : vector<256x16xf32>
    %52 = tpu.matmul %50, %51, %cst_38 {dimension_numbers = #tpu.dot_dimension_numbers<[1], [0], [0], [1], [0, 0, 1, 1], [], []>} : vector<256x4xf32>, vector<4x16xf32>, vector<256x16xf32> -> vector<256x16xf32>
    %c0_39 = arith.constant 0 : index
    %c0_40 = arith.constant 0 : index
    %53 = vector.load %arg8[%c0_39, %c0_40] : memref<1x16xf32, #tpu.memory_space<vmem>>, vector<1x16xf32>
    %54 = vector.broadcast %53 : vector<1x16xf32> to vector<256x16xf32>
    %55 = arith.addf %52, %54 : vector<256x16xf32>
    %c0_41 = arith.constant 0 : index
    %56 = arith.index_cast %1 : i32 to index
    %c0_42 = arith.constant 0 : index
    %c0_43 = arith.constant 0 : index
    %57 = vector.load %arg2[%c0_41, %56, %c0_42, %c0_43] : memref<1x16x16x4xf32, #tpu.memory_space<vmem>>, vector<1x16x16x4xf32>
    %58 = vector.shape_cast %57 : vector<1x16x16x4xf32> to vector<16x16x4xf32>
    %59 = vector.shape_cast %58 : vector<16x16x4xf32> to vector<256x4xf32>
    %c0_44 = arith.constant 0 : index
    %c0_45 = arith.constant 0 : index
    %60 = vector.load %arg9[%c0_44, %c0_45] : memref<4x16xf32, #tpu.memory_space<vmem>>, vector<4x16xf32>
    %cst_46 = arith.constant dense<0.000000e+00> : vector<256x16xf32>
    %61 = tpu.matmul %59, %60, %cst_46 {dimension_numbers = #tpu.dot_dimension_numbers<[1], [0], [0], [1], [0, 0, 1, 1], [], []>} : vector<256x4xf32>, vector<4x16xf32>, vector<256x16xf32> -> vector<256x16xf32>
    %c0_47 = arith.constant 0 : index
    %c0_48 = arith.constant 0 : index
    %62 = vector.load %arg10[%c0_47, %c0_48] : memref<1x16xf32, #tpu.memory_space<vmem>>, vector<1x16xf32>
    %63 = vector.broadcast %62 : vector<1x16xf32> to vector<256x16xf32>
    %64 = arith.addf %61, %63 : vector<256x16xf32>
    %65 = arith.addf %55, %64 : vector<256x16xf32>
    %cst_49 = arith.constant 0.000000e+00 : f32
    %66 = vector.broadcast %cst_49 : f32 to vector<256x16xf32>
    %67 = arith.maximumf %65, %66 : vector<256x16xf32>
    %68 = vector.shape_cast %67 : vector<256x16xf32> to vector<1x16x16x16xf32>
    %c0_50 = arith.constant 0 : index
    %c0_51 = arith.constant 0 : index
    %c0_52 = arith.constant 0 : index
    %c0_53 = arith.constant 0 : index
    %69 = vector.load %arg11[%c0_50, %c0_51, %c0_52, %c0_53] : memref<1x16x16x16xf32, #tpu.memory_space<vmem>>, vector<1x16x16x16xf32>
    tpu.vector_store %arg11[%c0_50, %c0_51, %c0_52, %c0_53], %68 {strides = array<i32>} : memref<1x16x16x16xf32, #tpu.memory_space<vmem>>, vector<1x16x16x16xf32>,
    return
  }
  func.func @transform_0(%arg0: i32, %arg1: i32) -> (i32, i32, i32, i32) {
    %c0_i32 = arith.constant 0 : i32
    %c0_i32_0 = arith.constant 0 : i32
    %c0_i32_1 = arith.constant 0 : i32
    %c0_i32_2 = arith.constant 0 : i32
    return %arg0, %c0_i32, %c0_i32_0, %c0_i32_1 : i32, i32, i32, i32
  }
  func.func @transform_1(%arg0: i32, %arg1: i32) -> (i32, i32) {
    %c0_i32 = arith.constant 0 : i32
    %c0_i32_0 = arith.constant 0 : i32
    %c0_i32_1 = arith.constant 0 : i32
    return %c0_i32, %c0_i32_0 : i32, i32
  }
  func.func @transform_2(%arg0: i32, %arg1: i32) -> (i32, i32) {
    %c0_i32 = arith.constant 0 : i32
    %c0_i32_0 = arith.constant 0 : i32
    %c0_i32_1 = arith.constant 0 : i32
    return %c0_i32, %c0_i32_0 : i32, i32
  }
  func.func @transform_3(%arg0: i32, %arg1: i32) -> (i32, i32) {
    %c0_i32 = arith.constant 0 : i32
    %c0_i32_0 = arith.constant 0 : i32
    %c0_i32_1 = arith.constant 0 : i32
    return %c0_i32, %c0_i32_0 : i32, i32
  }
  func.func @transform_4(%arg0: i32, %arg1: i32) -> (i32, i32) {
    %c0_i32 = arith.constant 0 : i32
    %c0_i32_0 = arith.constant 0 : i32
    %c0_i32_1 = arith.constant 0 : i32
    return %c0_i32, %c0_i32_0 : i32, i32
  }
  func.func @transform_5(%arg0: i32, %arg1: i32) -> (i32, i32) {
    %c0_i32 = arith.constant 0 : i32
    %c0_i32_0 = arith.constant 0 : i32
    %c0_i32_1 = arith.constant 0 : i32
    return %c0_i32, %c0_i32_0 : i32, i32
  }
  func.func @transform_6(%arg0: i32, %arg1: i32) -> (i32, i32) {
    %c0_i32 = arith.constant 0 : i32
    %c0_i32_0 = arith.constant 0 : i32
    %c0_i32_1 = arith.constant 0 : i32
    return %c0_i32, %c0_i32_0 : i32, i32
  }
  func.func @transform_7(%arg0: i32, %arg1: i32) -> (i32, i32) {
    %c0_i32 = arith.constant 0 : i32
    %c0_i32_0 = arith.constant 0 : i32
    %c0_i32_1 = arith.constant 0 : i32
    return %c0_i32, %c0_i32_0 : i32, i32
  }
  func.func @transform_8(%arg0: i32, %arg1: i32) -> (i32, i32) {
    %c0_i32 = arith.constant 0 : i32
    %c0_i32_0 = arith.constant 0 : i32
    %c0_i32_1 = arith.constant 0 : i32
    return %c0_i32, %c0_i32_0 : i32, i32
  }
  func.func @transform_9(%arg0: i32, %arg1: i32) -> (i32, i32, i32, i32) {
    %c0_i32 = arith.constant 0 : i32
    %c0_i32_0 = arith.constant 0 : i32
    %c0_i32_1 = arith.constant 0 : i32
    return %arg0, %arg1, %c0_i32, %c0_i32_0 : i32, i32, i32, i32
  }
}

</mosaic_0001>

<llo_original>
// kernel: tpu_custom_call.1
$region0: #{tpu_custom_call.1}
  #allocation0 [shape = 'u32[]', space=smem, size = 0x4, offset = 0x4, fixed_abs, tag = 'smem constant byte address 0x4 - core index']
  #allocation1 [shape = 'u32[72,128]{1,0:T(1,128)}', space=vmem, size = 0x9000, scoped, tag = 'internal scratch']
  #allocation2 [shape = 'f32[18,18,4]{2,1,0:T(8,128)}', space=vmem, size = 0x36000, scoped, tag = 'scratch operand']
  %s0 = inlined_call_operand.vmem [shape: f32[2,16,16,4], index: 0, kind: input, shape index: {}]
  %s1 = inlined_call_operand.vmem [shape: f32[4,4], index: 1, kind: input, shape index: {}]
  %s2 = inlined_call_operand.vmem [shape: f32[1,4], index: 2, kind: input, shape index: {}]
  %s3 = inlined_call_operand.vmem [shape: f32[36,4], index: 3, kind: input, shape index: {}]
  %s4 = inlined_call_operand.vmem [shape: f32[1,4], index: 4, kind: input, shape index: {}]
  %s5 = inlined_call_operand.vmem [shape: f32[4,16], index: 5, kind: input, shape index: {}]
  %s6 = inlined_call_operand.vmem [shape: f32[1,16], index: 6, kind: input, shape index: {}]
  %s7 = inlined_call_operand.vmem [shape: f32[4,16], index: 7, kind: input, shape index: {}]
  %s8 = inlined_call_operand.vmem [shape: f32[1,16], index: 8, kind: input, shape index: {}]
  %s9 = inlined_call_operand.hbm [shape: f32[2,16,16,16], index: 9, kind: output, shape index: {}]
  %s10 = sld [smem:[#allocation0]]
  $region85: #{tpu_custom_call.1} parent=0
    _
  %s12 = ssub.s32 1, %s10
  %s13 = scalar_select 0, %s12, %s10
  $region1: #{tpu_custom_call.1} parent=0
    #allocation3 [shape = 'u8[262144]{0}', space=vmem, size = 0x40000, scoped, tag = 'output window, operand 0']
    #allocation4 [shape = 's32[2]{0}', space=sflag, size = 0x8, scoped, tag = 'scoped memory for tpu_custom_call.1']
    %14 = vsyncpa [#allocation4], 0
    %s15 = scalar_lea.sflag [#allocation4], 1
    %16 = vsyncpa %s15, 0
    loop: start=0, step=1, limit=4
    $region2: #{tpu_custom_call.1} parent=1 // loop_pre_header
      _
    $region3: #{tpu_custom_call.1} parent=1 // loop_header
      %s18 = sphi 0, %s22
      %p19 = scmp.ge.s32.totalorder %s18, 4
      %s25 = sphi 0, %s37
      %s26 = sphi 0, %s33
      %s27 = sphi 0, %s25
      %s28 = sphi 0, %s26
      %s29 = sphi 0, %s27
      %s30 = sphi 0, %s28
      %s40 = sphi 0, %s42
      %s43 = sphi 0, %s40
      %s44 = sphi 0, %s43
      %s60 = sphi 0, %s44
      %s64 = sphi 0, %s64
      %s66 = sphi 0, %s64
      %s67 = sphi 0, %s66
      %s81 = sphi 0, %s67
      %s85 = sphi 0, %s85
      %s87 = sphi 0, %s85
      %s88 = sphi 0, %s87
      %s102 = sphi 0, %s88
      %s106 = sphi 0, %s106
      %s108 = sphi 0, %s106
      %s109 = sphi 0, %s108
      %s123 = sphi 0, %s109
      %s127 = sphi 0, %s127
      %s129 = sphi 0, %s127
      %s130 = sphi 0, %s129
      %s144 = sphi 0, %s130
      %s148 = sphi 0, %s148
      %s150 = sphi 0, %s148
      %s151 = sphi 0, %s150
      %s165 = sphi 0, %s151
      %s169 = sphi 0, %s169
      %s171 = sphi 0, %s169
      %s172 = sphi 0, %s171
      %s186 = sphi 0, %s172
      %s190 = sphi 0, %s190
      %s192 = sphi 0, %s190
      %s193 = sphi 0, %s192
      %s207 = sphi 0, %s193
      %s211 = sphi 0, %s211
      %s213 = sphi 0, %s211
      %s214 = sphi 0, %s213
      %s228 = sphi 0, %s214
      %s236 = sphi 0, %s238
      %s239 = sphi 0, %s236
      %s240 = sphi 0, %s239
      %s256 = sphi 0, %s240
    $region4: #{tpu_custom_call.1} parent=1 // loop_header_branch
      %21 = sbr.rel (%p19) target = $region8
    $region5: #{tpu_custom_call.1} parent=1 // loop_body
      %s23 = ssub.s32 %s18, 1
      %s24 = ssub.s32 %s18, 2
      %s31 = sadd.s32 1, %s26
      %p32 = scmp.ge.s32.totalorder %s31, 1
      %s33 = scalar_select %p32, 0, %s31
      %s34 = sadd.s32 1, %s25
      %s35 = scalar_select %p32, %s34, %s25
      %p36 = scmp.ge.s32.totalorder %s35, 2
      %s37 = scalar_select %p36, 0, %s35
      %s38 = ssub.s32 %s25, %s37
      %p39 = scmp.eq.s32.totalorder %s38, 0
      %s41 = sadd.s32 %s40, 1
      %s42 = scalar_select %p39, %s40, %s41
      %p45 = pneg %p39
      %p46 = scmp.eq.s32.totalorder %s18, 1
      %p47 = por %p45, %p46
      %p48 = scmp.ne.s32.totalorder %s40, %s43
      %p49 = scmp.eq.s32.totalorder %s18, 0
      %p50 = por %p48, %p49
      %p51 = scmp.ne.s32.totalorder %s40, %s43
      %p52 = scmp.eq.s32.totalorder %s23, 1
      %p53 = por %p51, %p52
      %p54 = scmp.ne.s32.totalorder %s43, %s44
      %p55 = scmp.eq.s32.totalorder %s23, 0
      %p56 = por %p54, %p55
      %p57 = scmp.ne.s32.totalorder %s43, %s44
      %p58 = scmp.eq.s32.totalorder %s24, 1
      %p59 = por %p57, %p58
      %p61 = scmp.ne.s32.totalorder %s44, %s60
      %p62 = scmp.eq.s32.totalorder %s24, 0
      %p63 = por %p61, %p62
      %s65 = sadd.s32 %s64, 1
      %p68 = scmp.eq.s32.totalorder %s18, 1
      %p69 = scmp.ne.s32.totalorder %s64, %s66
      %p70 = scmp.eq.s32.totalorder %s18, 0
      %p71 = por %p69, %p70
      %p72 = scmp.ne.s32.totalorder %s64, %s66
      %p73 = scmp.eq.s32.totalorder %s23, 1
      %p74 = por %p72, %p73
      %p75 = scmp.ne.s32.totalorder %s66, %s67
      %p76 = scmp.eq.s32.totalorder %s23, 0
      %p77 = por %p75, %p76
      %p78 = scmp.ne.s32.totalorder %s66, %s67
      %p79 = scmp.eq.s32.totalorder %s24, 1
      %p80 = por %p78, %p79
      %p82 = scmp.ne.s32.totalorder %s67, %s81
      %p83 = scmp.eq.s32.totalorder %s24, 0
      %p84 = por %p82, %p83
      %s86 = sadd.s32 %s85, 1
      %p89 = scmp.eq.s32.totalorder %s18, 1
      %p90 = scmp.ne.s32.totalorder %s85, %s87
      %p91 = scmp.eq.s32.totalorder %s18, 0
      %p92 = por %p90, %p91
      %p93 = scmp.ne.s32.totalorder %s85, %s87
      %p94 = scmp.eq.s32.totalorder %s23, 1
      %p95 = por %p93, %p94
      %p96 = scmp.ne.s32.totalorder %s87, %s88
      %p97 = scmp.eq.s32.totalorder %s23, 0
      %p98 = por %p96, %p97
      %p99 = scmp.ne.s32.totalorder %s87, %s88
      %p100 = scmp.eq.s32.totalorder %s24, 1
      %p101 = por %p99, %p100
      %p103 = scmp.ne.s32.totalorder %s88, %s102
      %p104 = scmp.eq.s32.totalorder %s24, 0
      %p105 = por %p103, %p104
      %s107 = sadd.s32 %s106, 1
      %p110 = scmp.eq.s32.totalorder %s18, 1
      %p111 = scmp.ne.s32.totalorder %s106, %s108
      %p112 = scmp.eq.s32.totalorder %s18, 0
      %p113 = por %p111, %p112
      %p114 = scmp.ne.s32.totalorder %s106, %s108
      %p115 = scmp.eq.s32.totalorder %s23, 1
      %p116 = por %p114, %p115
      %p117 = scmp.ne.s32.totalorder %s108, %s109
      %p118 = scmp.eq.s32.totalorder %s23, 0
      %p119 = por %p117, %p118
      %p120 = scmp.ne.s32.totalorder %s108, %s109
      %p121 = scmp.eq.s32.totalorder %s24, 1
      %p122 = por %p120, %p121
      %p124 = scmp.ne.s32.totalorder %s109, %s123
      %p125 = scmp.eq.s32.totalorder %s24, 0
      %p126 = por %p124, %p125
      %s128 = sadd.s32 %s127, 1
      %p131 = scmp.eq.s32.totalorder %s18, 1
      %p132 = scmp.ne.s32.totalorder %s127, %s129
      %p133 = scmp.eq.s32.totalorder %s18, 0
      %p134 = por %p132, %p133
      %p135 = scmp.ne.s32.totalorder %s127, %s129
      %p136 = scmp.eq.s32.totalorder %s23, 1
      %p137 = por %p135, %p136
      %p138 = scmp.ne.s32.totalorder %s129, %s130
      %p139 = scmp.eq.s32.totalorder %s23, 0
      %p140 = por %p138, %p139
      %p141 = scmp.ne.s32.totalorder %s129, %s130
      %p142 = scmp.eq.s32.totalorder %s24, 1
      %p143 = por %p141, %p142
      %p145 = scmp.ne.s32.totalorder %s130, %s144
      %p146 = scmp.eq.s32.totalorder %s24, 0
      %p147 = por %p145, %p146
      %s149 = sadd.s32 %s148, 1
      %p152 = scmp.eq.s32.totalorder %s18, 1
      %p153 = scmp.ne.s32.totalorder %s148, %s150
      %p154 = scmp.eq.s32.totalorder %s18, 0
      %p155 = por %p153, %p154
      %p156 = scmp.ne.s32.totalorder %s148, %s150
      %p157 = scmp.eq.s32.totalorder %s23, 1
      %p158 = por %p156, %p157
      %p159 = scmp.ne.s32.totalorder %s150, %s151
      %p160 = scmp.eq.s32.totalorder %s23, 0
      %p161 = por %p159, %p160
      %p162 = scmp.ne.s32.totalorder %s150, %s151
      %p163 = scmp.eq.s32.totalorder %s24, 1
      %p164 = por %p162, %p163
      %p166 = scmp.ne.s32.totalorder %s151, %s165
      %p167 = scmp.eq.s32.totalorder %s24, 0
      %p168 = por %p166, %p167
      %s170 = sadd.s32 %s169, 1
      %p173 = scmp.eq.s32.totalorder %s18, 1
      %p174 = scmp.ne.s32.totalorder %s169, %s171
      %p175 = scmp.eq.s32.totalorder %s18, 0
      %p176 = por %p174, %p175
      %p177 = scmp.ne.s32.totalorder %s169, %s171
      %p178 = scmp.eq.s32.totalorder %s23, 1
      %p179 = por %p177, %p178
      %p180 = scmp.ne.s32.totalorder %s171, %s172
      %p181 = scmp.eq.s32.totalorder %s23, 0
      %p182 = por %p180, %p181
      %p183 = scmp.ne.s32.totalorder %s171, %s172
      %p184 = scmp.eq.s32.totalorder %s24, 1
      %p185 = por %p183, %p184
      %p187 = scmp.ne.s32.totalorder %s172, %s186
      %p188 = scmp.eq.s32.totalorder %s24, 0
      %p189 = por %p187, %p188
      %s191 = sadd.s32 %s190, 1
      %p194 = scmp.eq.s32.totalorder %s18, 1
      %p195 = scmp.ne.s32.totalorder %s190, %s192
      %p196 = scmp.eq.s32.totalorder %s18, 0
      %p197 = por %p195, %p196
      %p198 = scmp.ne.s32.totalorder %s190, %s192
      %p199 = scmp.eq.s32.totalorder %s23, 1
      %p200 = por %p198, %p199
      %p201 = scmp.ne.s32.totalorder %s192, %s193
      %p202 = scmp.eq.s32.totalorder %s23, 0
      %p203 = por %p201, %p202
      %p204 = scmp.ne.s32.totalorder %s192, %s193
      %p205 = scmp.eq.s32.totalorder %s24, 1
      %p206 = por %p204, %p205
      %p208 = scmp.ne.s32.totalorder %s193, %s207
      %p209 = scmp.eq.s32.totalorder %s24, 0
      %p210 = por %p208, %p209
      %s212 = sadd.s32 %s211, 1
      %p215 = scmp.eq.s32.totalorder %s18, 1
      %p216 = scmp.ne.s32.totalorder %s211, %s213
      %p217 = scmp.eq.s32.totalorder %s18, 0
      %p218 = por %p216, %p217
      %p219 = scmp.ne.s32.totalorder %s211, %s213
      %p220 = scmp.eq.s32.totalorder %s23, 1
      %p221 = por %p219, %p220
      %p222 = scmp.ne.s32.totalorder %s213, %s214
      %p223 = scmp.eq.s32.totalorder %s23, 0
      %p224 = por %p222, %p223
      %p225 = scmp.ne.s32.totalorder %s213, %s214
      %p226 = scmp.eq.s32.totalorder %s24, 1
      %p227 = por %p225, %p226
      %p229 = scmp.ne.s32.totalorder %s214, %s228
      %p230 = scmp.eq.s32.totalorder %s24, 0
      %p231 = por %p229, %p230
      %s232 = ssub.s32 %s25, %s37
      %s233 = ssub.s32 %s26, %s33
      %s234 = sor.u32 %s232, %s233
      %p235 = scmp.eq.s32.totalorder %s234, 0
      %s237 = sadd.s32 %s236, 1
      %s238 = scalar_select %p235, %s236, %s237
      %p241 = pneg %p235
      %p242 = scmp.eq.s32.totalorder %s18, 1
      %p243 = por %p241, %p242
      %p244 = scmp.ne.s32.totalorder %s236, %s239
      %p245 = scmp.eq.s32.totalorder %s18, 0
      %p246 = por %p244, %p245
      %p247 = scmp.ne.s32.totalorder %s236, %s239
      %p248 = scmp.eq.s32.totalorder %s23, 1
      %p249 = por %p247, %p248
      %p250 = scmp.ne.s32.totalorder %s239, %s240
      %p251 = scmp.eq.s32.totalorder %s23, 0
      %p252 = por %p250, %p251
      %p253 = scmp.ne.s32.totalorder %s239, %s240
      %p254 = scmp.eq.s32.totalorder %s24, 1
      %p255 = por %p253, %p254
      %p257 = scmp.ne.s32.totalorder %s240, %s256
      %p258 = scmp.eq.s32.totalorder %s24, 0
      %p259 = por %p257, %p258
      %p260 = scmp.le.s32.totalorder 1, %s18
      %p261 = scmp.lt.s32.totalorder %s18, 3
      %p262 = pnand %p260, %p261
      %p263 = pneg %p262
      // Predicated region
      $region9: #{tpu_custom_call.1} parent=5 // pred_check
        _
      $region10: #{tpu_custom_call.1} parent=5 // pred_check_branch
        %265 = sbr.rel (%p262) target = $region12
      $region11: #{tpu_custom_call.1} parent=5 // pred_region
        %s266 = ssub.s32 %s18, 1
        // Predicated region
        $region13: #{tpu_custom_call.1} parent=11 // pred_check
          %p267 = pneg %p77
        $region14: #{tpu_custom_call.1} parent=11 // pred_check_branch
          %269 = sbr.rel (%p267) target = $region16
        $region15: #{tpu_custom_call.1} parent=11 // pred_region
          _
        $region16: #{tpu_custom_call.1} parent=11 // pred_fallthru
          _
        // Predicated region
        $region17: #{tpu_custom_call.1} parent=11 // pred_check
          %p270 = pneg %p98
        $region18: #{tpu_custom_call.1} parent=11 // pred_check_branch
          %272 = sbr.rel (%p270) target = $region20
        $region19: #{tpu_custom_call.1} parent=11 // pred_region
          _
        $region20: #{tpu_custom_call.1} parent=11 // pred_fallthru
          _
        // Predicated region
        $region21: #{tpu_custom_call.1} parent=11 // pred_check
          %p273 = pneg %p119
        $region22: #{tpu_custom_call.1} parent=11 // pred_check_branch
          %275 = sbr.rel (%p273) target = $region24
        $region23: #{tpu_custom_call.1} parent=11 // pred_region
          _
        $region24: #{tpu_custom_call.1} parent=11 // pred_fallthru
          _
        // Predicated region
        $region25: #{tpu_custom_call.1} parent=11 // pred_check
          %p276 = pneg %p140
        $region26: #{tpu_custom_call.1} parent=11 // pred_check_branch
          %278 = sbr.rel (%p276) target = $region28
        $region27: #{tpu_custom_call.1} parent=11 // pred_region
          _
        $region28: #{tpu_custom_call.1} parent=11 // pred_fallthru
          _
        // Predicated region
        $region29: #{tpu_custom_call.1} parent=11 // pred_check
          %p279 = pneg %p161
        $region30: #{tpu_custom_call.1} parent=11 // pred_check_branch
          %281 = sbr.rel (%p279) target = $region32
        $region31: #{tpu_custom_call.1} parent=11 // pred_region
          _
        $region32: #{tpu_custom_call.1} parent=11 // pred_fallthru
          _
        // Predicated region
        $region33: #{tpu_custom_call.1} parent=11 // pred_check
          %p282 = pneg %p182
        $region34: #{tpu_custom_call.1} parent=11 // pred_check_branch
          %284 = sbr.rel (%p282) target = $region36
        $region35: #{tpu_custom_call.1} parent=11 // pred_region
          _
        $region36: #{tpu_custom_call.1} parent=11 // pred_fallthru
          _
        // Predicated region
        $region37: #{tpu_custom_call.1} parent=11 // pred_check
          %p285 = pneg %p203
        $region38: #{tpu_custom_call.1} parent=11 // pred_check_branch
          %287 = sbr.rel (%p285) target = $region40
        $region39: #{tpu_custom_call.1} parent=11 // pred_region
          _
        $region40: #{tpu_custom_call.1} parent=11 // pred_fallthru
          _
        // Predicated region
        $region41: #{tpu_custom_call.1} parent=11 // pred_check
          %p288 = pneg %p224
        $region42: #{tpu_custom_call.1} parent=11 // pred_check_branch
          %290 = sbr.rel (%p288) target = $region44
        $region43: #{tpu_custom_call.1} parent=11 // pred_region
          _
        $region44: #{tpu_custom_call.1} parent=11 // pred_fallthru
          _
      $region12: #{tpu_custom_call.1} parent=5 // pred_fallthru
        _
      %p291 = scmp.lt.s32.totalorder %s18, 2
      // Predicated region
      $region45: #{tpu_custom_call.1} parent=5 // pred_check
        %p292 = pneg %p291
      $region46: #{tpu_custom_call.1} parent=5 // pred_check_branch
        %294 = sbr.rel (%p292) target = $region48
      $region47: #{tpu_custom_call.1} parent=5 // pred_region
        // Predicated region
        $region49: #{tpu_custom_call.1} parent=47 // pred_check
          %p295 = pneg %p50
        $region50: #{tpu_custom_call.1} parent=47 // pred_check_branch
          %297 = sbr.rel (%p295) target = $region52
        $region51: #{tpu_custom_call.1} parent=47 // pred_region
          %p298 = scmp.lt.s32.totalorder %s25, 1
          %s299 = scalar_select %p298, %s25, 1
          %s300 = smul.addr %s299, 32
          %s301 = smul.addr %s300, 8
          %s302 = scalar_lea.vmem %s0, %s301
        $region52: #{tpu_custom_call.1} parent=47 // pred_fallthru
          _
      $region48: #{tpu_custom_call.1} parent=5 // pred_fallthru
        _
      %p303 = scmp.le.s32.totalorder 1, %s18
      %p304 = scmp.lt.s32.totalorder %s18, 3
      %p305 = pnand %p303, %p304
      %p306 = pneg %p305
      // Predicated region
      $region53: #{tpu_custom_call.1} parent=5 // pred_check
        _
      $region54: #{tpu_custom_call.1} parent=5 // pred_check_branch
        %308 = sbr.rel (%p305) target = $region56
      $region55: #{tpu_custom_call.1} parent=5 // pred_region
        %s309 = ssub.s32 %s18, 1
        %p310 = scmp.lt.s32.totalorder %s27, 1
        %s311 = scalar_select %p310, %s27, 1
        %s312 = smul.addr %s311, 32
        %s313 = smul.addr %s312, 8
        %s314 = scalar_lea.vmem %s0, %s313
        %p315 = pneg %p56
        %p316 = pneg %p53
        %p317 = pneg %p77
        %p318 = pneg %p74
        %p319 = pneg %p98
        %p320 = pneg %p95
        %p321 = pneg %p119
        %p322 = pneg %p116
        %p323 = pneg %p140
        %p324 = pneg %p137
        %p325 = pneg %p161
        %p326 = pneg %p158
        %p327 = pneg %p182
        %p328 = pneg %p179
        %p329 = pneg %p203
        %p330 = pneg %p200
        %p331 = pneg %p224
        %p332 = pneg %p221
        %p333 = pneg %p252
        %p334 = pneg %p249
        %s335 = sand.u32 %s239, 1
        %s336 = scalar_lea.sflag [#allocation4], %s335
        %s337 = sand.u32 %s239, 1
        %s338 = smul.addr %s337, 256
        %s339 = scalar_lea.vmem [#allocation3], %s338
        %p340 = scmp.lt.s32.totalorder %s27, 1
        %s341 = scalar_select %p340, %s27, 1
        %s342 = smul.addr %s341, 32
        %s343 = smul.addr %s342, 8
        %s344 = scalar_lea.vmem %s0, %s343
        %s345 = smul.u32 16, %s28
        %s346 = smul.u32 %s28, 16
        %vm347 = vcmask 24576
        %348 = vst.msk [vmem:[#allocation2] sm:$0x1] %vm347, 0.0
        %349 = vst.msk [vmem:[#allocation2 + $0x18] sm:$0x1] %vm347, 0.0
        %350 = vst.msk [vmem:[#allocation2 + $0x30] sm:$0x1] %vm347, 0.0
        %351 = vst.msk [vmem:[#allocation2 + $0x48] sm:$0x1] %vm347, 0.0
        %352 = vst.msk [vmem:[#allocation2 + $0x60] sm:$0x1] %vm347, 0.0
        %353 = vst.msk [vmem:[#allocation2 + $0x78] sm:$0x1] %vm347, 0.0
        %354 = vst.msk [vmem:[#allocation2 + $0x90] sm:$0x1] %vm347, 0.0
        %355 = vst.msk [vmem:[#allocation2 + $0xa8] sm:$0x1] %vm347, 0.0
        %356 = vst.msk [vmem:[#allocation2 + $0xc0] sm:$0x1] %vm347, 0.0
        %357 = vst.msk [vmem:[#allocation2 + $0xd8] sm:$0x1] %vm347, 0.0
        %358 = vst.msk [vmem:[#allocation2 + $0xf0] sm:$0x1] %vm347, 0.0
        %359 = vst.msk [vmem:[#allocation2 + $0x108] sm:$0x1] %vm347, 0.0
        %360 = vst.msk [vmem:[#allocation2 + $0x120] sm:$0x1] %vm347, 0.0
        %361 = vst.msk [vmem:[#allocation2 + $0x138] sm:$0x1] %vm347, 0.0
        %362 = vst.msk [vmem:[#allocation2 + $0x150] sm:$0x1] %vm347, 0.0
        %363 = vst.msk [vmem:[#allocation2 + $0x168] sm:$0x1] %vm347, 0.0
        %364 = vst.msk [vmem:[#allocation2 + $0x180] sm:$0x1] %vm347, 0.0
        %365 = vst.msk [vmem:[#allocation2 + $0x198] sm:$0x1] %vm347, 0.0
        %366 = vst.msk [vmem:[#allocation2 + $0x11] sm:$0x1] %vm347, 0.0
        %367 = vst.msk [vmem:[#allocation2 + $0x29] sm:$0x1] %vm347, 0.0
        %368 = vst.msk [vmem:[#allocation2 + $0x41] sm:$0x1] %vm347, 0.0
        %369 = vst.msk [vmem:[#allocation2 + $0x59] sm:$0x1] %vm347, 0.0
        %370 = vst.msk [vmem:[#allocation2 + $0x71] sm:$0x1] %vm347, 0.0
        %371 = vst.msk [vmem:[#allocation2 + $0x89] sm:$0x1] %vm347, 0.0
        %372 = vst.msk [vmem:[#allocation2 + $0xa1] sm:$0x1] %vm347, 0.0
        %373 = vst.msk [vmem:[#allocation2 + $0xb9] sm:$0x1] %vm347, 0.0
        %374 = vst.msk [vmem:[#allocation2 + $0xd1] sm:$0x1] %vm347, 0.0
        %375 = vst.msk [vmem:[#allocation2 + $0xe9] sm:$0x1] %vm347, 0.0
        %376 = vst.msk [vmem:[#allocation2 + $0x101] sm:$0x1] %vm347, 0.0
        %377 = vst.msk [vmem:[#allocation2 + $0x119] sm:$0x1] %vm347, 0.0
        %378 = vst.msk [vmem:[#allocation2 + $0x131] sm:$0x1] %vm347, 0.0
        %379 = vst.msk [vmem:[#allocation2 + $0x149] sm:$0x1] %vm347, 0.0
        %380 = vst.msk [vmem:[#allocation2 + $0x161] sm:$0x1] %vm347, 0.0
        %381 = vst.msk [vmem:[#allocation2 + $0x179] sm:$0x1] %vm347, 0.0
        %382 = vst.msk [vmem:[#allocation2 + $0x191] sm:$0x1] %vm347, 0.0
        %383 = vst.msk [vmem:[#allocation2 + $0x1a9] sm:$0x1] %vm347, 0.0
        %s384 = smul.u32 %s346, 16
        %s385 = scalar_lea.vmem %s344, %s384
        %v386 = vld [vmem:[%s385] sm:$0xff]
        %v387 = vld [vmem:[%s385 + $0x8] sm:$0xff]
        %v388 = vld [vmem:[%s385 + $0x10] sm:$0xff]
        %v389 = vld [vmem:[%s385 + $0x18] sm:$0xff]
        %v390 = vld [vmem:[%s385 + $0x20] sm:$0xff]
        %v391 = vld [vmem:[%s385 + $0x28] sm:$0xff]
        %v392 = vld [vmem:[%s385 + $0x30] sm:$0xff]
        %v393 = vld [vmem:[%s385 + $0x38] sm:$0xff]
        %v394 = vld [vmem:[%s385 + $0x40] sm:$0xff]
        %v395 = vld [vmem:[%s385 + $0x48] sm:$0xff]
        %v396 = vld [vmem:[%s385 + $0x50] sm:$0xff]
        %v397 = vld [vmem:[%s385 + $0x58] sm:$0xff]
        %v398 = vld [vmem:[%s385 + $0x60] sm:$0xff]
        %v399 = vld [vmem:[%s385 + $0x68] sm:$0xff]
        %v400 = vld [vmem:[%s385 + $0x70] sm:$0xff]
        %v401 = vld [vmem:[%s385 + $0x78] sm:$0xff]
        %v402 = vld [vmem:[%s385 + $0x80] sm:$0xff]
        %v403 = vld [vmem:[%s385 + $0x88] sm:$0xff]
        %v404 = vld [vmem:[%s385 + $0x90] sm:$0xff]
        %v405 = vld [vmem:[%s385 + $0x98] sm:$0xff]
        %v406 = vld [vmem:[%s385 + $0xa0] sm:$0xff]
        %v407 = vld [vmem:[%s385 + $0xa8] sm:$0xff]
        %v408 = vld [vmem:[%s385 + $0xb0] sm:$0xff]
        %v409 = vld [vmem:[%s385 + $0xb8] sm:$0xff]
        %v410 = vld [vmem:[%s385 + $0xc0] sm:$0xff]
        %v411 = vld [vmem:[%s385 + $0xc8] sm:$0xff]
        %v412 = vld [vmem:[%s385 + $0xd0] sm:$0xff]
        %v413 = vld [vmem:[%s385 + $0xd8] sm:$0xff]
        %v414 = vld [vmem:[%s385 + $0xe0] sm:$0xff]
        %v415 = vld [vmem:[%s385 + $0xe8] sm:$0xff]
        %v416 = vld [vmem:[%s385 + $0xf0] sm:$0xff]
        %v417 = vld [vmem:[%s385 + $0xf8] sm:$0xff]
        %v418 = vld [vmem:[%s1] sm:$0xf]
        %v419 = vld [vmem:[%s2] sm:$0x1]
        %v421 = vperm.slane %v419, 0
        %vm423 = vcmask 31744
        %v425 = vsel %vm423, %v386, 0
        %v428 = vsel %vm423, %v387, 0
        %v431 = vsel %vm423, %v388, 0
        %v434 = vsel %vm423, %v389, 0
        %v437 = vsel %vm423, %v390, 0
        %v440 = vsel %vm423, %v391, 0
        %v443 = vsel %vm423, %v392, 0
        %v446 = vsel %vm423, %v393, 0
        %v449 = vsel %vm423, %v394, 0
        %v452 = vsel %vm423, %v395, 0
        %v455 = vsel %vm423, %v396, 0
        %v458 = vsel %vm423, %v397, 0
        %v461 = vsel %vm423, %v398, 0
        %v464 = vsel %vm423, %v399, 0
        %v467 = vsel %vm423, %v400, 0
        %v470 = vsel %vm423, %v401, 0
        %v473 = vsel %vm423, %v402, 0
        %v476 = vsel %vm423, %v403, 0
        %v479 = vsel %vm423, %v404, 0
        %v482 = vsel %vm423, %v405, 0
        %v485 = vsel %vm423, %v406, 0
        %v488 = vsel %vm423, %v407, 0
        %v491 = vsel %vm423, %v408, 0
        %v494 = vsel %vm423, %v409, 0
        %v497 = vsel %vm423, %v410, 0
        %v500 = vsel %vm423, %v411, 0
        %v503 = vsel %vm423, %v412, 0
        %v506 = vsel %vm423, %v413, 0
        %v509 = vsel %vm423, %v414, 0
        %v512 = vsel %vm423, %v415, 0
        %v515 = vsel %vm423, %v416, 0
        %v518 = vsel %vm423, %v417, 0
        %vm520 = vcmask 1043456
        %v522 = vsel %vm520, %v418, 0
        %524 = vmatpush.msra.mxu0 0.0
        %525 = vmatpush.msra.mxu0 0.0
        %526 = vmatpush.msra.mxu0 0.0
        %527 = vmatpush.msra.mxu0 0.0
        %528 = vmatpush.msra.mxu0 0.0
        %529 = vmatpush.msra.mxu0 0.0
        %530 = vmatpush.msra.mxu0 0.0
        %531 = vmatpush.msra.mxu0 0.0
        %532 = vmatpush.msra.mxu0 0.0
        %533 = vmatpush.msra.mxu0 0.0
        %534 = vmatpush.msra.mxu0 0.0
        %535 = vmatpush.msra.mxu0 0.0
        %536 = vmatpush.msra.mxu0 0.0
        %537 = vmatpush.msra.mxu0 0.0
        %538 = vmatpush.msra.mxu0 0.0
        %539 = vmatpush.msra.mxu0 %v522
        %540 = vmatmul.f32.gmra.mxu0 %v425
        %v541 = vpop.f32.mrf.mxu0
        %v542 = vadd.f32 %v421, %v541
        %543 = vmatmul.f32.gmra.mxu0 %v428
        %v544 = vpop.f32.mrf.mxu0
        %v545 = vadd.f32 %v421, %v544
        %546 = vmatmul.f32.gmra.mxu0 %v431
        %v547 = vpop.f32.mrf.mxu0
        %v548 = vadd.f32 %v421, %v547
        %549 = vmatmul.f32.gmra.mxu0 %v434
        %v550 = vpop.f32.mrf.mxu0
        %v551 = vadd.f32 %v421, %v550
        %552 = vmatmul.f32.gmra.mxu0 %v437
        %v553 = vpop.f32.mrf.mxu0
        %v554 = vadd.f32 %v421, %v553
        %555 = vmatmul.f32.gmra.mxu0 %v440
        %v556 = vpop.f32.mrf.mxu0
        %v557 = vadd.f32 %v421, %v556
        %558 = vmatmul.f32.gmra.mxu0 %v443
        %v559 = vpop.f32.mrf.mxu0
        %v560 = vadd.f32 %v421, %v559
        %561 = vmatmul.f32.gmra.mxu0 %v446
        %v562 = vpop.f32.mrf.mxu0
        %v563 = vadd.f32 %v421, %v562
        %564 = vmatmul.f32.gmra.mxu0 %v449
        %v565 = vpop.f32.mrf.mxu0
        %v566 = vadd.f32 %v421, %v565
        %567 = vmatmul.f32.gmra.mxu0 %v452
        %v568 = vpop.f32.mrf.mxu0
        %v569 = vadd.f32 %v421, %v568
        %570 = vmatmul.f32.gmra.mxu0 %v455
        %v571 = vpop.f32.mrf.mxu0
        %v572 = vadd.f32 %v421, %v571
        %573 = vmatmul.f32.gmra.mxu0 %v458
        %v574 = vpop.f32.mrf.mxu0
        %v575 = vadd.f32 %v421, %v574
        %576 = vmatmul.f32.gmra.mxu0 %v461
        %v577 = vpop.f32.mrf.mxu0
        %v578 = vadd.f32 %v421, %v577
        %579 = vmatmul.f32.gmra.mxu0 %v464
        %v580 = vpop.f32.mrf.mxu0
        %v581 = vadd.f32 %v421, %v580
        %582 = vmatmul.f32.gmra.mxu0 %v467
        %v583 = vpop.f32.mrf.mxu0
        %v584 = vadd.f32 %v421, %v583
        %585 = vmatmul.f32.gmra.mxu0 %v470
        %v586 = vpop.f32.mrf.mxu0
        %v587 = vadd.f32 %v421, %v586
        %588 = vmatmul.f32.gmra.mxu0 %v473
        %v589 = vpop.f32.mrf.mxu0
        %v590 = vadd.f32 %v421, %v589
        %591 = vmatmul.f32.gmra.mxu0 %v476
        %v592 = vpop.f32.mrf.mxu0
        %v593 = vadd.f32 %v421, %v592
        %594 = vmatmul.f32.gmra.mxu0 %v479
        %v595 = vpop.f32.mrf.mxu0
        %v596 = vadd.f32 %v421, %v595
        %597 = vmatmul.f32.gmra.mxu0 %v482
        %v598 = vpop.f32.mrf.mxu0
        %v599 = vadd.f32 %v421, %v598
        %600 = vmatmul.f32.gmra.mxu0 %v485
        %v601 = vpop.f32.mrf.mxu0
        %v602 = vadd.f32 %v421, %v601
        %603 = vmatmul.f32.gmra.mxu0 %v488
        %v604 = vpop.f32.mrf.mxu0
        %v605 = vadd.f32 %v421, %v604
        %606 = vmatmul.f32.gmra.mxu0 %v491
        %v607 = vpop.f32.mrf.mxu0
        %v608 = vadd.f32 %v421, %v607
        %609 = vmatmul.f32.gmra.mxu0 %v494
        %v610 = vpop.f32.mrf.mxu0
        %v611 = vadd.f32 %v421, %v610
        %612 = vmatmul.f32.gmra.mxu0 %v497
        %v613 = vpop.f32.mrf.mxu0
        %v614 = vadd.f32 %v421, %v613
        %615 = vmatmul.f32.gmra.mxu0 %v500
        %v616 = vpop.f32.mrf.mxu0
        %v617 = vadd.f32 %v421, %v616
        %618 = vmatmul.f32.gmra.mxu0 %v503
        %v619 = vpop.f32.mrf.mxu0
        %v620 = vadd.f32 %v421, %v619
        %621 = vmatmul.f32.gmra.mxu0 %v506
        %v622 = vpop.f32.mrf.mxu0
        %v623 = vadd.f32 %v421, %v622
        %624 = vmatmul.f32.gmra.mxu0 %v509
        %v625 = vpop.f32.mrf.mxu0
        %v626 = vadd.f32 %v421, %v625
        %627 = vmatmul.f32.gmra.mxu0 %v512
        %v628 = vpop.f32.mrf.mxu0
        %v629 = vadd.f32 %v421, %v628
        %630 = vmatmul.f32.gmra.mxu0 %v515
        %v631 = vpop.f32.mrf.mxu0
        %v632 = vadd.f32 %v421, %v631
        %633 = vmatmul.f32.gmra.mxu0 %v518
        %v634 = vpop.f32.mrf.mxu0
        %v635 = vadd.f32 %v421, %v634
        %636 = vdwg.mxu0
        %v637 = vmax.f32 %v542, 0.0
        %v638 = vmax.f32 %v545, 0.0
        %v639 = vmax.f32 %v548, 0.0
        %v640 = vmax.f32 %v551, 0.0
        %v641 = vmax.f32 %v554, 0.0
        %v642 = vmax.f32 %v557, 0.0
        %v643 = vmax.f32 %v560, 0.0
        %v644 = vmax.f32 %v563, 0.0
        %v645 = vmax.f32 %v566, 0.0
        %v646 = vmax.f32 %v569, 0.0
        %v647 = vmax.f32 %v572, 0.0
        %v648 = vmax.f32 %v575, 0.0
        %v649 = vmax.f32 %v578, 0.0
        %v650 = vmax.f32 %v581, 0.0
        %v651 = vmax.f32 %v584, 0.0
        %v652 = vmax.f32 %v587, 0.0
        %v653 = vmax.f32 %v590, 0.0
        %v654 = vmax.f32 %v593, 0.0
        %v655 = vmax.f32 %v596, 0.0
        %v656 = vmax.f32 %v599, 0.0
        %v657 = vmax.f32 %v602, 0.0
        %v658 = vmax.f32 %v605, 0.0
        %v659 = vmax.f32 %v608, 0.0
        %v660 = vmax.f32 %v611, 0.0
        %v661 = vmax.f32 %v614, 0.0
        %v662 = vmax.f32 %v617, 0.0
        %v663 = vmax.f32 %v620, 0.0
        %v664 = vmax.f32 %v623, 0.0
        %v665 = vmax.f32 %v626, 0.0
        %v666 = vmax.f32 %v629, 0.0
        %v667 = vmax.f32 %v632, 0.0
        %v668 = vmax.f32 %v635, 0.0
        %s669 = scalar_lea.vmem [#allocation2], 24
        %670 = vst.msk [vmem:[%s669 + $0x1] sm:$0xff] %vm423, %v637
        %671 = vst.msk [vmem:[%s669 + $0x9] sm:$0xff] %vm423, %v638
        %672 = vst.msk [vmem:[%s669 + $0x19] sm:$0xff] %vm423, %v639
        %673 = vst.msk [vmem:[%s669 + $0x21] sm:$0xff] %vm423, %v640
        %674 = vst.msk [vmem:[%s669 + $0x31] sm:$0xff] %vm423, %v641
        %675 = vst.msk [vmem:[%s669 + $0x39] sm:$0xff] %vm423, %v642
        %676 = vst.msk [vmem:[%s669 + $0x49] sm:$0xff] %vm423, %v643
        %677 = vst.msk [vmem:[%s669 + $0x51] sm:$0xff] %vm423, %v644
        %678 = vst.msk [vmem:[%s669 + $0x61] sm:$0xff] %vm423, %v645
        %679 = vst.msk [vmem:[%s669 + $0x69] sm:$0xff] %vm423, %v646
        %680 = vst.msk [vmem:[%s669 + $0x79] sm:$0xff] %vm423, %v647
        %681 = vst.msk [vmem:[%s669 + $0x81] sm:$0xff] %vm423, %v648
        %682 = vst.msk [vmem:[%s669 + $0x91] sm:$0xff] %vm423, %v649
        %683 = vst.msk [vmem:[%s669 + $0x99] sm:$0xff] %vm423, %v650
        %684 = vst.msk [vmem:[%s669 + $0xa9] sm:$0xff] %vm423, %v651
        %685 = vst.msk [vmem:[%s669 + $0xb1] sm:$0xff] %vm423, %v652
        %686 = vst.msk [vmem:[%s669 + $0xc1] sm:$0xff] %vm423, %v653
        %687 = vst.msk [vmem:[%s669 + $0xc9] sm:$0xff] %vm423, %v654
        %688 = vst.msk [vmem:[%s669 + $0xd9] sm:$0xff] %vm423, %v655
        %689 = vst.msk [vmem:[%s669 + $0xe1] sm:$0xff] %vm423, %v656
        %690 = vst.msk [vmem:[%s669 + $0xf1] sm:$0xff] %vm423, %v657
        %691 = vst.msk [vmem:[%s669 + $0xf9] sm:$0xff] %vm423, %v658
        %692 = vst.msk [vmem:[%s669 + $0x109] sm:$0xff] %vm423, %v659
        %693 = vst.msk [vmem:[%s669 + $0x111] sm:$0xff] %vm423, %v660
        %694 = vst.msk [vmem:[%s669 + $0x121] sm:$0xff] %vm423, %v661
        %695 = vst.msk [vmem:[%s669 + $0x129] sm:$0xff] %vm423, %v662
        %696 = vst.msk [vmem:[%s669 + $0x139] sm:$0xff] %vm423, %v663
        %697 = vst.msk [vmem:[%s669 + $0x141] sm:$0xff] %vm423, %v664
        %698 = vst.msk [vmem:[%s669 + $0x151] sm:$0xff] %vm423, %v665
        %699 = vst.msk [vmem:[%s669 + $0x159] sm:$0xff] %vm423, %v666
        %700 = vst.msk [vmem:[%s669 + $0x169] sm:$0xff] %vm423, %v667
        %701 = vst.msk [vmem:[%s669 + $0x171] sm:$0xff] %vm423, %v668
        %p702 = scmp.eq.s32.totalorder %s28, 0
        // Predicated region
        $region57: #{tpu_custom_call.1} parent=55 // pred_check
          %p703 = pneg %p702
        $region58: #{tpu_custom_call.1} parent=55 // pred_check_branch
          %705 = sbr.rel (%p703) target = $region60
        $region59: #{tpu_custom_call.1} parent=55 // pred_region
          %706 = vst.msk [vmem:[#allocation2 + $0x1] sm:$0xff] %vm423, 0.0
          %707 = vst.msk [vmem:[#allocation2 + $0x9] sm:$0xff] %vm423, 0.0
        $region60: #{tpu_custom_call.1} parent=55 // pred_fallthru
          _
        %p708 = scmp.gt.s32.totalorder %s28, 0
        // Predicated region
        $region61: #{tpu_custom_call.1} parent=55 // pred_check
          %p709 = pneg %p708
        $region62: #{tpu_custom_call.1} parent=55 // pred_check_branch
          %711 = sbr.rel (%p709) target = $region64
        $region63: #{tpu_custom_call.1} parent=55 // pred_region
          %s712 = ssub.s32 %s346, 1
          %s713 = smul.u32 %s712, 16
          %s714 = scalar_lea.vmem %s344, %s713
          %v715 = vld [vmem:[%s714] sm:$0xff]
          %v716 = vld [vmem:[%s714 + $0x8] sm:$0xff]
          %v717 = vld [vmem:[%s1] sm:$0xf]
          %v718 = vld [vmem:[%s2] sm:$0x1]
          %v720 = vperm.slane %v718, 0
          %v723 = vsel %vm423, %v715, 0
          %v726 = vsel %vm423, %v716, 0
          %v729 = vsel %vm520, %v717, 0
          %731 = vmatpush.msra.mxu0 0.0
          %732 = vmatpush.msra.mxu0 0.0
          %733 = vmatpush.msra.mxu0 0.0
          %734 = vmatpush.msra.mxu0 0.0
          %735 = vmatpush.msra.mxu0 0.0
          %736 = vmatpush.msra.mxu0 0.0
          %737 = vmatpush.msra.mxu0 0.0
          %738 = vmatpush.msra.mxu0 0.0
          %739 = vmatpush.msra.mxu0 0.0
          %740 = vmatpush.msra.mxu0 0.0
          %741 = vmatpush.msra.mxu0 0.0
          %742 = vmatpush.msra.mxu0 0.0
          %743 = vmatpush.msra.mxu0 0.0
          %744 = vmatpush.msra.mxu0 0.0
          %745 = vmatpush.msra.mxu0 0.0
          %746 = vmatpush.msra.mxu0 %v729
          %747 = vmatmul.f32.gmra.mxu0 %v723
          %v748 = vpop.f32.mrf.mxu0
          %v749 = vadd.f32 %v720, %v748
          %750 = vmatmul.f32.gmra.mxu0 %v726
          %v751 = vpop.f32.mrf.mxu0
          %v752 = vadd.f32 %v720, %v751
          %753 = vdwg.mxu0
          %v754 = vmax.f32 %v749, 0.0
          %v755 = vmax.f32 %v752, 0.0
          %756 = vst.msk [vmem:[#allocation2 + $0x1] sm:$0xff] %vm423, %v754
          %757 = vst.msk [vmem:[#allocation2 + $0x9] sm:$0xff] %vm423, %v755
        $region64: #{tpu_custom_call.1} parent=55 // pred_fallthru
          _
        // Predicated region
        $region65: #{tpu_custom_call.1} parent=55 // pred_check
          %p758 = pneg %p702
        $region66: #{tpu_custom_call.1} parent=55 // pred_check_branch
          %760 = sbr.rel (%p758) target = $region68
        $region67: #{tpu_custom_call.1} parent=55 // pred_region
          %s761 = scalar_lea.vmem [#allocation2], 408
          %762 = vst.msk [vmem:[%s761 + $0x1] sm:$0xff] %vm423, 0.0
          %763 = vst.msk [vmem:[%s761 + $0x9] sm:$0xff] %vm423, 0.0
        $region68: #{tpu_custom_call.1} parent=55 // pred_fallthru
          _
        %p764 = scmp.lt.s32.totalorder %s28, 0
        // Predicated region
        $region69: #{tpu_custom_call.1} parent=55 // pred_check
          %p765 = pneg %p764
        $region70: #{tpu_custom_call.1} parent=55 // pred_check_branch
          %767 = sbr.rel (%p765) target = $region72
        $region71: #{tpu_custom_call.1} parent=55 // pred_region
          %s768 = sadd.s32 %s346, 16
          %s769 = smul.u32 %s768, 16
          %s770 = scalar_lea.vmem %s344, %s769
          %v771 = vld [vmem:[%s770] sm:$0xff]
          %v772 = vld [vmem:[%s770 + $0x8] sm:$0xff]
          %v773 = vld [vmem:[%s1] sm:$0xf]
          %v774 = vld [vmem:[%s2] sm:$0x1]
          %v776 = vperm.slane %v774, 0
          %v779 = vsel %vm423, %v771, 0
          %v782 = vsel %vm423, %v772, 0
          %v785 = vsel %vm520, %v773, 0
          %787 = vmatpush.msra.mxu0 0.0
          %788 = vmatpush.msra.mxu0 0.0
          %789 = vmatpush.msra.mxu0 0.0
          %790 = vmatpush.msra.mxu0 0.0
          %791 = vmatpush.msra.mxu0 0.0
          %792 = vmatpush.msra.mxu0 0.0
          %793 = vmatpush.msra.mxu0 0.0
          %794 = vmatpush.msra.mxu0 0.0
          %795 = vmatpush.msra.mxu0 0.0
          %796 = vmatpush.msra.mxu0 0.0
          %797 = vmatpush.msra.mxu0 0.0
          %798 = vmatpush.msra.mxu0 0.0
          %799 = vmatpush.msra.mxu0 0.0
          %800 = vmatpush.msra.mxu0 0.0
          %801 = vmatpush.msra.mxu0 0.0
          %802 = vmatpush.msra.mxu0 %v785
          %803 = vmatmul.f32.gmra.mxu0 %v779
          %v804 = vpop.f32.mrf.mxu0
          %v805 = vadd.f32 %v776, %v804
          %806 = vmatmul.f32.gmra.mxu0 %v782
          %v807 = vpop.f32.mrf.mxu0
          %v808 = vadd.f32 %v776, %v807
          %809 = vdwg.mxu0
          %v810 = vmax.f32 %v805, 0.0
          %v811 = vmax.f32 %v808, 0.0
          %s812 = scalar_lea.vmem [#allocation2], 408
          %813 = vst.msk [vmem:[%s812 + $0x1] sm:$0xff] %vm423, %v810
          %814 = vst.msk [vmem:[%s812 + $0x9] sm:$0xff] %vm423, %v811
        $region72: #{tpu_custom_call.1} parent=55 // pred_fallthru
          _
        %v815 = vld [vmem:[#allocation2] sm:$0xff]
        %v816 = vld [vmem:[#allocation2 + $0x8] sm:$0xff]
        %v817 = vld [vmem:[#allocation2 + $0x10] sm:$0x3]
        %v818 = vld [vmem:[#allocation2 + $0x18] sm:$0xff]
        %v819 = vld [vmem:[#allocation2 + $0x20] sm:$0xff]
        %v820 = vld [vmem:[#allocation2 + $0x28] sm:$0x3]
        %v821 = vld [vmem:[#allocation2 + $0x30] sm:$0xff]
        %v822 = vld [vmem:[#allocation2 + $0x38] sm:$0xff]
        %v823 = vld [vmem:[#allocation2 + $0x40] sm:$0x3]
        %v824 = vld [vmem:[#allocation2 + $0x48] sm:$0xff]
        %v825 = vld [vmem:[#allocation2 + $0x50] sm:$0xff]
        %v826 = vld [vmem:[#allocation2 + $0x58] sm:$0x3]
        %v827 = vld [vmem:[#allocation2 + $0x60] sm:$0xff]
        %v828 = vld [vmem:[#allocation2 + $0x68] sm:$0xff]
        %v829 = vld [vmem:[#allocation2 + $0x70] sm:$0x3]
        %v830 = vld [vmem:[#allocation2 + $0x78] sm:$0xff]
        %v831 = vld [vmem:[#allocation2 + $0x80] sm:$0xff]
        %v832 = vld [vmem:[#allocation2 + $0x88] sm:$0x3]
        %v833 = vld [vmem:[#allocation2 + $0x90] sm:$0xff]
        %v834 = vld [vmem:[#allocation2 + $0x98] sm:$0xff]
        %v835 = vld [vmem:[#allocation2 + $0xa0] sm:$0x3]
        %v836 = vld [vmem:[#allocation2 + $0xa8] sm:$0xff]
        %v837 = vld [vmem:[#allocation2 + $0xb0] sm:$0xff]
        %v838 = vld [vmem:[#allocation2 + $0xb8] sm:$0x3]
        %v839 = vld [vmem:[#allocation2 + $0xc0] sm:$0xff]
        %v840 = vld [vmem:[#allocation2 + $0xc8] sm:$0xff]
        %v841 = vld [vmem:[#allocation2 + $0xd0] sm:$0x3]
        %v842 = vld [vmem:[#allocation2 + $0xd8] sm:$0xff]
        %v843 = vld [vmem:[#allocation2 + $0xe0] sm:$0xff]
        %v844 = vld [vmem:[#allocation2 + $0xe8] sm:$0x3]
        %v845 = vld [vmem:[#allocation2 + $0xf0] sm:$0xff]
        %v846 = vld [vmem:[#allocation2 + $0xf8] sm:$0xff]
        %v847 = vld [vmem:[#allocation2 + $0x100] sm:$0x3]
        %v848 = vld [vmem:[#allocation2 + $0x108] sm:$0xff]
        %v849 = vld [vmem:[#allocation2 + $0x110] sm:$0xff]
        %v850 = vld [vmem:[#allocation2 + $0x118] sm:$0x3]
        %v851 = vld [vmem:[#allocation2 + $0x120] sm:$0xff]
        %v852 = vld [vmem:[#allocation2 + $0x128] sm:$0xff]
        %v853 = vld [vmem:[#allocation2 + $0x130] sm:$0x3]
        %v854 = vld [vmem:[#allocation2 + $0x138] sm:$0xff]
        %v855 = vld [vmem:[#allocation2 + $0x140] sm:$0xff]
        %v856 = vld [vmem:[#allocation2 + $0x148] sm:$0x3]
        %v857 = vld [vmem:[#allocation2 + $0x150] sm:$0xff]
        %v858 = vld [vmem:[#allocation2 + $0x158] sm:$0xff]
        %v859 = vld [vmem:[#allocation2 + $0x160] sm:$0x3]
        %v860 = vld [vmem:[#allocation2 + $0x168] sm:$0xff]
        %v861 = vld [vmem:[#allocation2 + $0x170] sm:$0xff]
        %v862 = vld [vmem:[#allocation2 + $0x178] sm:$0x3]
        %v863 = vld [vmem:[%s669] sm:$0xff]
        %v864 = vld [vmem:[%s669 + $0x8] sm:$0xff]
        %v865 = vld [vmem:[%s669 + $0x10] sm:$0x3]
        %v866 = vld [vmem:[%s669 + $0x18] sm:$0xff]
        %v867 = vld [vmem:[%s669 + $0x20] sm:$0xff]
        %v868 = vld [vmem:[%s669 + $0x28] sm:$0x3]
        %v869 = vld [vmem:[%s669 + $0x30] sm:$0xff]
        %v870 = vld [vmem:[%s669 + $0x38] sm:$0xff]
        %v871 = vld [vmem:[%s669 + $0x40] sm:$0x3]
        %v872 = vld [vmem:[%s669 + $0x48] sm:$0xff]
        %v873 = vld [vmem:[%s669 + $0x50] sm:$0xff]
        %v874 = vld [vmem:[%s669 + $0x58] sm:$0x3]
        %v875 = vld [vmem:[%s669 + $0x60] sm:$0xff]
        %v876 = vld [vmem:[%s669 + $0x68] sm:$0xff]
        %v877 = vld [vmem:[%s669 + $0x70] sm:$0x3]
        %v878 = vld [vmem:[%s669 + $0x78] sm:$0xff]
        %v879 = vld [vmem:[%s669 + $0x80] sm:$0xff]
        %v880 = vld [vmem:[%s669 + $0x88] sm:$0x3]
        %v881 = vld [vmem:[%s669 + $0x90] sm:$0xff]
        %v882 = vld [vmem:[%s669 + $0x98] sm:$0xff]
        %v883 = vld [vmem:[%s669 + $0xa0] sm:$0x3]
        %v884 = vld [vmem:[%s669 + $0xa8] sm:$0xff]
        %v885 = vld [vmem:[%s669 + $0xb0] sm:$0xff]
        %v886 = vld [vmem:[%s669 + $0xb8] sm:$0x3]
        %v887 = vld [vmem:[%s669 + $0xc0] sm:$0xff]
        %v888 = vld [vmem:[%s669 + $0xc8] sm:$0xff]
        %v889 = vld [vmem:[%s669 + $0xd0] sm:$0x3]
        %v890 = vld [vmem:[%s669 + $0xd8] sm:$0xff]
        %v891 = vld [vmem:[%s669 + $0xe0] sm:$0xff]
        %v892 = vld [vmem:[%s669 + $0xe8] sm:$0x3]
        %v893 = vld [vmem:[%s669 + $0xf0] sm:$0xff]
        %v894 = vld [vmem:[%s669 + $0xf8] sm:$0xff]
        %v895 = vld [vmem:[%s669 + $0x100] sm:$0x3]
        %v896 = vld [vmem:[%s669 + $0x108] sm:$0xff]
        %v897 = vld [vmem:[%s669 + $0x110] sm:$0xff]
        %v898 = vld [vmem:[%s669 + $0x118] sm:$0x3]
        %v899 = vld [vmem:[%s669 + $0x120] sm:$0xff]
        %v900 = vld [vmem:[%s669 + $0x128] sm:$0xff]
        %v901 = vld [vmem:[%s669 + $0x130] sm:$0x3]
        %v902 = vld [vmem:[%s669 + $0x138] sm:$0xff]
        %v903 = vld [vmem:[%s669 + $0x140] sm:$0xff]
        %v904 = vld [vmem:[%s669 + $0x148] sm:$0x3]
        %v905 = vld [vmem:[%s669 + $0x150] sm:$0xff]
        %v906 = vld [vmem:[%s669 + $0x158] sm:$0xff]
        %v907 = vld [vmem:[%s669 + $0x160] sm:$0x3]
        %v908 = vld [vmem:[%s669 + $0x168] sm:$0xff]
        %v909 = vld [vmem:[%s669 + $0x170] sm:$0xff]
        %v910 = vld [vmem:[%s669 + $0x178] sm:$0x3]
        %s911 = scalar_lea.vmem [#allocation2], 48
        %v912 = vld [vmem:[%s911] sm:$0xff]
        %v913 = vld [vmem:[%s911 + $0x8] sm:$0xff]
        %v914 = vld [vmem:[%s911 + $0x10] sm:$0x3]
        %v915 = vld [vmem:[%s911 + $0x18] sm:$0xff]
        %v916 = vld [vmem:[%s911 + $0x20] sm:$0xff]
        %v917 = vld [vmem:[%s911 + $0x28] sm:$0x3]
        %v918 = vld [vmem:[%s911 + $0x30] sm:$0xff]
        %v919 = vld [vmem:[%s911 + $0x38] sm:$0xff]
        %v920 = vld [vmem:[%s911 + $0x40] sm:$0x3]
        %v921 = vld [vmem:[%s911 + $0x48] sm:$0xff]
        %v922 = vld [vmem:[%s911 + $0x50] sm:$0xff]
        %v923 = vld [vmem:[%s911 + $0x58] sm:$0x3]
        %v924 = vld [vmem:[%s911 + $0x60] sm:$0xff]
        %v925 = vld [vmem:[%s911 + $0x68] sm:$0xff]
        %v926 = vld [vmem:[%s911 + $0x70] sm:$0x3]
        %v927 = vld [vmem:[%s911 + $0x78] sm:$0xff]
        %v928 = vld [vmem:[%s911 + $0x80] sm:$0xff]
        %v929 = vld [vmem:[%s911 + $0x88] sm:$0x3]
        %v930 = vld [vmem:[%s911 + $0x90] sm:$0xff]
        %v931 = vld [vmem:[%s911 + $0x98] sm:$0xff]
        %v932 = vld [vmem:[%s911 + $0xa0] sm:$0x3]
        %v933 = vld [vmem:[%s911 + $0xa8] sm:$0xff]
        %v934 = vld [vmem:[%s911 + $0xb0] sm:$0xff]
        %v935 = vld [vmem:[%s911 + $0xb8] sm:$0x3]
        %v936 = vld [vmem:[%s911 + $0xc0] sm:$0xff]
        %v937 = vld [vmem:[%s911 + $0xc8] sm:$0xff]
        %v938 = vld [vmem:[%s911 + $0xd0] sm:$0x3]
        %v939 = vld [vmem:[%s911 + $0xd8] sm:$0xff]
        %v940 = vld [vmem:[%s911 + $0xe0] sm:$0xff]
        %v941 = vld [vmem:[%s911 + $0xe8] sm:$0x3]
        %v942 = vld [vmem:[%s911 + $0xf0] sm:$0xff]
        %v943 = vld [vmem:[%s911 + $0xf8] sm:$0xff]
        %v944 = vld [vmem:[%s911 + $0x100] sm:$0x3]
        %v945 = vld [vmem:[%s911 + $0x108] sm:$0xff]
        %v946 = vld [vmem:[%s911 + $0x110] sm:$0xff]
        %v947 = vld [vmem:[%s911 + $0x118] sm:$0x3]
        %v948 = vld [vmem:[%s911 + $0x120] sm:$0xff]
        %v949 = vld [vmem:[%s911 + $0x128] sm:$0xff]
        %v950 = vld [vmem:[%s911 + $0x130] sm:$0x3]
        %v951 = vld [vmem:[%s911 + $0x138] sm:$0xff]
        %v952 = vld [vmem:[%s911 + $0x140] sm:$0xff]
        %v953 = vld [vmem:[%s911 + $0x148] sm:$0x3]
        %v954 = vld [vmem:[%s911 + $0x150] sm:$0xff]
        %v955 = vld [vmem:[%s911 + $0x158] sm:$0xff]
        %v956 = vld [vmem:[%s911 + $0x160] sm:$0x3]
        %v957 = vld [vmem:[%s911 + $0x168] sm:$0xff]
        %v958 = vld [vmem:[%s911 + $0x170] sm:$0xff]
        %v959 = vld [vmem:[%s911 + $0x178] sm:$0x3]
        %vm1008 = vcmask 1046528
        %v1009 = vrot.slane %v815, 1
        %v1010 = vrot.slane %v816, 1
        %v1011 = vsel %vm1008, %v1009, %v1010
        %v1012 = vrot.slane %v817, 1
        %v1013 = vsel %vm1008, %v1010, %v1012
        %v1014 = vrot.slane %v818, 1
        %v1015 = vrot.slane %v819, 1
        %v1016 = vsel %vm1008, %v1014, %v1015
        %v1017 = vrot.slane %v820, 1
        %v1018 = vsel %vm1008, %v1015, %v1017
        %v1019 = vrot.slane %v821, 1
        %v1020 = vrot.slane %v822, 1
        %v1021 = vsel %vm1008, %v1019, %v1020
        %v1022 = vrot.slane %v823, 1
        %v1023 = vsel %vm1008, %v1020, %v1022
        %v1024 = vrot.slane %v824, 1
        %v1025 = vrot.slane %v825, 1
        %v1026 = vsel %vm1008, %v1024, %v1025
        %v1027 = vrot.slane %v826, 1
        %v1028 = vsel %vm1008, %v1025, %v1027
        %v1029 = vrot.slane %v827, 1
        %v1030 = vrot.slane %v828, 1
        %v1031 = vsel %vm1008, %v1029, %v1030
        %v1032 = vrot.slane %v829, 1
        %v1033 = vsel %vm1008, %v1030, %v1032
        %v1034 = vrot.slane %v830, 1
        %v1035 = vrot.slane %v831, 1
        %v1036 = vsel %vm1008, %v1034, %v1035
        %v1037 = vrot.slane %v832, 1
        %v1038 = vsel %vm1008, %v1035, %v1037
        %v1039 = vrot.slane %v833, 1
        %v1040 = vrot.slane %v834, 1
        %v1041 = vsel %vm1008, %v1039, %v1040
        %v1042 = vrot.slane %v835, 1
        %v1043 = vsel %vm1008, %v1040, %v1042
        %v1044 = vrot.slane %v836, 1
        %v1045 = vrot.slane %v837, 1
        %v1046 = vsel %vm1008, %v1044, %v1045
        %v1047 = vrot.slane %v838, 1
        %v1048 = vsel %vm1008, %v1045, %v1047
        %v1049 = vrot.slane %v839, 1
        %v1050 = vrot.slane %v840, 1
        %v1051 = vsel %vm1008, %v1049, %v1050
        %v1052 = vrot.slane %v841, 1
        %v1053 = vsel %vm1008, %v1050, %v1052
        %v1054 = vrot.slane %v842, 1
        %v1055 = vrot.slane %v843, 1
        %v1056 = vsel %vm1008, %v1054, %v1055
        %v1057 = vrot.slane %v844, 1
        %v1058 = vsel %vm1008, %v1055, %v1057
        %v1059 = vrot.slane %v845, 1
        %v1060 = vrot.slane %v846, 1
        %v1061 = vsel %vm1008, %v1059, %v1060
        %v1062 = vrot.slane %v847, 1
        %v1063 = vsel %vm1008, %v1060, %v1062
        %v1064 = vrot.slane %v848, 1
        %v1065 = vrot.slane %v849, 1
        %v1066 = vsel %vm1008, %v1064, %v1065
        %v1067 = vrot.slane %v850, 1
        %v1068 = vsel %vm1008, %v1065, %v1067
        %v1069 = vrot.slane %v851, 1
        %v1070 = vrot.slane %v852, 1
        %v1071 = vsel %vm1008, %v1069, %v1070
        %v1072 = vrot.slane %v853, 1
        %v1073 = vsel %vm1008, %v1070, %v1072
        %v1074 = vrot.slane %v854, 1
        %v1075 = vrot.slane %v855, 1
        %v1076 = vsel %vm1008, %v1074, %v1075
        %v1077 = vrot.slane %v856, 1
        %v1078 = vsel %vm1008, %v1075, %v1077
        %v1079 = vrot.slane %v857, 1
        %v1080 = vrot.slane %v858, 1
        %v1081 = vsel %vm1008, %v1079, %v1080
        %v1082 = vrot.slane %v859, 1
        %v1083 = vsel %vm1008, %v1080, %v1082
        %v1084 = vrot.slane %v860, 1
        %v1085 = vrot.slane %v861, 1
        %v1086 = vsel %vm1008, %v1084, %v1085
        %v1087 = vrot.slane %v862, 1
        %v1088 = vsel %vm1008, %v1085, %v1087
        %1089 = vrot.lane.b32.xlu0 %v1011, 4
        %v1090 = vpop.permute.xlu0 %1089
        %1091 = vrot.lane.b32.xlu0 %v1013, 4
        %v1092 = vpop.permute.xlu0 %1091
        %1093 = vrot.lane.b32.xlu0 %v1016, 4
        %v1094 = vpop.permute.xlu0 %1093
        %1095 = vrot.lane.b32.xlu0 %v1018, 4
        %v1096 = vpop.permute.xlu0 %1095
        %1097 = vrot.lane.b32.xlu0 %v1021, 4
        %v1098 = vpop.permute.xlu0 %1097
        %1099 = vrot.lane.b32.xlu0 %v1023, 4
        %v1100 = vpop.permute.xlu0 %1099
        %1101 = vrot.lane.b32.xlu0 %v1026, 4
        %v1102 = vpop.permute.xlu0 %1101
        %1103 = vrot.lane.b32.xlu0 %v1028, 4
        %v1104 = vpop.permute.xlu0 %1103
        %1105 = vrot.lane.b32.xlu0 %v1031, 4
        %v1106 = vpop.permute.xlu0 %1105
        %1107 = vrot.lane.b32.xlu0 %v1033, 4
        %v1108 = vpop.permute.xlu0 %1107
        %1109 = vrot.lane.b32.xlu0 %v1036, 4
        %v1110 = vpop.permute.xlu0 %1109
        %1111 = vrot.lane.b32.xlu0 %v1038, 4
        %v1112 = vpop.permute.xlu0 %1111
        %1113 = vrot.lane.b32.xlu0 %v1041, 4
        %v1114 = vpop.permute.xlu0 %1113
        %1115 = vrot.lane.b32.xlu0 %v1043, 4
        %v1116 = vpop.permute.xlu0 %1115
        %1117 = vrot.lane.b32.xlu0 %v1046, 4
        %v1118 = vpop.permute.xlu0 %1117
        %1119 = vrot.lane.b32.xlu0 %v1048, 4
        %v1120 = vpop.permute.xlu0 %1119
        %1121 = vrot.lane.b32.xlu0 %v1051, 4
        %v1122 = vpop.permute.xlu0 %1121
        %1123 = vrot.lane.b32.xlu0 %v1053, 4
        %v1124 = vpop.permute.xlu0 %1123
        %1125 = vrot.lane.b32.xlu0 %v1056, 4
        %v1126 = vpop.permute.xlu0 %1125
        %1127 = vrot.lane.b32.xlu0 %v1058, 4
        %v1128 = vpop.permute.xlu0 %1127
        %1129 = vrot.lane.b32.xlu0 %v1061, 4
        %v1130 = vpop.permute.xlu0 %1129
        %1131 = vrot.lane.b32.xlu0 %v1063, 4
        %v1132 = vpop.permute.xlu0 %1131
        %1133 = vrot.lane.b32.xlu0 %v1066, 4
        %v1134 = vpop.permute.xlu0 %1133
        %1135 = vrot.lane.b32.xlu0 %v1068, 4
        %v1136 = vpop.permute.xlu0 %1135
        %1137 = vrot.lane.b32.xlu0 %v1071, 4
        %v1138 = vpop.permute.xlu0 %1137
        %1139 = vrot.lane.b32.xlu0 %v1073, 4
        %v1140 = vpop.permute.xlu0 %1139
        %1141 = vrot.lane.b32.xlu0 %v1076, 4
        %v1142 = vpop.permute.xlu0 %1141
        %1143 = vrot.lane.b32.xlu0 %v1078, 4
        %v1144 = vpop.permute.xlu0 %1143
        %1145 = vrot.lane.b32.xlu0 %v1081, 4
        %v1146 = vpop.permute.xlu0 %1145
        %1147 = vrot.lane.b32.xlu0 %v1083, 4
        %v1148 = vpop.permute.xlu0 %1147
        %1149 = vrot.lane.b32.xlu0 %v1086, 4
        %v1150 = vpop.permute.xlu0 %1149
        %1151 = vrot.lane.b32.xlu0 %v1088, 4
        %v1152 = vpop.permute.xlu0 %1151
        %vm1185 = vcmask 1045504
        %v1186 = vrot.slane %v815, 2
        %v1187 = vrot.slane %v816, 2
        %v1188 = vsel %vm1185, %v1186, %v1187
        %v1189 = vrot.slane %v817, 2
        %v1190 = vsel %vm1185, %v1187, %v1189
        %v1191 = vrot.slane %v818, 2
        %v1192 = vrot.slane %v819, 2
        %v1193 = vsel %vm1185, %v1191, %v1192
        %v1194 = vrot.slane %v820, 2
        %v1195 = vsel %vm1185, %v1192, %v1194
        %v1196 = vrot.slane %v821, 2
        %v1197 = vrot.slane %v822, 2
        %v1198 = vsel %vm1185, %v1196, %v1197
        %v1199 = vrot.slane %v823, 2
        %v1200 = vsel %vm1185, %v1197, %v1199
        %v1201 = vrot.slane %v824, 2
        %v1202 = vrot.slane %v825, 2
        %v1203 = vsel %vm1185, %v1201, %v1202
        %v1204 = vrot.slane %v826, 2
        %v1205 = vsel %vm1185, %v1202, %v1204
        %v1206 = vrot.slane %v827, 2
        %v1207 = vrot.slane %v828, 2
        %v1208 = vsel %vm1185, %v1206, %v1207
        %v1209 = vrot.slane %v829, 2
        %v1210 = vsel %vm1185, %v1207, %v1209
        %v1211 = vrot.slane %v830, 2
        %v1212 = vrot.slane %v831, 2
        %v1213 = vsel %vm1185, %v1211, %v1212
        %v1214 = vrot.slane %v832, 2
        %v1215 = vsel %vm1185, %v1212, %v1214
        %v1216 = vrot.slane %v833, 2
        %v1217 = vrot.slane %v834, 2
        %v1218 = vsel %vm1185, %v1216, %v1217
        %v1219 = vrot.slane %v835, 2
        %v1220 = vsel %vm1185, %v1217, %v1219
        %v1221 = vrot.slane %v836, 2
        %v1222 = vrot.slane %v837, 2
        %v1223 = vsel %vm1185, %v1221, %v1222
        %v1224 = vrot.slane %v838, 2
        %v1225 = vsel %vm1185, %v1222, %v1224
        %v1226 = vrot.slane %v839, 2
        %v1227 = vrot.slane %v840, 2
        %v1228 = vsel %vm1185, %v1226, %v1227
        %v1229 = vrot.slane %v841, 2
        %v1230 = vsel %vm1185, %v1227, %v1229
        %v1231 = vrot.slane %v842, 2
        %v1232 = vrot.slane %v843, 2
        %v1233 = vsel %vm1185, %v1231, %v1232
        %v1234 = vrot.slane %v844, 2
        %v1235 = vsel %vm1185, %v1232, %v1234
        %v1236 = vrot.slane %v845, 2
        %v1237 = vrot.slane %v846, 2
        %v1238 = vsel %vm1185, %v1236, %v1237
        %v1239 = vrot.slane %v847, 2
        %v1240 = vsel %vm1185, %v1237, %v1239
        %v1241 = vrot.slane %v848, 2
        %v1242 = vrot.slane %v849, 2
        %v1243 = vsel %vm1185, %v1241, %v1242
        %v1244 = vrot.slane %v850, 2
        %v1245 = vsel %vm1185, %v1242, %v1244
        %v1246 = vrot.slane %v851, 2
        %v1247 = vrot.slane %v852, 2
        %v1248 = vsel %vm1185, %v1246, %v1247
        %v1249 = vrot.slane %v853, 2
        %v1250 = vsel %vm1185, %v1247, %v1249
        %v1251 = vrot.slane %v854, 2
        %v1252 = vrot.slane %v855, 2
        %v1253 = vsel %vm1185, %v1251, %v1252
        %v1254 = vrot.slane %v856, 2
        %v1255 = vsel %vm1185, %v1252, %v1254
        %v1256 = vrot.slane %v857, 2
        %v1257 = vrot.slane %v858, 2
        %v1258 = vsel %vm1185, %v1256, %v1257
        %v1259 = vrot.slane %v859, 2
        %v1260 = vsel %vm1185, %v1257, %v1259
        %v1261 = vrot.slane %v860, 2
        %v1262 = vrot.slane %v861, 2
        %v1263 = vsel %vm1185, %v1261, %v1262
        %v1264 = vrot.slane %v862, 2
        %v1265 = vsel %vm1185, %v1262, %v1264
        %1266 = vrot.lane.b32.xlu0 %v1188, 8
        %v1267 = vpop.permute.xlu0 %1266
        %1268 = vrot.lane.b32.xlu0 %v1190, 8
        %v1269 = vpop.permute.xlu0 %1268
        %1270 = vrot.lane.b32.xlu0 %v1193, 8
        %v1271 = vpop.permute.xlu0 %1270
        %1272 = vrot.lane.b32.xlu0 %v1195, 8
        %v1273 = vpop.permute.xlu0 %1272
        %1274 = vrot.lane.b32.xlu0 %v1198, 8
        %v1275 = vpop.permute.xlu0 %1274
        %1276 = vrot.lane.b32.xlu0 %v1200, 8
        %v1277 = vpop.permute.xlu0 %1276
        %1278 = vrot.lane.b32.xlu0 %v1203, 8
        %v1279 = vpop.permute.xlu0 %1278
        %1280 = vrot.lane.b32.xlu0 %v1205, 8
        %v1281 = vpop.permute.xlu0 %1280
        %1282 = vrot.lane.b32.xlu0 %v1208, 8
        %v1283 = vpop.permute.xlu0 %1282
        %1284 = vrot.lane.b32.xlu0 %v1210, 8
        %v1285 = vpop.permute.xlu0 %1284
        %1286 = vrot.lane.b32.xlu0 %v1213, 8
        %v1287 = vpop.permute.xlu0 %1286
        %1288 = vrot.lane.b32.xlu0 %v1215, 8
        %v1289 = vpop.permute.xlu0 %1288
        %1290 = vrot.lane.b32.xlu0 %v1218, 8
        %v1291 = vpop.permute.xlu0 %1290
        %1292 = vrot.lane.b32.xlu0 %v1220, 8
        %v1293 = vpop.permute.xlu0 %1292
        %1294 = vrot.lane.b32.xlu0 %v1223, 8
        %v1295 = vpop.permute.xlu0 %1294
        %1296 = vrot.lane.b32.xlu0 %v1225, 8
        %v1297 = vpop.permute.xlu0 %1296
        %1298 = vrot.lane.b32.xlu0 %v1228, 8
        %v1299 = vpop.permute.xlu0 %1298
        %1300 = vrot.lane.b32.xlu0 %v1230, 8
        %v1301 = vpop.permute.xlu0 %1300
        %1302 = vrot.lane.b32.xlu0 %v1233, 8
        %v1303 = vpop.permute.xlu0 %1302
        %1304 = vrot.lane.b32.xlu0 %v1235, 8
        %v1305 = vpop.permute.xlu0 %1304
        %1306 = vrot.lane.b32.xlu0 %v1238, 8
        %v1307 = vpop.permute.xlu0 %1306
        %1308 = vrot.lane.b32.xlu0 %v1240, 8
        %v1309 = vpop.permute.xlu0 %1308
        %1310 = vrot.lane.b32.xlu0 %v1243, 8
        %v1311 = vpop.permute.xlu0 %1310
        %1312 = vrot.lane.b32.xlu0 %v1245, 8
        %v1313 = vpop.permute.xlu0 %1312
        %1314 = vrot.lane.b32.xlu0 %v1248, 8
        %v1315 = vpop.permute.xlu0 %1314
        %1316 = vrot.lane.b32.xlu0 %v1250, 8
        %v1317 = vpop.permute.xlu0 %1316
        %1318 = vrot.lane.b32.xlu0 %v1253, 8
        %v1319 = vpop.permute.xlu0 %1318
        %1320 = vrot.lane.b32.xlu0 %v1255, 8
        %v1321 = vpop.permute.xlu0 %1320
        %1322 = vrot.lane.b32.xlu0 %v1258, 8
        %v1323 = vpop.permute.xlu0 %1322
        %1324 = vrot.lane.b32.xlu0 %v1260, 8
        %v1325 = vpop.permute.xlu0 %1324
        %1326 = vrot.lane.b32.xlu0 %v1263, 8
        %v1327 = vpop.permute.xlu0 %1326
        %1328 = vrot.lane.b32.xlu0 %v1265, 8
        %v1329 = vpop.permute.xlu0 %1328
        %1394 = vrot.lane.b32.xlu0 %v863, 12
        %v1395 = vpop.permute.xlu0 %1394
        %1396 = vrot.lane.b32.xlu0 %v864, 12
        %v1397 = vpop.permute.xlu0 %1396
        %1398 = vrot.lane.b32.xlu0 %v866, 12
        %v1399 = vpop.permute.xlu0 %1398
        %1400 = vrot.lane.b32.xlu0 %v867, 12
        %v1401 = vpop.permute.xlu0 %1400
        %1402 = vrot.lane.b32.xlu0 %v869, 12
        %v1403 = vpop.permute.xlu0 %1402
        %1404 = vrot.lane.b32.xlu0 %v870, 12
        %v1405 = vpop.permute.xlu0 %1404
        %1406 = vrot.lane.b32.xlu0 %v872, 12
        %v1407 = vpop.permute.xlu0 %1406
        %1408 = vrot.lane.b32.xlu0 %v873, 12
        %v1409 = vpop.permute.xlu0 %1408
        %1410 = vrot.lane.b32.xlu0 %v875, 12
        %v1411 = vpop.permute.xlu0 %1410
        %1412 = vrot.lane.b32.xlu0 %v876, 12
        %v1413 = vpop.permute.xlu0 %1412
        %1414 = vrot.lane.b32.xlu0 %v878, 12
        %v1415 = vpop.permute.xlu0 %1414
        %1416 = vrot.lane.b32.xlu0 %v879, 12
        %v1417 = vpop.permute.xlu0 %1416
        %1418 = vrot.lane.b32.xlu0 %v881, 12
        %v1419 = vpop.permute.xlu0 %1418
        %1420 = vrot.lane.b32.xlu0 %v882, 12
        %v1421 = vpop.permute.xlu0 %1420
        %1422 = vrot.lane.b32.xlu0 %v884, 12
        %v1423 = vpop.permute.xlu0 %1422
        %1424 = vrot.lane.b32.xlu0 %v885, 12
        %v1425 = vpop.permute.xlu0 %1424
        %1426 = vrot.lane.b32.xlu0 %v887, 12
        %v1427 = vpop.permute.xlu0 %1426
        %1428 = vrot.lane.b32.xlu0 %v888, 12
        %v1429 = vpop.permute.xlu0 %1428
        %1430 = vrot.lane.b32.xlu0 %v890, 12
        %v1431 = vpop.permute.xlu0 %1430
        %1432 = vrot.lane.b32.xlu0 %v891, 12
        %v1433 = vpop.permute.xlu0 %1432
        %1434 = vrot.lane.b32.xlu0 %v893, 12
        %v1435 = vpop.permute.xlu0 %1434
        %1436 = vrot.lane.b32.xlu0 %v894, 12
        %v1437 = vpop.permute.xlu0 %1436
        %1438 = vrot.lane.b32.xlu0 %v896, 12
        %v1439 = vpop.permute.xlu0 %1438
        %1440 = vrot.lane.b32.xlu0 %v897, 12
        %v1441 = vpop.permute.xlu0 %1440
        %1442 = vrot.lane.b32.xlu0 %v899, 12
        %v1443 = vpop.permute.xlu0 %1442
        %1444 = vrot.lane.b32.xlu0 %v900, 12
        %v1445 = vpop.permute.xlu0 %1444
        %1446 = vrot.lane.b32.xlu0 %v902, 12
        %v1447 = vpop.permute.xlu0 %1446
        %1448 = vrot.lane.b32.xlu0 %v903, 12
        %v1449 = vpop.permute.xlu0 %1448
        %1450 = vrot.lane.b32.xlu0 %v905, 12
        %v1451 = vpop.permute.xlu0 %1450
        %1452 = vrot.lane.b32.xlu0 %v906, 12
        %v1453 = vpop.permute.xlu0 %1452
        %1454 = vrot.lane.b32.xlu0 %v908, 12
        %v1455 = vpop.permute.xlu0 %1454
        %1456 = vrot.lane.b32.xlu0 %v909, 12
        %v1457 = vpop.permute.xlu0 %1456
        %v1506 = vrot.slane %v863, 1
        %v1507 = vrot.slane %v864, 1
        %v1508 = vsel %vm1008, %v1506, %v1507
        %v1509 = vrot.slane %v865, 1
        %v1510 = vsel %vm1008, %v1507, %v1509
        %v1511 = vrot.slane %v866, 1
        %v1512 = vrot.slane %v867, 1
        %v1513 = vsel %vm1008, %v1511, %v1512
        %v1514 = vrot.slane %v868, 1
        %v1515 = vsel %vm1008, %v1512, %v1514
        %v1516 = vrot.slane %v869, 1
        %v1517 = vrot.slane %v870, 1
        %v1518 = vsel %vm1008, %v1516, %v1517
        %v1519 = vrot.slane %v871, 1
        %v1520 = vsel %vm1008, %v1517, %v1519
        %v1521 = vrot.slane %v872, 1
        %v1522 = vrot.slane %v873, 1
        %v1523 = vsel %vm1008, %v1521, %v1522
        %v1524 = vrot.slane %v874, 1
        %v1525 = vsel %vm1008, %v1522, %v1524
        %v1526 = vrot.slane %v875, 1
        %v1527 = vrot.slane %v876, 1
        %v1528 = vsel %vm1008, %v1526, %v1527
        %v1529 = vrot.slane %v877, 1
        %v1530 = vsel %vm1008, %v1527, %v1529
        %v1531 = vrot.slane %v878, 1
        %v1532 = vrot.slane %v879, 1
        %v1533 = vsel %vm1008, %v1531, %v1532
        %v1534 = vrot.slane %v880, 1
        %v1535 = vsel %vm1008, %v1532, %v1534
        %v1536 = vrot.slane %v881, 1
        %v1537 = vrot.slane %v882, 1
        %v1538 = vsel %vm1008, %v1536, %v1537
        %v1539 = vrot.slane %v883, 1
        %v1540 = vsel %vm1008, %v1537, %v1539
        %v1541 = vrot.slane %v884, 1
        %v1542 = vrot.slane %v885, 1
        %v1543 = vsel %vm1008, %v1541, %v1542
        %v1544 = vrot.slane %v886, 1
        %v1545 = vsel %vm1008, %v1542, %v1544
        %v1546 = vrot.slane %v887, 1
        %v1547 = vrot.slane %v888, 1
        %v1548 = vsel %vm1008, %v1546, %v1547
        %v1549 = vrot.slane %v889, 1
        %v1550 = vsel %vm1008, %v1547, %v1549
        %v1551 = vrot.slane %v890, 1
        %v1552 = vrot.slane %v891, 1
        %v1553 = vsel %vm1008, %v1551, %v1552
        %v1554 = vrot.slane %v892, 1
        %v1555 = vsel %vm1008, %v1552, %v1554
        %v1556 = vrot.slane %v893, 1
        %v1557 = vrot.slane %v894, 1
        %v1558 = vsel %vm1008, %v1556, %v1557
        %v1559 = vrot.slane %v895, 1
        %v1560 = vsel %vm1008, %v1557, %v1559
        %v1561 = vrot.slane %v896, 1
        %v1562 = vrot.slane %v897, 1
        %v1563 = vsel %vm1008, %v1561, %v1562
        %v1564 = vrot.slane %v898, 1
        %v1565 = vsel %vm1008, %v1562, %v1564
        %v1566 = vrot.slane %v899, 1
        %v1567 = vrot.slane %v900, 1
        %v1568 = vsel %vm1008, %v1566, %v1567
        %v1569 = vrot.slane %v901, 1
        %v1570 = vsel %vm1008, %v1567, %v1569
        %v1571 = vrot.slane %v902, 1
        %v1572 = vrot.slane %v903, 1
        %v1573 = vsel %vm1008, %v1571, %v1572
        %v1574 = vrot.slane %v904, 1
        %v1575 = vsel %vm1008, %v1572, %v1574
        %v1576 = vrot.slane %v905, 1
        %v1577 = vrot.slane %v906, 1
        %v1578 = vsel %vm1008, %v1576, %v1577
        %v1579 = vrot.slane %v907, 1
        %v1580 = vsel %vm1008, %v1577, %v1579
        %v1581 = vrot.slane %v908, 1
        %v1582 = vrot.slane %v909, 1
        %v1583 = vsel %vm1008, %v1581, %v1582
        %v1584 = vrot.slane %v910, 1
        %v1585 = vsel %vm1008, %v1582, %v1584
        %1586 = vrot.lane.b32.xlu0 %v1508, 16
        %v1587 = vpop.permute.xlu0 %1586
        %1588 = vrot.lane.b32.xlu0 %v1510, 16
        %v1589 = vpop.permute.xlu0 %1588
        %1590 = vrot.lane.b32.xlu0 %v1513, 16
        %v1591 = vpop.permute.xlu0 %1590
        %1592 = vrot.lane.b32.xlu0 %v1515, 16
        %v1593 = vpop.permute.xlu0 %1592
        %1594 = vrot.lane.b32.xlu0 %v1518, 16
        %v1595 = vpop.permute.xlu0 %1594
        %1596 = vrot.lane.b32.xlu0 %v1520, 16
        %v1597 = vpop.permute.xlu0 %1596
        %1598 = vrot.lane.b32.xlu0 %v1523, 16
        %v1599 = vpop.permute.xlu0 %1598
        %1600 = vrot.lane.b32.xlu0 %v1525, 16
        %v1601 = vpop.permute.xlu0 %1600
        %1602 = vrot.lane.b32.xlu0 %v1528, 16
        %v1603 = vpop.permute.xlu0 %1602
        %1604 = vrot.lane.b32.xlu0 %v1530, 16
        %v1605 = vpop.permute.xlu0 %1604
        %1606 = vrot.lane.b32.xlu0 %v1533, 16
        %v1607 = vpop.permute.xlu0 %1606
        %1608 = vrot.lane.b32.xlu0 %v1535, 16
        %v1609 = vpop.permute.xlu0 %1608
        %1610 = vrot.lane.b32.xlu0 %v1538, 16
        %v1611 = vpop.permute.xlu0 %1610
        %1612 = vrot.lane.b32.xlu0 %v1540, 16
        %v1613 = vpop.permute.xlu0 %1612
        %1614 = vrot.lane.b32.xlu0 %v1543, 16
        %v1615 = vpop.permute.xlu0 %1614
        %1616 = vrot.lane.b32.xlu0 %v1545, 16
        %v1617 = vpop.permute.xlu0 %1616
        %1618 = vrot.lane.b32.xlu0 %v1548, 16
        %v1619 = vpop.permute.xlu0 %1618
        %1620 = vrot.lane.b32.xlu0 %v1550, 16
        %v1621 = vpop.permute.xlu0 %1620
        %1622 = vrot.lane.b32.xlu0 %v1553, 16
        %v1623 = vpop.permute.xlu0 %1622
        %1624 = vrot.lane.b32.xlu0 %v1555, 16
        %v1625 = vpop.permute.xlu0 %1624
        %1626 = vrot.lane.b32.xlu0 %v1558, 16
        %v1627 = vpop.permute.xlu0 %1626
        %1628 = vrot.lane.b32.xlu0 %v1560, 16
        %v1629 = vpop.permute.xlu0 %1628
        %1630 = vrot.lane.b32.xlu0 %v1563, 16
        %v1631 = vpop.permute.xlu0 %1630
        %1632 = vrot.lane.b32.xlu0 %v1565, 16
        %v1633 = vpop.permute.xlu0 %1632
        %1634 = vrot.lane.b32.xlu0 %v1568, 16
        %v1635 = vpop.permute.xlu0 %1634
        %1636 = vrot.lane.b32.xlu0 %v1570, 16
        %v1637 = vpop.permute.xlu0 %1636
        %1638 = vrot.lane.b32.xlu0 %v1573, 16
        %v1639 = vpop.permute.xlu0 %1638
        %1640 = vrot.lane.b32.xlu0 %v1575, 16
        %v1641 = vpop.permute.xlu0 %1640
        %1642 = vrot.lane.b32.xlu0 %v1578, 16
        %v1643 = vpop.permute.xlu0 %1642
        %1644 = vrot.lane.b32.xlu0 %v1580, 16
        %v1645 = vpop.permute.xlu0 %1644
        %1646 = vrot.lane.b32.xlu0 %v1583, 16
        %v1647 = vpop.permute.xlu0 %1646
        %1648 = vrot.lane.b32.xlu0 %v1585, 16
        %v1649 = vpop.permute.xlu0 %1648
        %v1682 = vrot.slane %v863, 2
        %v1683 = vrot.slane %v864, 2
        %v1684 = vsel %vm1185, %v1682, %v1683
        %v1685 = vrot.slane %v865, 2
        %v1686 = vsel %vm1185, %v1683, %v1685
        %v1687 = vrot.slane %v866, 2
        %v1688 = vrot.slane %v867, 2
        %v1689 = vsel %vm1185, %v1687, %v1688
        %v1690 = vrot.slane %v868, 2
        %v1691 = vsel %vm1185, %v1688, %v1690
        %v1692 = vrot.slane %v869, 2
        %v1693 = vrot.slane %v870, 2
        %v1694 = vsel %vm1185, %v1692, %v1693
        %v1695 = vrot.slane %v871, 2
        %v1696 = vsel %vm1185, %v1693, %v1695
        %v1697 = vrot.slane %v872, 2
        %v1698 = vrot.slane %v873, 2
        %v1699 = vsel %vm1185, %v1697, %v1698
        %v1700 = vrot.slane %v874, 2
        %v1701 = vsel %vm1185, %v1698, %v1700
        %v1702 = vrot.slane %v875, 2
        %v1703 = vrot.slane %v876, 2
        %v1704 = vsel %vm1185, %v1702, %v1703
        %v1705 = vrot.slane %v877, 2
        %v1706 = vsel %vm1185, %v1703, %v1705
        %v1707 = vrot.slane %v878, 2
        %v1708 = vrot.slane %v879, 2
        %v1709 = vsel %vm1185, %v1707, %v1708
        %v1710 = vrot.slane %v880, 2
        %v1711 = vsel %vm1185, %v1708, %v1710
        %v1712 = vrot.slane %v881, 2
        %v1713 = vrot.slane %v882, 2
        %v1714 = vsel %vm1185, %v1712, %v1713
        %v1715 = vrot.slane %v883, 2
        %v1716 = vsel %vm1185, %v1713, %v1715
        %v1717 = vrot.slane %v884, 2
        %v1718 = vrot.slane %v885, 2
        %v1719 = vsel %vm1185, %v1717, %v1718
        %v1720 = vrot.slane %v886, 2
        %v1721 = vsel %vm1185, %v1718, %v1720
        %v1722 = vrot.slane %v887, 2
        %v1723 = vrot.slane %v888, 2
        %v1724 = vsel %vm1185, %v1722, %v1723
        %v1725 = vrot.slane %v889, 2
        %v1726 = vsel %vm1185, %v1723, %v1725
        %v1727 = vrot.slane %v890, 2
        %v1728 = vrot.slane %v891, 2
        %v1729 = vsel %vm1185, %v1727, %v1728
        %v1730 = vrot.slane %v892, 2
        %v1731 = vsel %vm1185, %v1728, %v1730
        %v1732 = vrot.slane %v893, 2
        %v1733 = vrot.slane %v894, 2
        %v1734 = vsel %vm1185, %v1732, %v1733
        %v1735 = vrot.slane %v895, 2
        %v1736 = vsel %vm1185, %v1733, %v1735
        %v1737 = vrot.slane %v896, 2
        %v1738 = vrot.slane %v897, 2
        %v1739 = vsel %vm1185, %v1737, %v1738
        %v1740 = vrot.slane %v898, 2
        %v1741 = vsel %vm1185, %v1738, %v1740
        %v1742 = vrot.slane %v899, 2
        %v1743 = vrot.slane %v900, 2
        %v1744 = vsel %vm1185, %v1742, %v1743
        %v1745 = vrot.slane %v901, 2
        %v1746 = vsel %vm1185, %v1743, %v1745
        %v1747 = vrot.slane %v902, 2
        %v1748 = vrot.slane %v903, 2
        %v1749 = vsel %vm1185, %v1747, %v1748
        %v1750 = vrot.slane %v904, 2
        %v1751 = vsel %vm1185, %v1748, %v1750
        %v1752 = vrot.slane %v905, 2
        %v1753 = vrot.slane %v906, 2
        %v1754 = vsel %vm1185, %v1752, %v1753
        %v1755 = vrot.slane %v907, 2
        %v1756 = vsel %vm1185, %v1753, %v1755
        %v1757 = vrot.slane %v908, 2
        %v1758 = vrot.slane %v909, 2
        %v1759 = vsel %vm1185, %v1757, %v1758
        %v1760 = vrot.slane %v910, 2
        %v1761 = vsel %vm1185, %v1758, %v1760
        %1762 = vrot.lane.b32.xlu0 %v1684, 20
        %v1763 = vpop.permute.xlu0 %1762
        %1764 = vrot.lane.b32.xlu0 %v1686, 20
        %v1765 = vpop.permute.xlu0 %1764
        %1766 = vrot.lane.b32.xlu0 %v1689, 20
        %v1767 = vpop.permute.xlu0 %1766
        %1768 = vrot.lane.b32.xlu0 %v1691, 20
        %v1769 = vpop.permute.xlu0 %1768
        %1770 = vrot.lane.b32.xlu0 %v1694, 20
        %v1771 = vpop.permute.xlu0 %1770
        %1772 = vrot.lane.b32.xlu0 %v1696, 20
        %v1773 = vpop.permute.xlu0 %1772
        %1774 = vrot.lane.b32.xlu0 %v1699, 20
        %v1775 = vpop.permute.xlu0 %1774
        %1776 = vrot.lane.b32.xlu0 %v1701, 20
        %v1777 = vpop.permute.xlu0 %1776
        %1778 = vrot.lane.b32.xlu0 %v1704, 20
        %v1779 = vpop.permute.xlu0 %1778
        %1780 = vrot.lane.b32.xlu0 %v1706, 20
        %v1781 = vpop.permute.xlu0 %1780
        %1782 = vrot.lane.b32.xlu0 %v1709, 20
        %v1783 = vpop.permute.xlu0 %1782
        %1784 = vrot.lane.b32.xlu0 %v1711, 20
        %v1785 = vpop.permute.xlu0 %1784
        %1786 = vrot.lane.b32.xlu0 %v1714, 20
        %v1787 = vpop.permute.xlu0 %1786
        %1788 = vrot.lane.b32.xlu0 %v1716, 20
        %v1789 = vpop.permute.xlu0 %1788
        %1790 = vrot.lane.b32.xlu0 %v1719, 20
        %v1791 = vpop.permute.xlu0 %1790
        %1792 = vrot.lane.b32.xlu0 %v1721, 20
        %v1793 = vpop.permute.xlu0 %1792
        %1794 = vrot.lane.b32.xlu0 %v1724, 20
        %v1795 = vpop.permute.xlu0 %1794
        %1796 = vrot.lane.b32.xlu0 %v1726, 20
        %v1797 = vpop.permute.xlu0 %1796
        %1798 = vrot.lane.b32.xlu0 %v1729, 20
        %v1799 = vpop.permute.xlu0 %1798
        %1800 = vrot.lane.b32.xlu0 %v1731, 20
        %v1801 = vpop.permute.xlu0 %1800
        %1802 = vrot.lane.b32.xlu0 %v1734, 20
        %v1803 = vpop.permute.xlu0 %1802
        %1804 = vrot.lane.b32.xlu0 %v1736, 20
        %v1805 = vpop.permute.xlu0 %1804
        %1806 = vrot.lane.b32.xlu0 %v1739, 20
        %v1807 = vpop.permute.xlu0 %1806
        %1808 = vrot.lane.b32.xlu0 %v1741, 20
        %v1809 = vpop.permute.xlu0 %1808
        %1810 = vrot.lane.b32.xlu0 %v1744, 20
        %v1811 = vpop.permute.xlu0 %1810
        %1812 = vrot.lane.b32.xlu0 %v1746, 20
        %v1813 = vpop.permute.xlu0 %1812
        %1814 = vrot.lane.b32.xlu0 %v1749, 20
        %v1815 = vpop.permute.xlu0 %1814
        %1816 = vrot.lane.b32.xlu0 %v1751, 20
        %v1817 = vpop.permute.xlu0 %1816
        %1818 = vrot.lane.b32.xlu0 %v1754, 20
        %v1819 = vpop.permute.xlu0 %1818
        %1820 = vrot.lane.b32.xlu0 %v1756, 20
        %v1821 = vpop.permute.xlu0 %1820
        %1822 = vrot.lane.b32.xlu0 %v1759, 20
        %v1823 = vpop.permute.xlu0 %1822
        %1824 = vrot.lane.b32.xlu0 %v1761, 20
        %v1825 = vpop.permute.xlu0 %1824
        %1890 = vrot.lane.b32.xlu0 %v912, 24
        %v1891 = vpop.permute.xlu0 %1890
        %1892 = vrot.lane.b32.xlu0 %v913, 24
        %v1893 = vpop.permute.xlu0 %1892
        %1894 = vrot.lane.b32.xlu0 %v915, 24
        %v1895 = vpop.permute.xlu0 %1894
        %1896 = vrot.lane.b32.xlu0 %v916, 24
        %v1897 = vpop.permute.xlu0 %1896
        %1898 = vrot.lane.b32.xlu0 %v918, 24
        %v1899 = vpop.permute.xlu0 %1898
        %1900 = vrot.lane.b32.xlu0 %v919, 24
        %v1901 = vpop.permute.xlu0 %1900
        %1902 = vrot.lane.b32.xlu0 %v921, 24
        %v1903 = vpop.permute.xlu0 %1902
        %1904 = vrot.lane.b32.xlu0 %v922, 24
        %v1905 = vpop.permute.xlu0 %1904
        %1906 = vrot.lane.b32.xlu0 %v924, 24
        %v1907 = vpop.permute.xlu0 %1906
        %1908 = vrot.lane.b32.xlu0 %v925, 24
        %v1909 = vpop.permute.xlu0 %1908
        %1910 = vrot.lane.b32.xlu0 %v927, 24
        %v1911 = vpop.permute.xlu0 %1910
        %1912 = vrot.lane.b32.xlu0 %v928, 24
        %v1913 = vpop.permute.xlu0 %1912
        %1914 = vrot.lane.b32.xlu0 %v930, 24
        %v1915 = vpop.permute.xlu0 %1914
        %1916 = vrot.lane.b32.xlu0 %v931, 24
        %v1917 = vpop.permute.xlu0 %1916
        %1918 = vrot.lane.b32.xlu0 %v933, 24
        %v1919 = vpop.permute.xlu0 %1918
        %1920 = vrot.lane.b32.xlu0 %v934, 24
        %v1921 = vpop.permute.xlu0 %1920
        %1922 = vrot.lane.b32.xlu0 %v936, 24
        %v1923 = vpop.permute.xlu0 %1922
        %1924 = vrot.lane.b32.xlu0 %v937, 24
        %v1925 = vpop.permute.xlu0 %1924
        %1926 = vrot.lane.b32.xlu0 %v939, 24
        %v1927 = vpop.permute.xlu0 %1926
        %1928 = vrot.lane.b32.xlu0 %v940, 24
        %v1929 = vpop.permute.xlu0 %1928
        %1930 = vrot.lane.b32.xlu0 %v942, 24
        %v1931 = vpop.permute.xlu0 %1930
        %1932 = vrot.lane.b32.xlu0 %v943, 24
        %v1933 = vpop.permute.xlu0 %1932
        %1934 = vrot.lane.b32.xlu0 %v945, 24
        %v1935 = vpop.permute.xlu0 %1934
        %1936 = vrot.lane.b32.xlu0 %v946, 24
        %v1937 = vpop.permute.xlu0 %1936
        %1938 = vrot.lane.b32.xlu0 %v948, 24
        %v1939 = vpop.permute.xlu0 %1938
        %1940 = vrot.lane.b32.xlu0 %v949, 24
        %v1941 = vpop.permute.xlu0 %1940
        %1942 = vrot.lane.b32.xlu0 %v951, 24
        %v1943 = vpop.permute.xlu0 %1942
        %1944 = vrot.lane.b32.xlu0 %v952, 24
        %v1945 = vpop.permute.xlu0 %1944
        %1946 = vrot.lane.b32.xlu0 %v954, 24
        %v1947 = vpop.permute.xlu0 %1946
        %1948 = vrot.lane.b32.xlu0 %v955, 24
        %v1949 = vpop.permute.xlu0 %1948
        %1950 = vrot.lane.b32.xlu0 %v957, 24
        %v1951 = vpop.permute.xlu0 %1950
        %1952 = vrot.lane.b32.xlu0 %v958, 24
        %v1953 = vpop.permute.xlu0 %1952
        %v2002 = vrot.slane %v912, 1
        %v2003 = vrot.slane %v913, 1
        %v2004 = vsel %vm1008, %v2002, %v2003
        %v2005 = vrot.slane %v914, 1
        %v2006 = vsel %vm1008, %v2003, %v2005
        %v2007 = vrot.slane %v915, 1
        %v2008 = vrot.slane %v916, 1
        %v2009 = vsel %vm1008, %v2007, %v2008
        %v2010 = vrot.slane %v917, 1
        %v2011 = vsel %vm1008, %v2008, %v2010
        %v2012 = vrot.slane %v918, 1
        %v2013 = vrot.slane %v919, 1
        %v2014 = vsel %vm1008, %v2012, %v2013
        %v2015 = vrot.slane %v920, 1
        %v2016 = vsel %vm1008, %v2013, %v2015
        %v2017 = vrot.slane %v921, 1
        %v2018 = vrot.slane %v922, 1
        %v2019 = vsel %vm1008, %v2017, %v2018
        %v2020 = vrot.slane %v923, 1
        %v2021 = vsel %vm1008, %v2018, %v2020
        %v2022 = vrot.slane %v924, 1
        %v2023 = vrot.slane %v925, 1
        %v2024 = vsel %vm1008, %v2022, %v2023
        %v2025 = vrot.slane %v926, 1
        %v2026 = vsel %vm1008, %v2023, %v2025
        %v2027 = vrot.slane %v927, 1
        %v2028 = vrot.slane %v928, 1
        %v2029 = vsel %vm1008, %v2027, %v2028
        %v2030 = vrot.slane %v929, 1
        %v2031 = vsel %vm1008, %v2028, %v2030
        %v2032 = vrot.slane %v930, 1
        %v2033 = vrot.slane %v931, 1
        %v2034 = vsel %vm1008, %v2032, %v2033
        %v2035 = vrot.slane %v932, 1
        %v2036 = vsel %vm1008, %v2033, %v2035
        %v2037 = vrot.slane %v933, 1
        %v2038 = vrot.slane %v934, 1
        %v2039 = vsel %vm1008, %v2037, %v2038
        %v2040 = vrot.slane %v935, 1
        %v2041 = vsel %vm1008, %v2038, %v2040
        %v2042 = vrot.slane %v936, 1
        %v2043 = vrot.slane %v937, 1
        %v2044 = vsel %vm1008, %v2042, %v2043
        %v2045 = vrot.slane %v938, 1
        %v2046 = vsel %vm1008, %v2043, %v2045
        %v2047 = vrot.slane %v939, 1
        %v2048 = vrot.slane %v940, 1
        %v2049 = vsel %vm1008, %v2047, %v2048
        %v2050 = vrot.slane %v941, 1
        %v2051 = vsel %vm1008, %v2048, %v2050
        %v2052 = vrot.slane %v942, 1
        %v2053 = vrot.slane %v943, 1
        %v2054 = vsel %vm1008, %v2052, %v2053
        %v2055 = vrot.slane %v944, 1
        %v2056 = vsel %vm1008, %v2053, %v2055
        %v2057 = vrot.slane %v945, 1
        %v2058 = vrot.slane %v946, 1
        %v2059 = vsel %vm1008, %v2057, %v2058
        %v2060 = vrot.slane %v947, 1
        %v2061 = vsel %vm1008, %v2058, %v2060
        %v2062 = vrot.slane %v948, 1
        %v2063 = vrot.slane %v949, 1
        %v2064 = vsel %vm1008, %v2062, %v2063
        %v2065 = vrot.slane %v950, 1
        %v2066 = vsel %vm1008, %v2063, %v2065
        %v2067 = vrot.slane %v951, 1
        %v2068 = vrot.slane %v952, 1
        %v2069 = vsel %vm1008, %v2067, %v2068
        %v2070 = vrot.slane %v953, 1
        %v2071 = vsel %vm1008, %v2068, %v2070
        %v2072 = vrot.slane %v954, 1
        %v2073 = vrot.slane %v955, 1
        %v2074 = vsel %vm1008, %v2072, %v2073
        %v2075 = vrot.slane %v956, 1
        %v2076 = vsel %vm1008, %v2073, %v2075
        %v2077 = vrot.slane %v957, 1
        %v2078 = vrot.slane %v958, 1
        %v2079 = vsel %vm1008, %v2077, %v2078
        %v2080 = vrot.slane %v959, 1
        %v2081 = vsel %vm1008, %v2078, %v2080
        %2082 = vrot.lane.b32.xlu0 %v2004, 28
        %v2083 = vpop.permute.xlu0 %2082
        %2084 = vrot.lane.b32.xlu0 %v2006, 28
        %v2085 = vpop.permute.xlu0 %2084
        %2086 = vrot.lane.b32.xlu0 %v2009, 28
        %v2087 = vpop.permute.xlu0 %2086
        %2088 = vrot.lane.b32.xlu0 %v2011, 28
        %v2089 = vpop.permute.xlu0 %2088
        %2090 = vrot.lane.b32.xlu0 %v2014, 28
        %v2091 = vpop.permute.xlu0 %2090
        %2092 = vrot.lane.b32.xlu0 %v2016, 28
        %v2093 = vpop.permute.xlu0 %2092
        %2094 = vrot.lane.b32.xlu0 %v2019, 28
        %v2095 = vpop.permute.xlu0 %2094
        %2096 = vrot.lane.b32.xlu0 %v2021, 28
        %v2097 = vpop.permute.xlu0 %2096
        %2098 = vrot.lane.b32.xlu0 %v2024, 28
        %v2099 = vpop.permute.xlu0 %2098
        %2100 = vrot.lane.b32.xlu0 %v2026, 28
        %v2101 = vpop.permute.xlu0 %2100
        %2102 = vrot.lane.b32.xlu0 %v2029, 28
        %v2103 = vpop.permute.xlu0 %2102
        %2104 = vrot.lane.b32.xlu0 %v2031, 28
        %v2105 = vpop.permute.xlu0 %2104
        %2106 = vrot.lane.b32.xlu0 %v2034, 28
        %v2107 = vpop.permute.xlu0 %2106
        %2108 = vrot.lane.b32.xlu0 %v2036, 28
        %v2109 = vpop.permute.xlu0 %2108
        %2110 = vrot.lane.b32.xlu0 %v2039, 28
        %v2111 = vpop.permute.xlu0 %2110
        %2112 = vrot.lane.b32.xlu0 %v2041, 28
        %v2113 = vpop.permute.xlu0 %2112
        %2114 = vrot.lane.b32.xlu0 %v2044, 28
        %v2115 = vpop.permute.xlu0 %2114
        %2116 = vrot.lane.b32.xlu0 %v2046, 28
        %v2117 = vpop.permute.xlu0 %2116
        %2118 = vrot.lane.b32.xlu0 %v2049, 28
        %v2119 = vpop.permute.xlu0 %2118
        %2120 = vrot.lane.b32.xlu0 %v2051, 28
        %v2121 = vpop.permute.xlu0 %2120
        %2122 = vrot.lane.b32.xlu0 %v2054, 28
        %v2123 = vpop.permute.xlu0 %2122
        %2124 = vrot.lane.b32.xlu0 %v2056, 28
        %v2125 = vpop.permute.xlu0 %2124
        %2126 = vrot.lane.b32.xlu0 %v2059, 28
        %v2127 = vpop.permute.xlu0 %2126
        %2128 = vrot.lane.b32.xlu0 %v2061, 28
        %v2129 = vpop.permute.xlu0 %2128
        %2130 = vrot.lane.b32.xlu0 %v2064, 28
        %v2131 = vpop.permute.xlu0 %2130
        %2132 = vrot.lane.b32.xlu0 %v2066, 28
        %v2133 = vpop.permute.xlu0 %2132
        %2134 = vrot.lane.b32.xlu0 %v2069, 28
        %v2135 = vpop.permute.xlu0 %2134
        %2136 = vrot.lane.b32.xlu0 %v2071, 28
        %v2137 = vpop.permute.xlu0 %2136
        %2138 = vrot.lane.b32.xlu0 %v2074, 28
        %v2139 = vpop.permute.xlu0 %2138
        %2140 = vrot.lane.b32.xlu0 %v2076, 28
        %v2141 = vpop.permute.xlu0 %2140
        %2142 = vrot.lane.b32.xlu0 %v2079, 28
        %v2143 = vpop.permute.xlu0 %2142
        %2144 = vrot.lane.b32.xlu0 %v2081, 28
        %v2145 = vpop.permute.xlu0 %2144
        %v2178 = vrot.slane %v912, 2
        %v2179 = vrot.slane %v913, 2
        %v2180 = vsel %vm1185, %v2178, %v2179
        %v2181 = vrot.slane %v914, 2
        %v2182 = vsel %vm1185, %v2179, %v2181
        %v2183 = vrot.slane %v915, 2
        %v2184 = vrot.slane %v916, 2
        %v2185 = vsel %vm1185, %v2183, %v2184
        %v2186 = vrot.slane %v917, 2
        %v2187 = vsel %vm1185, %v2184, %v2186
        %v2188 = vrot.slane %v918, 2
        %v2189 = vrot.slane %v919, 2
        %v2190 = vsel %vm1185, %v2188, %v2189
        %v2191 = vrot.slane %v920, 2
        %v2192 = vsel %vm1185, %v2189, %v2191
        %v2193 = vrot.slane %v921, 2
        %v2194 = vrot.slane %v922, 2
        %v2195 = vsel %vm1185, %v2193, %v2194
        %v2196 = vrot.slane %v923, 2
        %v2197 = vsel %vm1185, %v2194, %v2196
        %v2198 = vrot.slane %v924, 2
        %v2199 = vrot.slane %v925, 2
        %v2200 = vsel %vm1185, %v2198, %v2199
        %v2201 = vrot.slane %v926, 2
        %v2202 = vsel %vm1185, %v2199, %v2201
        %v2203 = vrot.slane %v927, 2
        %v2204 = vrot.slane %v928, 2
        %v2205 = vsel %vm1185, %v2203, %v2204
        %v2206 = vrot.slane %v929, 2
        %v2207 = vsel %vm1185, %v2204, %v2206
        %v2208 = vrot.slane %v930, 2
        %v2209 = vrot.slane %v931, 2
        %v2210 = vsel %vm1185, %v2208, %v2209
        %v2211 = vrot.slane %v932, 2
        %v2212 = vsel %vm1185, %v2209, %v2211
        %v2213 = vrot.slane %v933, 2
        %v2214 = vrot.slane %v934, 2
        %v2215 = vsel %vm1185, %v2213, %v2214
        %v2216 = vrot.slane %v935, 2
        %v2217 = vsel %vm1185, %v2214, %v2216
        %v2218 = vrot.slane %v936, 2
        %v2219 = vrot.slane %v937, 2
        %v2220 = vsel %vm1185, %v2218, %v2219
        %v2221 = vrot.slane %v938, 2
        %v2222 = vsel %vm1185, %v2219, %v2221
        %v2223 = vrot.slane %v939, 2
        %v2224 = vrot.slane %v940, 2
        %v2225 = vsel %vm1185, %v2223, %v2224
        %v2226 = vrot.slane %v941, 2
        %v2227 = vsel %vm1185, %v2224, %v2226
        %v2228 = vrot.slane %v942, 2
        %v2229 = vrot.slane %v943, 2
        %v2230 = vsel %vm1185, %v2228, %v2229
        %v2231 = vrot.slane %v944, 2
        %v2232 = vsel %vm1185, %v2229, %v2231
        %v2233 = vrot.slane %v945, 2
        %v2234 = vrot.slane %v946, 2
        %v2235 = vsel %vm1185, %v2233, %v2234
        %v2236 = vrot.slane %v947, 2
        %v2237 = vsel %vm1185, %v2234, %v2236
        %v2238 = vrot.slane %v948, 2
        %v2239 = vrot.slane %v949, 2
        %v2240 = vsel %vm1185, %v2238, %v2239
        %v2241 = vrot.slane %v950, 2
        %v2242 = vsel %vm1185, %v2239, %v2241
        %v2243 = vrot.slane %v951, 2
        %v2244 = vrot.slane %v952, 2
        %v2245 = vsel %vm1185, %v2243, %v2244
        %v2246 = vrot.slane %v953, 2
        %v2247 = vsel %vm1185, %v2244, %v2246
        %v2248 = vrot.slane %v954, 2
        %v2249 = vrot.slane %v955, 2
        %v2250 = vsel %vm1185, %v2248, %v2249
        %v2251 = vrot.slane %v956, 2
        %v2252 = vsel %vm1185, %v2249, %v2251
        %v2253 = vrot.slane %v957, 2
        %v2254 = vrot.slane %v958, 2
        %v2255 = vsel %vm1185, %v2253, %v2254
        %v2256 = vrot.slane %v959, 2
        %v2257 = vsel %vm1185, %v2254, %v2256
        %2258 = vrot.lane.b32.xlu0 %v2180, 32
        %v2259 = vpop.permute.xlu0 %2258
        %2260 = vrot.lane.b32.xlu0 %v2182, 32
        %v2261 = vpop.permute.xlu0 %2260
        %2262 = vrot.lane.b32.xlu0 %v2185, 32
        %v2263 = vpop.permute.xlu0 %2262
        %2264 = vrot.lane.b32.xlu0 %v2187, 32
        %v2265 = vpop.permute.xlu0 %2264
        %2266 = vrot.lane.b32.xlu0 %v2190, 32
        %v2267 = vpop.permute.xlu0 %2266
        %2268 = vrot.lane.b32.xlu0 %v2192, 32
        %v2269 = vpop.permute.xlu0 %2268
        %2270 = vrot.lane.b32.xlu0 %v2195, 32
        %v2271 = vpop.permute.xlu0 %2270
        %2272 = vrot.lane.b32.xlu0 %v2197, 32
        %v2273 = vpop.permute.xlu0 %2272
        %2274 = vrot.lane.b32.xlu0 %v2200, 32
        %v2275 = vpop.permute.xlu0 %2274
        %2276 = vrot.lane.b32.xlu0 %v2202, 32
        %v2277 = vpop.permute.xlu0 %2276
        %2278 = vrot.lane.b32.xlu0 %v2205, 32
        %v2279 = vpop.permute.xlu0 %2278
        %2280 = vrot.lane.b32.xlu0 %v2207, 32
        %v2281 = vpop.permute.xlu0 %2280
        %2282 = vrot.lane.b32.xlu0 %v2210, 32
        %v2283 = vpop.permute.xlu0 %2282
        %2284 = vrot.lane.b32.xlu0 %v2212, 32
        %v2285 = vpop.permute.xlu0 %2284
        %2286 = vrot.lane.b32.xlu0 %v2215, 32
        %v2287 = vpop.permute.xlu0 %2286
        %2288 = vrot.lane.b32.xlu0 %v2217, 32
        %v2289 = vpop.permute.xlu0 %2288
        %2290 = vrot.lane.b32.xlu0 %v2220, 32
        %v2291 = vpop.permute.xlu0 %2290
        %2292 = vrot.lane.b32.xlu0 %v2222, 32
        %v2293 = vpop.permute.xlu0 %2292
        %2294 = vrot.lane.b32.xlu0 %v2225, 32
        %v2295 = vpop.permute.xlu0 %2294
        %2296 = vrot.lane.b32.xlu0 %v2227, 32
        %v2297 = vpop.permute.xlu0 %2296
        %2298 = vrot.lane.b32.xlu0 %v2230, 32
        %v2299 = vpop.permute.xlu0 %2298
        %2300 = vrot.lane.b32.xlu0 %v2232, 32
        %v2301 = vpop.permute.xlu0 %2300
        %2302 = vrot.lane.b32.xlu0 %v2235, 32
        %v2303 = vpop.permute.xlu0 %2302
        %2304 = vrot.lane.b32.xlu0 %v2237, 32
        %v2305 = vpop.permute.xlu0 %2304
        %2306 = vrot.lane.b32.xlu0 %v2240, 32
        %v2307 = vpop.permute.xlu0 %2306
        %2308 = vrot.lane.b32.xlu0 %v2242, 32
        %v2309 = vpop.permute.xlu0 %2308
        %2310 = vrot.lane.b32.xlu0 %v2245, 32
        %v2311 = vpop.permute.xlu0 %2310
        %2312 = vrot.lane.b32.xlu0 %v2247, 32
        %v2313 = vpop.permute.xlu0 %2312
        %2314 = vrot.lane.b32.xlu0 %v2250, 32
        %v2315 = vpop.permute.xlu0 %2314
        %2316 = vrot.lane.b32.xlu0 %v2252, 32
        %v2317 = vpop.permute.xlu0 %2316
        %2318 = vrot.lane.b32.xlu0 %v2255, 32
        %v2319 = vpop.permute.xlu0 %2318
        %2320 = vrot.lane.b32.xlu0 %v2257, 32
        %v2321 = vpop.permute.xlu0 %2320
        %v2354 = vsel %vm423, %v815, %v1090
        %v2355 = vsel %vm423, %v816, %v1092
        %v2356 = vsel %vm423, %v818, %v1094
        %v2357 = vsel %vm423, %v819, %v1096
        %v2358 = vsel %vm423, %v821, %v1098
        %v2359 = vsel %vm423, %v822, %v1100
        %v2360 = vsel %vm423, %v824, %v1102
        %v2361 = vsel %vm423, %v825, %v1104
        %v2362 = vsel %vm423, %v827, %v1106
        %v2363 = vsel %vm423, %v828, %v1108
        %v2364 = vsel %vm423, %v830, %v1110
        %v2365 = vsel %vm423, %v831, %v1112
        %v2366 = vsel %vm423, %v833, %v1114
        %v2367 = vsel %vm423, %v834, %v1116
        %v2368 = vsel %vm423, %v836, %v1118
        %v2369 = vsel %vm423, %v837, %v1120
        %v2370 = vsel %vm423, %v839, %v1122
        %v2371 = vsel %vm423, %v840, %v1124
        %v2372 = vsel %vm423, %v842, %v1126
        %v2373 = vsel %vm423, %v843, %v1128
        %v2374 = vsel %vm423, %v845, %v1130
        %v2375 = vsel %vm423, %v846, %v1132
        %v2376 = vsel %vm423, %v848, %v1134
        %v2377 = vsel %vm423, %v849, %v1136
        %v2378 = vsel %vm423, %v851, %v1138
        %v2379 = vsel %vm423, %v852, %v1140
        %v2380 = vsel %vm423, %v854, %v1142
        %v2381 = vsel %vm423, %v855, %v1144
        %v2382 = vsel %vm423, %v857, %v1146
        %v2383 = vsel %vm423, %v858, %v1148
        %v2384 = vsel %vm423, %v860, %v1150
        %v2385 = vsel %vm423, %v861, %v1152
        %vm2386 = vcmask 64512
        %v2387 = vsel %vm2386, %v2354, %v1267
        %v2388 = vsel %vm2386, %v2355, %v1269
        %v2389 = vsel %vm2386, %v2356, %v1271
        %v2390 = vsel %vm2386, %v2357, %v1273
        %v2391 = vsel %vm2386, %v2358, %v1275
        %v2392 = vsel %vm2386, %v2359, %v1277
        %v2393 = vsel %vm2386, %v2360, %v1279
        %v2394 = vsel %vm2386, %v2361, %v1281
        %v2395 = vsel %vm2386, %v2362, %v1283
        %v2396 = vsel %vm2386, %v2363, %v1285
        %v2397 = vsel %vm2386, %v2364, %v1287
        %v2398 = vsel %vm2386, %v2365, %v1289
        %v2399 = vsel %vm2386, %v2366, %v1291
        %v2400 = vsel %vm2386, %v2367, %v1293
        %v2401 = vsel %vm2386, %v2368, %v1295
        %v2402 = vsel %vm2386, %v2369, %v1297
        %v2403 = vsel %vm2386, %v2370, %v1299
        %v2404 = vsel %vm2386, %v2371, %v1301
        %v2405 = vsel %vm2386, %v2372, %v1303
        %v2406 = vsel %vm2386, %v2373, %v1305
        %v2407 = vsel %vm2386, %v2374, %v1307
        %v2408 = vsel %vm2386, %v2375, %v1309
        %v2409 = vsel %vm2386, %v2376, %v1311
        %v2410 = vsel %vm2386, %v2377, %v1313
        %v2411 = vsel %vm2386, %v2378, %v1315
        %v2412 = vsel %vm2386, %v2379, %v1317
        %v2413 = vsel %vm2386, %v2380, %v1319
        %v2414 = vsel %vm2386, %v2381, %v1321
        %v2415 = vsel %vm2386, %v2382, %v1323
        %v2416 = vsel %vm2386, %v2383, %v1325
        %v2417 = vsel %vm2386, %v2384, %v1327
        %v2418 = vsel %vm2386, %v2385, %v1329
        %vm2419 = vcmask 97280
        %v2420 = vsel %vm2419, %v2387, %v1395
        %v2421 = vsel %vm2419, %v2388, %v1397
        %v2422 = vsel %vm2419, %v2389, %v1399
        %v2423 = vsel %vm2419, %v2390, %v1401
        %v2424 = vsel %vm2419, %v2391, %v1403
        %v2425 = vsel %vm2419, %v2392, %v1405
        %v2426 = vsel %vm2419, %v2393, %v1407
        %v2427 = vsel %vm2419, %v2394, %v1409
        %v2428 = vsel %vm2419, %v2395, %v1411
        %v2429 = vsel %vm2419, %v2396, %v1413
        %v2430 = vsel %vm2419, %v2397, %v1415
        %v2431 = vsel %vm2419, %v2398, %v1417
        %v2432 = vsel %vm2419, %v2399, %v1419
        %v2433 = vsel %vm2419, %v2400, %v1421
        %v2434 = vsel %vm2419, %v2401, %v1423
        %v2435 = vsel %vm2419, %v2402, %v1425
        %v2436 = vsel %vm2419, %v2403, %v1427
        %v2437 = vsel %vm2419, %v2404, %v1429
        %v2438 = vsel %vm2419, %v2405, %v1431
        %v2439 = vsel %vm2419, %v2406, %v1433
        %v2440 = vsel %vm2419, %v2407, %v1435
        %v2441 = vsel %vm2419, %v2408, %v1437
        %v2442 = vsel %vm2419, %v2409, %v1439
        %v2443 = vsel %vm2419, %v2410, %v1441
        %v2444 = vsel %vm2419, %v2411, %v1443
        %v2445 = vsel %vm2419, %v2412, %v1445
        %v2446 = vsel %vm2419, %v2413, %v1447
        %v2447 = vsel %vm2419, %v2414, %v1449
        %v2448 = vsel %vm2419, %v2415, %v1451
        %v2449 = vsel %vm2419, %v2416, %v1453
        %v2450 = vsel %vm2419, %v2417, %v1455
        %v2451 = vsel %vm2419, %v2418, %v1457
        %vm2452 = vcmask 130048
        %v2453 = vsel %vm2452, %v2420, %v1587
        %v2454 = vsel %vm2452, %v2421, %v1589
        %v2455 = vsel %vm2452, %v2422, %v1591
        %v2456 = vsel %vm2452, %v2423, %v1593
        %v2457 = vsel %vm2452, %v2424, %v1595
        %v2458 = vsel %vm2452, %v2425, %v1597
        %v2459 = vsel %vm2452, %v2426, %v1599
        %v2460 = vsel %vm2452, %v2427, %v1601
        %v2461 = vsel %vm2452, %v2428, %v1603
        %v2462 = vsel %vm2452, %v2429, %v1605
        %v2463 = vsel %vm2452, %v2430, %v1607
        %v2464 = vsel %vm2452, %v2431, %v1609
        %v2465 = vsel %vm2452, %v2432, %v1611
        %v2466 = vsel %vm2452, %v2433, %v1613
        %v2467 = vsel %vm2452, %v2434, %v1615
        %v2468 = vsel %vm2452, %v2435, %v1617
        %v2469 = vsel %vm2452, %v2436, %v1619
        %v2470 = vsel %vm2452, %v2437, %v1621
        %v2471 = vsel %vm2452, %v2438, %v1623
        %v2472 = vsel %vm2452, %v2439, %v1625
        %v2473 = vsel %vm2452, %v2440, %v1627
        %v2474 = vsel %vm2452, %v2441, %v1629
        %v2475 = vsel %vm2452, %v2442, %v1631
        %v2476 = vsel %vm2452, %v2443, %v1633
        %v2477 = vsel %vm2452, %v2444, %v1635
        %v2478 = vsel %vm2452, %v2445, %v1637
        %v2479 = vsel %vm2452, %v2446, %v1639
        %v2480 = vsel %vm2452, %v2447, %v1641
        %v2481 = vsel %vm2452, %v2448, %v1643
        %v2482 = vsel %vm2452, %v2449, %v1645
        %v2483 = vsel %vm2452, %v2450, %v1647
        %v2484 = vsel %vm2452, %v2451, %v1649
        %vm2485 = vcmask 162816
        %v2486 = vsel %vm2485, %v2453, %v1763
        %v2487 = vsel %vm2485, %v2454, %v1765
        %v2488 = vsel %vm2485, %v2455, %v1767
        %v2489 = vsel %vm2485, %v2456, %v1769
        %v2490 = vsel %vm2485, %v2457, %v1771
        %v2491 = vsel %vm2485, %v2458, %v1773
        %v2492 = vsel %vm2485, %v2459, %v1775
        %v2493 = vsel %vm2485, %v2460, %v1777
        %v2494 = vsel %vm2485, %v2461, %v1779
        %v2495 = vsel %vm2485, %v2462, %v1781
        %v2496 = vsel %vm2485, %v2463, %v1783
        %v2497 = vsel %vm2485, %v2464, %v1785
        %v2498 = vsel %vm2485, %v2465, %v1787
        %v2499 = vsel %vm2485, %v2466, %v1789
        %v2500 = vsel %vm2485, %v2467, %v1791
        %v2501 = vsel %vm2485, %v2468, %v1793
        %v2502 = vsel %vm2485, %v2469, %v1795
        %v2503 = vsel %vm2485, %v2470, %v1797
        %v2504 = vsel %vm2485, %v2471, %v1799
        %v2505 = vsel %vm2485, %v2472, %v1801
        %v2506 = vsel %vm2485, %v2473, %v1803
        %v2507 = vsel %vm2485, %v2474, %v1805
        %v2508 = vsel %vm2485, %v2475, %v1807
        %v2509 = vsel %vm2485, %v2476, %v1809
        %v2510 = vsel %vm2485, %v2477, %v1811
        %v2511 = vsel %vm2485, %v2478, %v1813
        %v2512 = vsel %vm2485, %v2479, %v1815
        %v2513 = vsel %vm2485, %v2480, %v1817
        %v2514 = vsel %vm2485, %v2481, %v1819
        %v2515 = vsel %vm2485, %v2482, %v1821
        %v2516 = vsel %vm2485, %v2483, %v1823
        %v2517 = vsel %vm2485, %v2484, %v1825
        %vm2518 = vcmask 195584
        %v2519 = vsel %vm2518, %v2486, %v1891
        %v2520 = vsel %vm2518, %v2487, %v1893
        %v2521 = vsel %vm2518, %v2488, %v1895
        %v2522 = vsel %vm2518, %v2489, %v1897
        %v2523 = vsel %vm2518, %v2490, %v1899
        %v2524 = vsel %vm2518, %v2491, %v1901
        %v2525 = vsel %vm2518, %v2492, %v1903
        %v2526 = vsel %vm2518, %v2493, %v1905
        %v2527 = vsel %vm2518, %v2494, %v1907
        %v2528 = vsel %vm2518, %v2495, %v1909
        %v2529 = vsel %vm2518, %v2496, %v1911
        %v2530 = vsel %vm2518, %v2497, %v1913
        %v2531 = vsel %vm2518, %v2498, %v1915
        %v2532 = vsel %vm2518, %v2499, %v1917
        %v2533 = vsel %vm2518, %v2500, %v1919
        %v2534 = vsel %vm2518, %v2501, %v1921
        %v2535 = vsel %vm2518, %v2502, %v1923
        %v2536 = vsel %vm2518, %v2503, %v1925
        %v2537 = vsel %vm2518, %v2504, %v1927
        %v2538 = vsel %vm2518, %v2505, %v1929
        %v2539 = vsel %vm2518, %v2506, %v1931
        %v2540 = vsel %vm2518, %v2507, %v1933
        %v2541 = vsel %vm2518, %v2508, %v1935
        %v2542 = vsel %vm2518, %v2509, %v1937
        %v2543 = vsel %vm2518, %v2510, %v1939
        %v2544 = vsel %vm2518, %v2511, %v1941
        %v2545 = vsel %vm2518, %v2512, %v1943
        %v2546 = vsel %vm2518, %v2513, %v1945
        %v2547 = vsel %vm2518, %v2514, %v1947
        %v2548 = vsel %vm2518, %v2515, %v1949
        %v2549 = vsel %vm2518, %v2516, %v1951
        %v2550 = vsel %vm2518, %v2517, %v1953
        %vm2551 = vcmask 228352
        %v2552 = vsel %vm2551, %v2519, %v2083
        %v2553 = vsel %vm2551, %v2520, %v2085
        %v2554 = vsel %vm2551, %v2521, %v2087
        %v2555 = vsel %vm2551, %v2522, %v2089
        %v2556 = vsel %vm2551, %v2523, %v2091
        %v2557 = vsel %vm2551, %v2524, %v2093
        %v2558 = vsel %vm2551, %v2525, %v2095
        %v2559 = vsel %vm2551, %v2526, %v2097
        %v2560 = vsel %vm2551, %v2527, %v2099
        %v2561 = vsel %vm2551, %v2528, %v2101
        %v2562 = vsel %vm2551, %v2529, %v2103
        %v2563 = vsel %vm2551, %v2530, %v2105
        %v2564 = vsel %vm2551, %v2531, %v2107
        %v2565 = vsel %vm2551, %v2532, %v2109
        %v2566 = vsel %vm2551, %v2533, %v2111
        %v2567 = vsel %vm2551, %v2534, %v2113
        %v2568 = vsel %vm2551, %v2535, %v2115
        %v2569 = vsel %vm2551, %v2536, %v2117
        %v2570 = vsel %vm2551, %v2537, %v2119
        %v2571 = vsel %vm2551, %v2538, %v2121
        %v2572 = vsel %vm2551, %v2539, %v2123
        %v2573 = vsel %vm2551, %v2540, %v2125
        %v2574 = vsel %vm2551, %v2541, %v2127
        %v2575 = vsel %vm2551, %v2542, %v2129
        %v2576 = vsel %vm2551, %v2543, %v2131
        %v2577 = vsel %vm2551, %v2544, %v2133
        %v2578 = vsel %vm2551, %v2545, %v2135
        %v2579 = vsel %vm2551, %v2546, %v2137
        %v2580 = vsel %vm2551, %v2547, %v2139
        %v2581 = vsel %vm2551, %v2548, %v2141
        %v2582 = vsel %vm2551, %v2549, %v2143
        %v2583 = vsel %vm2551, %v2550, %v2145
        %vm2584 = vcmask 261120
        %v2585 = vsel %vm2584, %v2552, %v2259
        %v2586 = vsel %vm2584, %v2553, %v2261
        %v2587 = vsel %vm2584, %v2554, %v2263
        %v2588 = vsel %vm2584, %v2555, %v2265
        %v2589 = vsel %vm2584, %v2556, %v2267
        %v2590 = vsel %vm2584, %v2557, %v2269
        %v2591 = vsel %vm2584, %v2558, %v2271
        %v2592 = vsel %vm2584, %v2559, %v2273
        %v2593 = vsel %vm2584, %v2560, %v2275
        %v2594 = vsel %vm2584, %v2561, %v2277
        %v2595 = vsel %vm2584, %v2562, %v2279
        %v2596 = vsel %vm2584, %v2563, %v2281
        %v2597 = vsel %vm2584, %v2564, %v2283
        %v2598 = vsel %vm2584, %v2565, %v2285
        %v2599 = vsel %vm2584, %v2566, %v2287
        %v2600 = vsel %vm2584, %v2567, %v2289
        %v2601 = vsel %vm2584, %v2568, %v2291
        %v2602 = vsel %vm2584, %v2569, %v2293
        %v2603 = vsel %vm2584, %v2570, %v2295
        %v2604 = vsel %vm2584, %v2571, %v2297
        %v2605 = vsel %vm2584, %v2572, %v2299
        %v2606 = vsel %vm2584, %v2573, %v2301
        %v2607 = vsel %vm2584, %v2574, %v2303
        %v2608 = vsel %vm2584, %v2575, %v2305
        %v2609 = vsel %vm2584, %v2576, %v2307
        %v2610 = vsel %vm2584, %v2577, %v2309
        %v2611 = vsel %vm2584, %v2578, %v2311
        %v2612 = vsel %vm2584, %v2579, %v2313
        %v2613 = vsel %vm2584, %v2580, %v2315
        %v2614 = vsel %vm2584, %v2581, %v2317
        %v2615 = vsel %vm2584, %v2582, %v2319
        %v2616 = vsel %vm2584, %v2583, %v2321
        %v2617 = vld [vmem:[%s3] sm:$0xff]
        %v2618 = vld [vmem:[%s3 + $0x8] sm:$0xff]
        %v2619 = vld [vmem:[%s3 + $0x10] sm:$0xff]
        %v2620 = vld [vmem:[%s3 + $0x18] sm:$0xff]
        %v2621 = vld [vmem:[%s3 + $0x20] sm:$0xf]
        %v2622 = vld [vmem:[%s4] sm:$0x1]
        %v2624 = vperm.slane %v2622, 0
        %vm2626 = vcmask 293888
        %v2628 = vsel %vm2626, %v2585, 0
        %v2631 = vsel %vm2626, %v2586, 0
        %v2634 = vsel %vm2626, %v2587, 0
        %v2637 = vsel %vm2626, %v2588, 0
        %v2640 = vsel %vm2626, %v2589, 0
        %v2643 = vsel %vm2626, %v2590, 0
        %v2646 = vsel %vm2626, %v2591, 0
        %v2649 = vsel %vm2626, %v2592, 0
        %v2652 = vsel %vm2626, %v2593, 0
        %v2655 = vsel %vm2626, %v2594, 0
        %v2658 = vsel %vm2626, %v2595, 0
        %v2661 = vsel %vm2626, %v2596, 0
        %v2664 = vsel %vm2626, %v2597, 0
        %v2667 = vsel %vm2626, %v2598, 0
        %v2670 = vsel %vm2626, %v2599, 0
        %v2673 = vsel %vm2626, %v2600, 0
        %v2676 = vsel %vm2626, %v2601, 0
        %v2679 = vsel %vm2626, %v2602, 0
        %v2682 = vsel %vm2626, %v2603, 0
        %v2685 = vsel %vm2626, %v2604, 0
        %v2688 = vsel %vm2626, %v2605, 0
        %v2691 = vsel %vm2626, %v2606, 0
        %v2694 = vsel %vm2626, %v2607, 0
        %v2697 = vsel %vm2626, %v2608, 0
        %v2700 = vsel %vm2626, %v2609, 0
        %v2703 = vsel %vm2626, %v2610, 0
        %v2706 = vsel %vm2626, %v2611, 0
        %v2709 = vsel %vm2626, %v2612, 0
        %v2712 = vsel %vm2626, %v2613, 0
        %v2715 = vsel %vm2626, %v2614, 0
        %v2718 = vsel %vm2626, %v2615, 0
        %v2721 = vsel %vm2626, %v2616, 0
        %v2724 = vsel %vm520, %v2621, 0
        %2726 = vmatpush.msra.mxu0 0.0
        %2727 = vmatpush.msra.mxu0 0.0
        %2728 = vmatpush.msra.mxu0 0.0
        %2729 = vmatpush.msra.mxu0 0.0
        %2730 = vmatpush.msra.mxu0 0.0
        %2731 = vmatpush.msra.mxu0 0.0
        %2732 = vmatpush.msra.mxu0 0.0
        %2733 = vmatpush.msra.mxu0 0.0
        %2734 = vmatpush.msra.mxu0 0.0
        %2735 = vmatpush.msra.mxu0 0.0
        %2736 = vmatpush.msra.mxu0 0.0
        %2737 = vmatpush.msra.mxu0 %v2724
        %2738 = vmatpush.msra.mxu0 %v2620
        %2739 = vmatpush.msra.mxu0 %v2619
        %2740 = vmatpush.msra.mxu0 %v2618
        %2741 = vmatpush.msra.mxu0 %v2617
        %2742 = vmatmul.f32.gmra.mxu0 %v2628
        %v2743 = vpop.f32.mrf.mxu0
        %v2744 = vadd.f32 %v2624, %v2743
        %2745 = vmatmul.f32.gmra.mxu0 %v2631
        %v2746 = vpop.f32.mrf.mxu0
        %v2747 = vadd.f32 %v2624, %v2746
        %2748 = vmatmul.f32.gmra.mxu0 %v2634
        %v2749 = vpop.f32.mrf.mxu0
        %v2750 = vadd.f32 %v2624, %v2749
        %2751 = vmatmul.f32.gmra.mxu0 %v2637
        %v2752 = vpop.f32.mrf.mxu0
        %v2753 = vadd.f32 %v2624, %v2752
        %2754 = vmatmul.f32.gmra.mxu0 %v2640
        %v2755 = vpop.f32.mrf.mxu0
        %v2756 = vadd.f32 %v2624, %v2755
        %2757 = vmatmul.f32.gmra.mxu0 %v2643
        %v2758 = vpop.f32.mrf.mxu0
        %v2759 = vadd.f32 %v2624, %v2758
        %2760 = vmatmul.f32.gmra.mxu0 %v2646
        %v2761 = vpop.f32.mrf.mxu0
        %v2762 = vadd.f32 %v2624, %v2761
        %2763 = vmatmul.f32.gmra.mxu0 %v2649
        %v2764 = vpop.f32.mrf.mxu0
        %v2765 = vadd.f32 %v2624, %v2764
        %2766 = vmatmul.f32.gmra.mxu0 %v2652
        %v2767 = vpop.f32.mrf.mxu0
        %v2768 = vadd.f32 %v2624, %v2767
        %2769 = vmatmul.f32.gmra.mxu0 %v2655
        %v2770 = vpop.f32.mrf.mxu0
        %v2771 = vadd.f32 %v2624, %v2770
        %2772 = vmatmul.f32.gmra.mxu0 %v2658
        %v2773 = vpop.f32.mrf.mxu0
        %v2774 = vadd.f32 %v2624, %v2773
        %2775 = vmatmul.f32.gmra.mxu0 %v2661
        %v2776 = vpop.f32.mrf.mxu0
        %v2777 = vadd.f32 %v2624, %v2776
        %2778 = vmatmul.f32.gmra.mxu0 %v2664
        %v2779 = vpop.f32.mrf.mxu0
        %v2780 = vadd.f32 %v2624, %v2779
        %2781 = vmatmul.f32.gmra.mxu0 %v2667
        %v2782 = vpop.f32.mrf.mxu0
        %v2783 = vadd.f32 %v2624, %v2782
        %2784 = vmatmul.f32.gmra.mxu0 %v2670
        %v2785 = vpop.f32.mrf.mxu0
        %v2786 = vadd.f32 %v2624, %v2785
        %2787 = vmatmul.f32.gmra.mxu0 %v2673
        %v2788 = vpop.f32.mrf.mxu0
        %v2789 = vadd.f32 %v2624, %v2788
        %2790 = vmatmul.f32.gmra.mxu0 %v2676
        %v2791 = vpop.f32.mrf.mxu0
        %v2792 = vadd.f32 %v2624, %v2791
        %2793 = vmatmul.f32.gmra.mxu0 %v2679
        %v2794 = vpop.f32.mrf.mxu0
        %v2795 = vadd.f32 %v2624, %v2794
        %2796 = vmatmul.f32.gmra.mxu0 %v2682
        %v2797 = vpop.f32.mrf.mxu0
        %v2798 = vadd.f32 %v2624, %v2797
        %2799 = vmatmul.f32.gmra.mxu0 %v2685
        %v2800 = vpop.f32.mrf.mxu0
        %v2801 = vadd.f32 %v2624, %v2800
        %2802 = vmatmul.f32.gmra.mxu0 %v2688
        %v2803 = vpop.f32.mrf.mxu0
        %v2804 = vadd.f32 %v2624, %v2803
        %2805 = vmatmul.f32.gmra.mxu0 %v2691
        %v2806 = vpop.f32.mrf.mxu0
        %v2807 = vadd.f32 %v2624, %v2806
        %2808 = vmatmul.f32.gmra.mxu0 %v2694
        %v2809 = vpop.f32.mrf.mxu0
        %v2810 = vadd.f32 %v2624, %v2809
        %2811 = vmatmul.f32.gmra.mxu0 %v2697
        %v2812 = vpop.f32.mrf.mxu0
        %v2813 = vadd.f32 %v2624, %v2812
        %2814 = vmatmul.f32.gmra.mxu0 %v2700
        %v2815 = vpop.f32.mrf.mxu0
        %v2816 = vadd.f32 %v2624, %v2815
        %2817 = vmatmul.f32.gmra.mxu0 %v2703
        %v2818 = vpop.f32.mrf.mxu0
        %v2819 = vadd.f32 %v2624, %v2818
        %2820 = vmatmul.f32.gmra.mxu0 %v2706
        %v2821 = vpop.f32.mrf.mxu0
        %v2822 = vadd.f32 %v2624, %v2821
        %2823 = vmatmul.f32.gmra.mxu0 %v2709
        %v2824 = vpop.f32.mrf.mxu0
        %v2825 = vadd.f32 %v2624, %v2824
        %2826 = vmatmul.f32.gmra.mxu0 %v2712
        %v2827 = vpop.f32.mrf.mxu0
        %v2828 = vadd.f32 %v2624, %v2827
        %2829 = vmatmul.f32.gmra.mxu0 %v2715
        %v2830 = vpop.f32.mrf.mxu0
        %v2831 = vadd.f32 %v2624, %v2830
        %2832 = vmatmul.f32.gmra.mxu0 %v2718
        %v2833 = vpop.f32.mrf.mxu0
        %v2834 = vadd.f32 %v2624, %v2833
        %2835 = vmatmul.f32.gmra.mxu0 %v2721
        %v2836 = vpop.f32.mrf.mxu0
        %v2837 = vadd.f32 %v2624, %v2836
        %2838 = vdwg.mxu0
        %v2839 = vmax.f32 %v2744, 0.0
        %v2840 = vmax.f32 %v2747, 0.0
        %v2841 = vmax.f32 %v2750, 0.0
        %v2842 = vmax.f32 %v2753, 0.0
        %v2843 = vmax.f32 %v2756, 0.0
        %v2844 = vmax.f32 %v2759, 0.0
        %v2845 = vmax.f32 %v2762, 0.0
        %v2846 = vmax.f32 %v2765, 0.0
        %v2847 = vmax.f32 %v2768, 0.0
        %v2848 = vmax.f32 %v2771, 0.0
        %v2849 = vmax.f32 %v2774, 0.0
        %v2850 = vmax.f32 %v2777, 0.0
        %v2851 = vmax.f32 %v2780, 0.0
        %v2852 = vmax.f32 %v2783, 0.0
        %v2853 = vmax.f32 %v2786, 0.0
        %v2854 = vmax.f32 %v2789, 0.0
        %v2855 = vmax.f32 %v2792, 0.0
        %v2856 = vmax.f32 %v2795, 0.0
        %v2857 = vmax.f32 %v2798, 0.0
        %v2858 = vmax.f32 %v2801, 0.0
        %v2859 = vmax.f32 %v2804, 0.0
        %v2860 = vmax.f32 %v2807, 0.0
        %v2861 = vmax.f32 %v2810, 0.0
        %v2862 = vmax.f32 %v2813, 0.0
        %v2863 = vmax.f32 %v2816, 0.0
        %v2864 = vmax.f32 %v2819, 0.0
        %v2865 = vmax.f32 %v2822, 0.0
        %v2866 = vmax.f32 %v2825, 0.0
        %v2867 = vmax.f32 %v2828, 0.0
        %v2868 = vmax.f32 %v2831, 0.0
        %v2869 = vmax.f32 %v2834, 0.0
        %v2870 = vmax.f32 %v2837, 0.0
        %v2871 = vld [vmem:[%s5] sm:$0xf]
        %v2872 = vld [vmem:[%s6] sm:$0x1]
        %v2874 = vperm.slane %v2872, 0
        %v2877 = vsel %vm423, %v2839, 0
        %v2880 = vsel %vm423, %v2840, 0
        %v2883 = vsel %vm423, %v2841, 0
        %v2886 = vsel %vm423, %v2842, 0
        %v2889 = vsel %vm423, %v2843, 0
        %v2892 = vsel %vm423, %v2844, 0
        %v2895 = vsel %vm423, %v2845, 0
        %v2898 = vsel %vm423, %v2846, 0
        %v2901 = vsel %vm423, %v2847, 0
        %v2904 = vsel %vm423, %v2848, 0
        %v2907 = vsel %vm423, %v2849, 0
        %v2910 = vsel %vm423, %v2850, 0
        %v2913 = vsel %vm423, %v2851, 0
        %v2916 = vsel %vm423, %v2852, 0
        %v2919 = vsel %vm423, %v2853, 0
        %v2922 = vsel %vm423, %v2854, 0
        %v2925 = vsel %vm423, %v2855, 0
        %v2928 = vsel %vm423, %v2856, 0
        %v2931 = vsel %vm423, %v2857, 0
        %v2934 = vsel %vm423, %v2858, 0
        %v2937 = vsel %vm423, %v2859, 0
        %v2940 = vsel %vm423, %v2860, 0
        %v2943 = vsel %vm423, %v2861, 0
        %v2946 = vsel %vm423, %v2862, 0
        %v2949 = vsel %vm423, %v2863, 0
        %v2952 = vsel %vm423, %v2864, 0
        %v2955 = vsel %vm423, %v2865, 0
        %v2958 = vsel %vm423, %v2866, 0
        %v2961 = vsel %vm423, %v2867, 0
        %v2964 = vsel %vm423, %v2868, 0
        %v2967 = vsel %vm423, %v2869, 0
        %v2970 = vsel %vm423, %v2870, 0
        %v2973 = vsel %vm520, %v2871, 0
        %2975 = vmatpush.msra.mxu0 0.0
        %2976 = vmatpush.msra.mxu0 0.0
        %2977 = vmatpush.msra.mxu0 0.0
        %2978 = vmatpush.msra.mxu0 0.0
        %2979 = vmatpush.msra.mxu0 0.0
        %2980 = vmatpush.msra.mxu0 0.0
        %2981 = vmatpush.msra.mxu0 0.0
        %2982 = vmatpush.msra.mxu0 0.0
        %2983 = vmatpush.msra.mxu0 0.0
        %2984 = vmatpush.msra.mxu0 0.0
        %2985 = vmatpush.msra.mxu0 0.0
        %2986 = vmatpush.msra.mxu0 0.0
        %2987 = vmatpush.msra.mxu0 0.0
        %2988 = vmatpush.msra.mxu0 0.0
        %2989 = vmatpush.msra.mxu0 0.0
        %2990 = vmatpush.msra.mxu0 %v2973
        %2991 = vmatmul.f32.gmra.mxu0 %v2877
        %v2992 = vpop.f32.mrf.mxu0
        %v2993 = vadd.f32 %v2874, %v2992
        %2994 = vmatmul.f32.gmra.mxu0 %v2880
        %v2995 = vpop.f32.mrf.mxu0
        %v2996 = vadd.f32 %v2874, %v2995
        %2997 = vmatmul.f32.gmra.mxu0 %v2883
        %v2998 = vpop.f32.mrf.mxu0
        %v2999 = vadd.f32 %v2874, %v2998
        %3000 = vmatmul.f32.gmra.mxu0 %v2886
        %v3001 = vpop.f32.mrf.mxu0
        %v3002 = vadd.f32 %v2874, %v3001
        %3003 = vmatmul.f32.gmra.mxu0 %v2889
        %v3004 = vpop.f32.mrf.mxu0
        %v3005 = vadd.f32 %v2874, %v3004
        %3006 = vmatmul.f32.gmra.mxu0 %v2892
        %v3007 = vpop.f32.mrf.mxu0
        %v3008 = vadd.f32 %v2874, %v3007
        %3009 = vmatmul.f32.gmra.mxu0 %v2895
        %v3010 = vpop.f32.mrf.mxu0
        %v3011 = vadd.f32 %v2874, %v3010
        %3012 = vmatmul.f32.gmra.mxu0 %v2898
        %v3013 = vpop.f32.mrf.mxu0
        %v3014 = vadd.f32 %v2874, %v3013
        %3015 = vmatmul.f32.gmra.mxu0 %v2901
        %v3016 = vpop.f32.mrf.mxu0
        %v3017 = vadd.f32 %v2874, %v3016
        %3018 = vmatmul.f32.gmra.mxu0 %v2904
        %v3019 = vpop.f32.mrf.mxu0
        %v3020 = vadd.f32 %v2874, %v3019
        %3021 = vmatmul.f32.gmra.mxu0 %v2907
        %v3022 = vpop.f32.mrf.mxu0
        %v3023 = vadd.f32 %v2874, %v3022
        %3024 = vmatmul.f32.gmra.mxu0 %v2910
        %v3025 = vpop.f32.mrf.mxu0
        %v3026 = vadd.f32 %v2874, %v3025
        %3027 = vmatmul.f32.gmra.mxu0 %v2913
        %v3028 = vpop.f32.mrf.mxu0
        %v3029 = vadd.f32 %v2874, %v3028
        %3030 = vmatmul.f32.gmra.mxu0 %v2916
        %v3031 = vpop.f32.mrf.mxu0
        %v3032 = vadd.f32 %v2874, %v3031
        %3033 = vmatmul.f32.gmra.mxu0 %v2919
        %v3034 = vpop.f32.mrf.mxu0
        %v3035 = vadd.f32 %v2874, %v3034
        %3036 = vmatmul.f32.gmra.mxu0 %v2922
        %v3037 = vpop.f32.mrf.mxu0
        %v3038 = vadd.f32 %v2874, %v3037
        %3039 = vmatmul.f32.gmra.mxu0 %v2925
        %v3040 = vpop.f32.mrf.mxu0
        %v3041 = vadd.f32 %v2874, %v3040
        %3042 = vmatmul.f32.gmra.mxu0 %v2928
        %v3043 = vpop.f32.mrf.mxu0
        %v3044 = vadd.f32 %v2874, %v3043
        %3045 = vmatmul.f32.gmra.mxu0 %v2931
        %v3046 = vpop.f32.mrf.mxu0
        %v3047 = vadd.f32 %v2874, %v3046
        %3048 = vmatmul.f32.gmra.mxu0 %v2934
        %v3049 = vpop.f32.mrf.mxu0
        %v3050 = vadd.f32 %v2874, %v3049
        %3051 = vmatmul.f32.gmra.mxu0 %v2937
        %v3052 = vpop.f32.mrf.mxu0
        %v3053 = vadd.f32 %v2874, %v3052
        %3054 = vmatmul.f32.gmra.mxu0 %v2940
        %v3055 = vpop.f32.mrf.mxu0
        %v3056 = vadd.f32 %v2874, %v3055
        %3057 = vmatmul.f32.gmra.mxu0 %v2943
        %v3058 = vpop.f32.mrf.mxu0
        %v3059 = vadd.f32 %v2874, %v3058
        %3060 = vmatmul.f32.gmra.mxu0 %v2946
        %v3061 = vpop.f32.mrf.mxu0
        %v3062 = vadd.f32 %v2874, %v3061
        %3063 = vmatmul.f32.gmra.mxu0 %v2949
        %v3064 = vpop.f32.mrf.mxu0
        %v3065 = vadd.f32 %v2874, %v3064
        %3066 = vmatmul.f32.gmra.mxu0 %v2952
        %v3067 = vpop.f32.mrf.mxu0
        %v3068 = vadd.f32 %v2874, %v3067
        %3069 = vmatmul.f32.gmra.mxu0 %v2955
        %v3070 = vpop.f32.mrf.mxu0
        %v3071 = vadd.f32 %v2874, %v3070
        %3072 = vmatmul.f32.gmra.mxu0 %v2958
        %v3073 = vpop.f32.mrf.mxu0
        %v3074 = vadd.f32 %v2874, %v3073
        %3075 = vmatmul.f32.gmra.mxu0 %v2961
        %v3076 = vpop.f32.mrf.mxu0
        %v3077 = vadd.f32 %v2874, %v3076
        %3078 = vmatmul.f32.gmra.mxu0 %v2964
        %v3079 = vpop.f32.mrf.mxu0
        %v3080 = vadd.f32 %v2874, %v3079
        %3081 = vmatmul.f32.gmra.mxu0 %v2967
        %v3082 = vpop.f32.mrf.mxu0
        %v3083 = vadd.f32 %v2874, %v3082
        %3084 = vmatmul.f32.gmra.mxu0 %v2970
        %v3085 = vpop.f32.mrf.mxu0
        %v3086 = vadd.f32 %v2874, %v3085
        %3087 = vdwg.mxu0
        %v3088 = vld [vmem:[%s385] sm:$0xff]
        %v3089 = vld [vmem:[%s385 + $0x8] sm:$0xff]
        %v3090 = vld [vmem:[%s385 + $0x10] sm:$0xff]
        %v3091 = vld [vmem:[%s385 + $0x18] sm:$0xff]
        %v3092 = vld [vmem:[%s385 + $0x20] sm:$0xff]
        %v3093 = vld [vmem:[%s385 + $0x28] sm:$0xff]
        %v3094 = vld [vmem:[%s385 + $0x30] sm:$0xff]
        %v3095 = vld [vmem:[%s385 + $0x38] sm:$0xff]
        %v3096 = vld [vmem:[%s385 + $0x40] sm:$0xff]
        %v3097 = vld [vmem:[%s385 + $0x48] sm:$0xff]
        %v3098 = vld [vmem:[%s385 + $0x50] sm:$0xff]
        %v3099 = vld [vmem:[%s385 + $0x58] sm:$0xff]
        %v3100 = vld [vmem:[%s385 + $0x60] sm:$0xff]
        %v3101 = vld [vmem:[%s385 + $0x68] sm:$0xff]
        %v3102 = vld [vmem:[%s385 + $0x70] sm:$0xff]
        %v3103 = vld [vmem:[%s385 + $0x78] sm:$0xff]
        %v3104 = vld [vmem:[%s385 + $0x80] sm:$0xff]
        %v3105 = vld [vmem:[%s385 + $0x88] sm:$0xff]
        %v3106 = vld [vmem:[%s385 + $0x90] sm:$0xff]
        %v3107 = vld [vmem:[%s385 + $0x98] sm:$0xff]
        %v3108 = vld [vmem:[%s385 + $0xa0] sm:$0xff]
        %v3109 = vld [vmem:[%s385 + $0xa8] sm:$0xff]
        %v3110 = vld [vmem:[%s385 + $0xb0] sm:$0xff]
        %v3111 = vld [vmem:[%s385 + $0xb8] sm:$0xff]
        %v3112 = vld [vmem:[%s385 + $0xc0] sm:$0xff]
        %v3113 = vld [vmem:[%s385 + $0xc8] sm:$0xff]
        %v3114 = vld [vmem:[%s385 + $0xd0] sm:$0xff]
        %v3115 = vld [vmem:[%s385 + $0xd8] sm:$0xff]
        %v3116 = vld [vmem:[%s385 + $0xe0] sm:$0xff]
        %v3117 = vld [vmem:[%s385 + $0xe8] sm:$0xff]
        %v3118 = vld [vmem:[%s385 + $0xf0] sm:$0xff]
        %v3119 = vld [vmem:[%s385 + $0xf8] sm:$0xff]
        %v3120 = vld [vmem:[%s7] sm:$0xf]
        %v3121 = vld [vmem:[%s8] sm:$0x1]
        %v3123 = vperm.slane %v3121, 0
        %v3126 = vsel %vm423, %v3088, 0
        %v3129 = vsel %vm423, %v3089, 0
        %v3132 = vsel %vm423, %v3090, 0
        %v3135 = vsel %vm423, %v3091, 0
        %v3138 = vsel %vm423, %v3092, 0
        %v3141 = vsel %vm423, %v3093, 0
        %v3144 = vsel %vm423, %v3094, 0
        %v3147 = vsel %vm423, %v3095, 0
        %v3150 = vsel %vm423, %v3096, 0
        %v3153 = vsel %vm423, %v3097, 0
        %v3156 = vsel %vm423, %v3098, 0
        %v3159 = vsel %vm423, %v3099, 0
        %v3162 = vsel %vm423, %v3100, 0
        %v3165 = vsel %vm423, %v3101, 0
        %v3168 = vsel %vm423, %v3102, 0
        %v3171 = vsel %vm423, %v3103, 0
        %v3174 = vsel %vm423, %v3104, 0
        %v3177 = vsel %vm423, %v3105, 0
        %v3180 = vsel %vm423, %v3106, 0
        %v3183 = vsel %vm423, %v3107, 0
        %v3186 = vsel %vm423, %v3108, 0
        %v3189 = vsel %vm423, %v3109, 0
        %v3192 = vsel %vm423, %v3110, 0
        %v3195 = vsel %vm423, %v3111, 0
        %v3198 = vsel %vm423, %v3112, 0
        %v3201 = vsel %vm423, %v3113, 0
        %v3204 = vsel %vm423, %v3114, 0
        %v3207 = vsel %vm423, %v3115, 0
        %v3210 = vsel %vm423, %v3116, 0
        %v3213 = vsel %vm423, %v3117, 0
        %v3216 = vsel %vm423, %v3118, 0
        %v3219 = vsel %vm423, %v3119, 0
        %v3222 = vsel %vm520, %v3120, 0
        %3224 = vmatpush.msra.mxu0 0.0
        %3225 = vmatpush.msra.mxu0 0.0
        %3226 = vmatpush.msra.mxu0 0.0
        %3227 = vmatpush.msra.mxu0 0.0
        %3228 = vmatpush.msra.mxu0 0.0
        %3229 = vmatpush.msra.mxu0 0.0
        %3230 = vmatpush.msra.mxu0 0.0
        %3231 = vmatpush.msra.mxu0 0.0
        %3232 = vmatpush.msra.mxu0 0.0
        %3233 = vmatpush.msra.mxu0 0.0
        %3234 = vmatpush.msra.mxu0 0.0
        %3235 = vmatpush.msra.mxu0 0.0
        %3236 = vmatpush.msra.mxu0 0.0
        %3237 = vmatpush.msra.mxu0 0.0
        %3238 = vmatpush.msra.mxu0 0.0
        %3239 = vmatpush.msra.mxu0 %v3222
        %3240 = vmatmul.f32.gmra.mxu0 %v3126
        %v3241 = vpop.f32.mrf.mxu0
        %v3242 = vadd.f32 %v3123, %v3241
        %3243 = vmatmul.f32.gmra.mxu0 %v3129
        %v3244 = vpop.f32.mrf.mxu0
        %v3245 = vadd.f32 %v3123, %v3244
        %3246 = vmatmul.f32.gmra.mxu0 %v3132
        %v3247 = vpop.f32.mrf.mxu0
        %v3248 = vadd.f32 %v3123, %v3247
        %3249 = vmatmul.f32.gmra.mxu0 %v3135
        %v3250 = vpop.f32.mrf.mxu0
        %v3251 = vadd.f32 %v3123, %v3250
        %3252 = vmatmul.f32.gmra.mxu0 %v3138
        %v3253 = vpop.f32.mrf.mxu0
        %v3254 = vadd.f32 %v3123, %v3253
        %3255 = vmatmul.f32.gmra.mxu0 %v3141
        %v3256 = vpop.f32.mrf.mxu0
        %v3257 = vadd.f32 %v3123, %v3256
        %3258 = vmatmul.f32.gmra.mxu0 %v3144
        %v3259 = vpop.f32.mrf.mxu0
        %v3260 = vadd.f32 %v3123, %v3259
        %3261 = vmatmul.f32.gmra.mxu0 %v3147
        %v3262 = vpop.f32.mrf.mxu0
        %v3263 = vadd.f32 %v3123, %v3262
        %3264 = vmatmul.f32.gmra.mxu0 %v3150
        %v3265 = vpop.f32.mrf.mxu0
        %v3266 = vadd.f32 %v3123, %v3265
        %3267 = vmatmul.f32.gmra.mxu0 %v3153
        %v3268 = vpop.f32.mrf.mxu0
        %v3269 = vadd.f32 %v3123, %v3268
        %3270 = vmatmul.f32.gmra.mxu0 %v3156
        %v3271 = vpop.f32.mrf.mxu0
        %v3272 = vadd.f32 %v3123, %v3271
        %3273 = vmatmul.f32.gmra.mxu0 %v3159
        %v3274 = vpop.f32.mrf.mxu0
        %v3275 = vadd.f32 %v3123, %v3274
        %3276 = vmatmul.f32.gmra.mxu0 %v3162
        %v3277 = vpop.f32.mrf.mxu0
        %v3278 = vadd.f32 %v3123, %v3277
        %3279 = vmatmul.f32.gmra.mxu0 %v3165
        %v3280 = vpop.f32.mrf.mxu0
        %v3281 = vadd.f32 %v3123, %v3280
        %3282 = vmatmul.f32.gmra.mxu0 %v3168
        %v3283 = vpop.f32.mrf.mxu0
        %v3284 = vadd.f32 %v3123, %v3283
        %3285 = vmatmul.f32.gmra.mxu0 %v3171
        %v3286 = vpop.f32.mrf.mxu0
        %v3287 = vadd.f32 %v3123, %v3286
        %3288 = vmatmul.f32.gmra.mxu0 %v3174
        %v3289 = vpop.f32.mrf.mxu0
        %v3290 = vadd.f32 %v3123, %v3289
        %3291 = vmatmul.f32.gmra.mxu0 %v3177
        %v3292 = vpop.f32.mrf.mxu0
        %v3293 = vadd.f32 %v3123, %v3292
        %3294 = vmatmul.f32.gmra.mxu0 %v3180
        %v3295 = vpop.f32.mrf.mxu0
        %v3296 = vadd.f32 %v3123, %v3295
        %3297 = vmatmul.f32.gmra.mxu0 %v3183
        %v3298 = vpop.f32.mrf.mxu0
        %v3299 = vadd.f32 %v3123, %v3298
        %3300 = vmatmul.f32.gmra.mxu0 %v3186
        %v3301 = vpop.f32.mrf.mxu0
        %v3302 = vadd.f32 %v3123, %v3301
        %3303 = vmatmul.f32.gmra.mxu0 %v3189
        %v3304 = vpop.f32.mrf.mxu0
        %v3305 = vadd.f32 %v3123, %v3304
        %3306 = vmatmul.f32.gmra.mxu0 %v3192
        %v3307 = vpop.f32.mrf.mxu0
        %v3308 = vadd.f32 %v3123, %v3307
        %3309 = vmatmul.f32.gmra.mxu0 %v3195
        %v3310 = vpop.f32.mrf.mxu0
        %v3311 = vadd.f32 %v3123, %v3310
        %3312 = vmatmul.f32.gmra.mxu0 %v3198
        %v3313 = vpop.f32.mrf.mxu0
        %v3314 = vadd.f32 %v3123, %v3313
        %3315 = vmatmul.f32.gmra.mxu0 %v3201
        %v3316 = vpop.f32.mrf.mxu0
        %v3317 = vadd.f32 %v3123, %v3316
        %3318 = vmatmul.f32.gmra.mxu0 %v3204
        %v3319 = vpop.f32.mrf.mxu0
        %v3320 = vadd.f32 %v3123, %v3319
        %3321 = vmatmul.f32.gmra.mxu0 %v3207
        %v3322 = vpop.f32.mrf.mxu0
        %v3323 = vadd.f32 %v3123, %v3322
        %3324 = vmatmul.f32.gmra.mxu0 %v3210
        %v3325 = vpop.f32.mrf.mxu0
        %v3326 = vadd.f32 %v3123, %v3325
        %3327 = vmatmul.f32.gmra.mxu0 %v3213
        %v3328 = vpop.f32.mrf.mxu0
        %v3329 = vadd.f32 %v3123, %v3328
        %3330 = vmatmul.f32.gmra.mxu0 %v3216
        %v3331 = vpop.f32.mrf.mxu0
        %v3332 = vadd.f32 %v3123, %v3331
        %3333 = vmatmul.f32.gmra.mxu0 %v3219
        %v3334 = vpop.f32.mrf.mxu0
        %v3335 = vadd.f32 %v3123, %v3334
        %3336 = vdwg.mxu0
        %v3337 = vadd.f32 %v2993, %v3242
        %v3338 = vadd.f32 %v2996, %v3245
        %v3339 = vadd.f32 %v2999, %v3248
        %v3340 = vadd.f32 %v3002, %v3251
        %v3341 = vadd.f32 %v3005, %v3254
        %v3342 = vadd.f32 %v3008, %v3257
        %v3343 = vadd.f32 %v3011, %v3260
        %v3344 = vadd.f32 %v3014, %v3263
        %v3345 = vadd.f32 %v3017, %v3266
        %v3346 = vadd.f32 %v3020, %v3269
        %v3347 = vadd.f32 %v3023, %v3272
        %v3348 = vadd.f32 %v3026, %v3275
        %v3349 = vadd.f32 %v3029, %v3278
        %v3350 = vadd.f32 %v3032, %v3281
        %v3351 = vadd.f32 %v3035, %v3284
        %v3352 = vadd.f32 %v3038, %v3287
        %v3353 = vadd.f32 %v3041, %v3290
        %v3354 = vadd.f32 %v3044, %v3293
        %v3355 = vadd.f32 %v3047, %v3296
        %v3356 = vadd.f32 %v3050, %v3299
        %v3357 = vadd.f32 %v3053, %v3302
        %v3358 = vadd.f32 %v3056, %v3305
        %v3359 = vadd.f32 %v3059, %v3308
        %v3360 = vadd.f32 %v3062, %v3311
        %v3361 = vadd.f32 %v3065, %v3314
        %v3362 = vadd.f32 %v3068, %v3317
        %v3363 = vadd.f32 %v3071, %v3320
        %v3364 = vadd.f32 %v3074, %v3323
        %v3365 = vadd.f32 %v3077, %v3326
        %v3366 = vadd.f32 %v3080, %v3329
        %v3367 = vadd.f32 %v3083, %v3332
        %v3368 = vadd.f32 %v3086, %v3335
        %v3369 = vmax.f32 %v3337, 0.0
        %v3370 = vmax.f32 %v3338, 0.0
        %v3371 = vmax.f32 %v3339, 0.0
        %v3372 = vmax.f32 %v3340, 0.0
        %v3373 = vmax.f32 %v3341, 0.0
        %v3374 = vmax.f32 %v3342, 0.0
        %v3375 = vmax.f32 %v3343, 0.0
        %v3376 = vmax.f32 %v3344, 0.0
        %v3377 = vmax.f32 %v3345, 0.0
        %v3378 = vmax.f32 %v3346, 0.0
        %v3379 = vmax.f32 %v3347, 0.0
        %v3380 = vmax.f32 %v3348, 0.0
        %v3381 = vmax.f32 %v3349, 0.0
        %v3382 = vmax.f32 %v3350, 0.0
        %v3383 = vmax.f32 %v3351, 0.0
        %v3384 = vmax.f32 %v3352, 0.0
        %v3385 = vmax.f32 %v3353, 0.0
        %v3386 = vmax.f32 %v3354, 0.0
        %v3387 = vmax.f32 %v3355, 0.0
        %v3388 = vmax.f32 %v3356, 0.0
        %v3389 = vmax.f32 %v3357, 0.0
        %v3390 = vmax.f32 %v3358, 0.0
        %v3391 = vmax.f32 %v3359, 0.0
        %v3392 = vmax.f32 %v3360, 0.0
        %v3393 = vmax.f32 %v3361, 0.0
        %v3394 = vmax.f32 %v3362, 0.0
        %v3395 = vmax.f32 %v3363, 0.0
        %v3396 = vmax.f32 %v3364, 0.0
        %v3397 = vmax.f32 %v3365, 0.0
        %v3398 = vmax.f32 %v3366, 0.0
        %v3399 = vmax.f32 %v3367, 0.0
        %v3400 = vmax.f32 %v3368, 0.0
        %3401 = vst.msk [vmem:[%s339] sm:$0xff] %vm2452, %v3369
        %3402 = vst.msk [vmem:[%s339 + $0x8] sm:$0xff] %vm2452, %v3370
        %3403 = vst.msk [vmem:[%s339 + $0x10] sm:$0xff] %vm2452, %v3371
        %3404 = vst.msk [vmem:[%s339 + $0x18] sm:$0xff] %vm2452, %v3372
        %3405 = vst.msk [vmem:[%s339 + $0x20] sm:$0xff] %vm2452, %v3373
        %3406 = vst.msk [vmem:[%s339 + $0x28] sm:$0xff] %vm2452, %v3374
        %3407 = vst.msk [vmem:[%s339 + $0x30] sm:$0xff] %vm2452, %v3375
        %3408 = vst.msk [vmem:[%s339 + $0x38] sm:$0xff] %vm2452, %v3376
        %3409 = vst.msk [vmem:[%s339 + $0x40] sm:$0xff] %vm2452, %v3377
        %3410 = vst.msk [vmem:[%s339 + $0x48] sm:$0xff] %vm2452, %v3378
        %3411 = vst.msk [vmem:[%s339 + $0x50] sm:$0xff] %vm2452, %v3379
        %3412 = vst.msk [vmem:[%s339 + $0x58] sm:$0xff] %vm2452, %v3380
        %3413 = vst.msk [vmem:[%s339 + $0x60] sm:$0xff] %vm2452, %v3381
        %3414 = vst.msk [vmem:[%s339 + $0x68] sm:$0xff] %vm2452, %v3382
        %3415 = vst.msk [vmem:[%s339 + $0x70] sm:$0xff] %vm2452, %v3383
        %3416 = vst.msk [vmem:[%s339 + $0x78] sm:$0xff] %vm2452, %v3384
        %3417 = vst.msk [vmem:[%s339 + $0x80] sm:$0xff] %vm2452, %v3385
        %3418 = vst.msk [vmem:[%s339 + $0x88] sm:$0xff] %vm2452, %v3386
        %3419 = vst.msk [vmem:[%s339 + $0x90] sm:$0xff] %vm2452, %v3387
        %3420 = vst.msk [vmem:[%s339 + $0x98] sm:$0xff] %vm2452, %v3388
        %3421 = vst.msk [vmem:[%s339 + $0xa0] sm:$0xff] %vm2452, %v3389
        %3422 = vst.msk [vmem:[%s339 + $0xa8] sm:$0xff] %vm2452, %v3390
        %3423 = vst.msk [vmem:[%s339 + $0xb0] sm:$0xff] %vm2452, %v3391
        %3424 = vst.msk [vmem:[%s339 + $0xb8] sm:$0xff] %vm2452, %v3392
        %3425 = vst.msk [vmem:[%s339 + $0xc0] sm:$0xff] %vm2452, %v3393
        %3426 = vst.msk [vmem:[%s339 + $0xc8] sm:$0xff] %vm2452, %v3394
        %3427 = vst.msk [vmem:[%s339 + $0xd0] sm:$0xff] %vm2452, %v3395
        %3428 = vst.msk [vmem:[%s339 + $0xd8] sm:$0xff] %vm2452, %v3396
        %3429 = vst.msk [vmem:[%s339 + $0xe0] sm:$0xff] %vm2452, %v3397
        %3430 = vst.msk [vmem:[%s339 + $0xe8] sm:$0xff] %vm2452, %v3398
        %3431 = vst.msk [vmem:[%s339 + $0xf0] sm:$0xff] %vm2452, %v3399
        %3432 = vst.msk [vmem:[%s339 + $0xf8] sm:$0xff] %vm2452, %v3400
        %s3433 = sand.u32 %s239, 1
        %s3434 = scalar_lea.sflag [#allocation4], %s3433
        %s3435 = sand.u32 %s239, 1
        %s3436 = smul.addr %s3435, 256
        %s3437 = scalar_lea.vmem [#allocation3], %s3436
        // Predicated region
        $region73: #{tpu_custom_call.1} parent=55 // pred_check
          %p3438 = pneg %p249
        $region74: #{tpu_custom_call.1} parent=55 // pred_check_branch
          %3440 = sbr.rel (%p3438) target = $region76
        $region75: #{tpu_custom_call.1} parent=55 // pred_region
          %s3441 = smul.u32 16, %s28
          %3443 = vsyncadd %s3434, 0
          %s3444 = smul.addr %s3441, 2
          %s3445 = smul.addr %s27, 32
          %s3446 = sadd.s32 %s3444, %s3445
          %s3447 = smul.addr %s3446, 8
          %s3448 = scalar_lea.hbm %s9, %s3447
          %s3449 = sshll.u32 %s3437, 4
          %s3450 = int_to_ptr.vmem [resolvable:$true] %s3449
          %s3451 = sshll.u32 %s3448, 4
          %s3452 = int_to_ptr.hbm [resolvable:$true] %s3451
          %3457 = dma.vmem_to_hbm [thread:$0]  %s3450, 4096, %s3452, %s3434, 128, 128, 8
        $region76: #{tpu_custom_call.1} parent=55 // pred_fallthru
          _
      $region56: #{tpu_custom_call.1} parent=5 // pred_fallthru
        _
      %p3458 = scmp.le.s32.totalorder 2, %s18
      // Predicated region
      $region77: #{tpu_custom_call.1} parent=5 // pred_check
        %p3459 = pneg %p3458
      $region78: #{tpu_custom_call.1} parent=5 // pred_check_branch
        %3461 = sbr.rel (%p3459) target = $region80
      $region79: #{tpu_custom_call.1} parent=5 // pred_region
        %s3462 = ssub.s32 %s18, 2
        // Predicated region
        $region81: #{tpu_custom_call.1} parent=79 // pred_check
          %p3463 = pneg %p255
        $region82: #{tpu_custom_call.1} parent=79 // pred_check_branch
          %3465 = sbr.rel (%p3463) target = $region84
        $region83: #{tpu_custom_call.1} parent=79 // pred_region
          %s3466 = sand.u32 %s240, 1
          %s3467 = scalar_lea.sflag [#allocation4], %s3466
          %s3468 = sand.u32 %s240, 1
          %s3469 = smul.addr %s3468, 256
          %s3470 = scalar_lea.vmem [#allocation3], %s3469
          %3472 = dma.done %s3467, 4096
        $region84: #{tpu_custom_call.1} parent=79 // pred_fallthru
          _
      $region80: #{tpu_custom_call.1} parent=5 // pred_fallthru
        _
    $region6: #{tpu_custom_call.1} parent=1 // loop_footer
      %s22 = sadd.s32 1, %s18
    $region7: #{tpu_custom_call.1} parent=1 // loop_footer_branch
      %17 = sbr.rel target = $region3
    $region8: #{tpu_custom_call.1} parent=1 // loop_exit
      _
    %3473 = vsyncpa [#allocation4], 1
    %s3474 = scalar_lea.sflag [#allocation4], 1
    %3475 = vsyncpa %s3474, 1

</llo_original>
